<compile_context>
chip_gen: v7x
topology: tpu7x:2x2x1
jax: 0.10.0
libtpu: 0.0.40
codegen_flags: <defaults>
</compile_context>

<pallas_src>
import jax
import jax.numpy as jnp
from jax.experimental import pallas as pl
from jax.experimental.pallas import tpu as pltpu


# --------------------------------------------------------------------------
# Kernel
# --------------------------------------------------------------------------
def _linear_kernel(z_ref, wt_ref, b_ref, o_ref):
    # z_ref : (B, z_dim)   f32   -- full array, resident across grid steps
    # wt_ref: (z_dim, TN)  bf16  -- tile of pre-transposed weight
    # b_ref : (1, TN)      f32   -- tile of bias
    # o_ref : (B, TN)      f32   -- tile of output
    z = z_ref[...].astype(wt_ref.dtype)          # tiny cast, VPU
    acc = jnp.dot(z, wt_ref[...], preferred_element_type=jnp.float32)
    o_ref[...] = acc + b_ref[...]


def _pick_tile(out_features, *, max_tn=32768, min_grid=2, lane=128):
    """Largest lane-aligned divisor of out_features that is <= max_tn.

    Prefers a tile that leaves at least `min_grid` grid steps (so the single
    'parallel' grid axis can be sharded across v7x's 2 TensorCores). Falls
    back to the largest divisor found, or to a single full-width tile.
    """
    best = None        # satisfies min_grid
    best_any = None    # any lane-aligned divisor
    upper = min(max_tn, out_features)
    for tn in range(lane, upper + 1, lane):
        if out_features % tn == 0:
            best_any = tn
            if out_features // tn >= min_grid:
                best = tn
    if best is not None:
        return best
    if best_any is not None:
        return best_any
    # Pathological (out_features not a multiple of 128): one full-width tile.
    return out_features


# --------------------------------------------------------------------------
# Wrapper
# --------------------------------------------------------------------------
def linear_pallas(z, wt, b, *, max_tn=32768):
    """y = z @ wt + b with a Pallas TPU kernel.

    z : (B, z_dim)              float32
    wt: (z_dim, out_features)   bfloat16 (pre-transposed nn.Linear weight)
    b : (out_features,)         float32
    """
    B, z_dim = z.shape
    zd2, out_features = wt.shape
    assert zd2 == z_dim, "weight / input dim mismatch"

    tn = _pick_tile(out_features, max_tn=max_tn)
    grid = (pl.cdiv(out_features, tn),)

    b2 = b.reshape(1, out_features)

    return pl.pallas_call(
        _linear_kernel,
        out_shape=jax.ShapeDtypeStruct((B, out_features), jnp.float32),
        grid_spec=pltpu.PrefetchScalarGridSpec(
            num_scalar_prefetch=0,
            grid=grid,
            in_specs=[
                pl.BlockSpec((B, z_dim), lambda j: (0, 0)),   # z, stays resident
                pl.BlockSpec((z_dim, tn), lambda j: (0, j)),  # W^T tile (bf16)
                pl.BlockSpec((1, tn), lambda j: (0, j)),      # bias tile
            ],
            out_specs=pl.BlockSpec((B, tn), lambda j: (0, j)),
        ),
        compiler_params=pltpu.CompilerParams(
            dimension_semantics=("parallel",),
        ),
    )(z, wt, b2)


def video_gan_generator_forward(z, wt, b):
    """Equivalent of VideoGANGenerator.forward (weight pre-transposed)."""
    y = linear_pallas(z, wt, b)                   # (B, T*C*64*64)
    out_features = y.shape[1]
    # PyTorch: .view(B, -1, 3, 64, 64)  (3 is hard-coded in the module)
    assert out_features % (3 * 64 * 64) == 0, "view(.., -1, 3, 64, 64) must factor"
    return y.reshape(z.shape[0], -1, 3, 64, 64)


def init_params(key, z_dim, video_length, img_channels):
    """nn.Linear-style init; weight is transposed + cast to bf16 ONCE here."""
    out_features = video_length * img_channels * 64 * 64
    kw, kb = jax.random.split(key)
    bound = 1.0 / jnp.sqrt(jnp.float32(z_dim))
    w = jax.random.uniform(kw, (out_features, z_dim), jnp.float32, -bound, bound)
    b = jax.random.uniform(kb, (out_features,), jnp.float32, -bound, bound)
    wt = jnp.transpose(w).astype(jnp.bfloat16)    # (z_dim, out_features), bf16
    return w, wt, b


# --------------------------------------------------------------------------
# Demo / correctness check
# --------------------------------------------------------------------------
if __name__ == "__main__":
    B = 2
    z_dim = 32
    video_length = 2
    img_channels = 3          # must be 3 for the hard-coded .view(..., 3, 64, 64)

    key = jax.random.PRNGKey(0)
    kz, kp = jax.random.split(key)

    z = jax.random.normal(kz, (B, z_dim), dtype=jnp.float32)
    w_f32, wt_bf16, b = init_params(kp, z_dim, video_length, img_channels)

    video = video_gan_generator_forward(z, wt_bf16, b)
    video = jax.block_until_ready(video)

    T_out = video_length * img_channels * 64 * 64 // (3 * 64 * 64)
    assert video.shape == (B, T_out, 3, 64, 64)

    # Reference 1: exact same bf16 math in plain JAX (tight tolerance).
    ref_bf16 = (jnp.dot(z.astype(jnp.bfloat16), wt_bf16,
                        preferred_element_type=jnp.float32)
                + b).reshape(B, -1, 3, 64, 64)
    assert jnp.allclose(video, ref_bf16, atol=1e-3, rtol=1e-3)

    # Reference 2: full-f32 PyTorch semantics (loose tolerance for bf16 weights).
    ref_f32 = (z @ w_f32.T + b).reshape(B, -1, 3, 64, 64)
    assert jnp.allclose(video, ref_f32, atol=2e-2, rtol=2e-2)

    print("KERNEL_OK")
</pallas_src>

<mosaic_0001>
module attributes {stable_mosaic.version = 11 : i64} {
  func.func @_linear_kernel(%arg0: i32, %arg1: memref<2x32xf32, #tpu.memory_space<vmem>>, %arg2: memref<32x12288xbf16, #tpu.memory_space<vmem>>, %arg3: memref<1x12288xf32, #tpu.memory_space<vmem>>, %arg4: memref<2x12288xf32, #tpu.memory_space<vmem>>) attributes {dimension_semantics = [#tpu.dimension_semantics<parallel>], iteration_bounds = array<i64: 2>, scalar_prefetch = 0 : i64, scratch_operands = 0 : i64, tpu.core_type = #tpu.core_type<tc>, window_params = [{pipeline_mode = #tpu.pipeline_mode<synchronous>, transform_indices = @transform_0, window_bounds = array<i64: 2, 32>}, {transform_indices = @transform_1, window_bounds = array<i64: 32, 12288>}, {transform_indices = @transform_2, window_bounds = array<i64: 1, 12288>}, {transform_indices = @transform_3, window_bounds = array<i64: 2, 12288>}]} {
    %c0 = arith.constant 0 : index
    %c0_0 = arith.constant 0 : index
    %0 = vector.load %arg1[%c0, %c0_0] : memref<2x32xf32, #tpu.memory_space<vmem>>, vector<2x32xf32>
    %1 = arith.truncf %0 : vector<2x32xf32> to vector<2x32xbf16>
    %c0_1 = arith.constant 0 : index
    %c0_2 = arith.constant 0 : index
    %2 = vector.load %arg2[%c0_1, %c0_2] : memref<32x12288xbf16, #tpu.memory_space<vmem>>, vector<32x12288xbf16>
    %cst = arith.constant dense<0.000000e+00> : vector<2x12288xf32>
    %3 = tpu.matmul %1, %2, %cst {dimension_numbers = #tpu.dot_dimension_numbers<[1], [0], [0], [1], [0, 0, 1, 1], [], []>} : vector<2x32xbf16>, vector<32x12288xbf16>, vector<2x12288xf32> -> vector<2x12288xf32>
    %c0_3 = arith.constant 0 : index
    %c0_4 = arith.constant 0 : index
    %4 = vector.load %arg3[%c0_3, %c0_4] : memref<1x12288xf32, #tpu.memory_space<vmem>>, vector<1x12288xf32>
    %5 = vector.broadcast %4 : vector<1x12288xf32> to vector<2x12288xf32>
    %6 = arith.addf %3, %5 : vector<2x12288xf32>
    %c0_5 = arith.constant 0 : index
    %c0_6 = arith.constant 0 : index
    %7 = vector.load %arg4[%c0_5, %c0_6] : memref<2x12288xf32, #tpu.memory_space<vmem>>, vector<2x12288xf32>
    tpu.vector_store %arg4[%c0_5, %c0_6], %6 {strides = array<i32>} : memref<2x12288xf32, #tpu.memory_space<vmem>>, vector<2x12288xf32>,
    return
  }
  func.func @transform_0(%arg0: i32) -> (i32, i32) {
    %c0_i32 = arith.constant 0 : i32
    %c0_i32_0 = arith.constant 0 : i32
    %c0_i32_1 = arith.constant 0 : i32
    return %c0_i32, %c0_i32_0 : i32, i32
  }
  func.func @transform_1(%arg0: i32) -> (i32, i32) {
    %c0_i32 = arith.constant 0 : i32
    %c0_i32_0 = arith.constant 0 : i32
    return %c0_i32, %arg0 : i32, i32
  }
  func.func @transform_2(%arg0: i32) -> (i32, i32) {
    %c0_i32 = arith.constant 0 : i32
    %c0_i32_0 = arith.constant 0 : i32
    return %c0_i32, %arg0 : i32, i32
  }
  func.func @transform_3(%arg0: i32) -> (i32, i32) {
    %c0_i32 = arith.constant 0 : i32
    %c0_i32_0 = arith.constant 0 : i32
    return %c0_i32, %arg0 : i32, i32
  }
}

</mosaic_0001>

<llo_original>
// kernel: tpu_custom_call.1
$region0: #{tpu_custom_call.1}
  #allocation0 [shape = 'u32[]', space=smem, size = 0x4, offset = 0x4, fixed_abs, tag = 'smem constant byte address 0x4 - core index']
  #allocation1 [shape = 'u32[144,128]{1,0:T(1,128)}', space=vmem, size = 0x12000, scoped, tag = 'internal scratch']
  %s0 = inlined_call_operand.hbm [shape: f32[2,32], index: 0, kind: input, shape index: {}]
  %s1 = inlined_call_operand.hbm [shape: bf16[32,24576], index: 1, kind: input, shape index: {}]
  %s2 = inlined_call_operand.hbm [shape: f32[1,24576], index: 2, kind: input, shape index: {}]
  %s3 = inlined_call_operand.hbm [shape: f32[2,24576], index: 3, kind: output, shape index: {}]
  %s4 = sld [smem:[#allocation0]]
  $region57: #{tpu_custom_call.1} parent=0
    _
  %s6 = ssub.s32 1, %s4
  %s7 = scalar_select 0, %s6, %s4
  $region1: #{tpu_custom_call.1} parent=0
    #allocation2 [shape = 'u8[1024]{0}', space=vmem, size = 0x400, scoped, tag = 'input window, operand 0, single buffered']
    #allocation3 [shape = 's32[2]{0}', space=sflag, size = 0x8, scoped, tag = 'scoped memory for tpu_custom_call.1']
    #allocation4 [shape = 's32[2]{0}', space=sflag, size = 0x8, scoped, tag = 'scoped memory for tpu_custom_call.1']
    #allocation5 [shape = 'u8[1572864]{0}', space=vmem, size = 0x180000, scoped, tag = 'input window, operand 1']
    #allocation6 [shape = 's32[2]{0}', space=sflag, size = 0x8, scoped, tag = 'scoped memory for tpu_custom_call.1']
    #allocation7 [shape = 'u8[98304]{0}', space=vmem, size = 0x18000, scoped, tag = 'input window, operand 2']
    #allocation8 [shape = 'u8[196608]{0}', space=vmem, size = 0x30000, scoped, tag = 'output window, operand 0']
    %8 = vsyncpa [#allocation3], 0
    %9 = vsyncpa [#allocation6], 0
    %s10 = scalar_lea.sflag [#allocation6], 1
    %11 = vsyncpa %s10, 0
    %12 = vsyncpa [#allocation4], 0
    %s13 = scalar_lea.sflag [#allocation4], 1
    %14 = vsyncpa %s13, 0
    loop: start=0, step=1, limit=4
    $region2: #{tpu_custom_call.1} parent=1 // loop_pre_header
      _
    $region3: #{tpu_custom_call.1} parent=1 // loop_header
      %s16 = sphi 0, %s20
      %p17 = scmp.ge.s32.totalorder %s16, 4
      %s24 = sphi 0, %s24
      %s26 = sphi 0, %s24
      %s27 = sphi 0, %s26
      %s41 = sphi 0, %s27
      %s47 = sphi 0, %s49
      %s50 = sphi 0, %s47
      %s51 = sphi 0, %s50
      %s67 = sphi 0, %s51
      %s73 = sphi 0, %s75
      %s76 = sphi 0, %s73
      %s77 = sphi 0, %s76
      %s93 = sphi 0, %s77
      %s99 = sphi 0, %s101
      %s102 = sphi 0, %s99
      %s103 = sphi 0, %s102
      %s119 = sphi 0, %s103
    $region4: #{tpu_custom_call.1} parent=1 // loop_header_branch
      %19 = sbr.rel (%p17) target = $region8
    $region5: #{tpu_custom_call.1} parent=1 // loop_body
      %s21 = ssub.s32 %s16, 1
      %s22 = ssub.s32 %s16, 2
      %s23 = sadd.s32 %s16, 1
      %s25 = sadd.s32 %s24, 1
      %p28 = scmp.eq.s32.totalorder %s16, 1
      %p29 = scmp.ne.s32.totalorder %s24, %s26
      %p30 = scmp.eq.s32.totalorder %s16, 0
      %p31 = por %p29, %p30
      %p32 = scmp.ne.s32.totalorder %s24, %s26
      %p33 = scmp.eq.s32.totalorder %s21, 1
      %p34 = por %p32, %p33
      %p35 = scmp.ne.s32.totalorder %s26, %s27
      %p36 = scmp.eq.s32.totalorder %s21, 0
      %p37 = por %p35, %p36
      %p38 = scmp.ne.s32.totalorder %s26, %s27
      %p39 = scmp.eq.s32.totalorder %s22, 1
      %p40 = por %p38, %p39
      %p42 = scmp.ne.s32.totalorder %s27, %s41
      %p43 = scmp.eq.s32.totalorder %s22, 0
      %p44 = por %p42, %p43
      %s45 = ssub.s32 %s16, %s23
      %p46 = scmp.eq.s32.totalorder %s45, 0
      %s48 = sadd.s32 %s47, 1
      %s49 = scalar_select %p46, %s47, %s48
      %p52 = pneg %p46
      %p53 = scmp.eq.s32.totalorder %s16, 1
      %p54 = por %p52, %p53
      %p55 = scmp.ne.s32.totalorder %s47, %s50
      %p56 = scmp.eq.s32.totalorder %s16, 0
      %p57 = por %p55, %p56
      %p58 = scmp.ne.s32.totalorder %s47, %s50
      %p59 = scmp.eq.s32.totalorder %s21, 1
      %p60 = por %p58, %p59
      %p61 = scmp.ne.s32.totalorder %s50, %s51
      %p62 = scmp.eq.s32.totalorder %s21, 0
      %p63 = por %p61, %p62
      %p64 = scmp.ne.s32.totalorder %s50, %s51
      %p65 = scmp.eq.s32.totalorder %s22, 1
      %p66 = por %p64, %p65
      %p68 = scmp.ne.s32.totalorder %s51, %s67
      %p69 = scmp.eq.s32.totalorder %s22, 0
      %p70 = por %p68, %p69
      %s71 = ssub.s32 %s16, %s23
      %p72 = scmp.eq.s32.totalorder %s71, 0
      %s74 = sadd.s32 %s73, 1
      %s75 = scalar_select %p72, %s73, %s74
      %p78 = pneg %p72
      %p79 = scmp.eq.s32.totalorder %s16, 1
      %p80 = por %p78, %p79
      %p81 = scmp.ne.s32.totalorder %s73, %s76
      %p82 = scmp.eq.s32.totalorder %s16, 0
      %p83 = por %p81, %p82
      %p84 = scmp.ne.s32.totalorder %s73, %s76
      %p85 = scmp.eq.s32.totalorder %s21, 1
      %p86 = por %p84, %p85
      %p87 = scmp.ne.s32.totalorder %s76, %s77
      %p88 = scmp.eq.s32.totalorder %s21, 0
      %p89 = por %p87, %p88
      %p90 = scmp.ne.s32.totalorder %s76, %s77
      %p91 = scmp.eq.s32.totalorder %s22, 1
      %p92 = por %p90, %p91
      %p94 = scmp.ne.s32.totalorder %s77, %s93
      %p95 = scmp.eq.s32.totalorder %s22, 0
      %p96 = por %p94, %p95
      %s97 = ssub.s32 %s16, %s23
      %p98 = scmp.eq.s32.totalorder %s97, 0
      %s100 = sadd.s32 %s99, 1
      %s101 = scalar_select %p98, %s99, %s100
      %p104 = pneg %p98
      %p105 = scmp.eq.s32.totalorder %s16, 1
      %p106 = por %p104, %p105
      %p107 = scmp.ne.s32.totalorder %s99, %s102
      %p108 = scmp.eq.s32.totalorder %s16, 0
      %p109 = por %p107, %p108
      %p110 = scmp.ne.s32.totalorder %s99, %s102
      %p111 = scmp.eq.s32.totalorder %s21, 1
      %p112 = por %p110, %p111
      %p113 = scmp.ne.s32.totalorder %s102, %s103
      %p114 = scmp.eq.s32.totalorder %s21, 0
      %p115 = por %p113, %p114
      %p116 = scmp.ne.s32.totalorder %s102, %s103
      %p117 = scmp.eq.s32.totalorder %s22, 1
      %p118 = por %p116, %p117
      %p120 = scmp.ne.s32.totalorder %s103, %s119
      %p121 = scmp.eq.s32.totalorder %s22, 0
      %p122 = por %p120, %p121
      %p123 = scmp.le.s32.totalorder 1, %s16
      %p124 = scmp.lt.s32.totalorder %s16, 3
      %p125 = pnand %p123, %p124
      %p126 = pneg %p125
      // Predicated region
      $region9: #{tpu_custom_call.1} parent=5 // pred_check
        _
      $region10: #{tpu_custom_call.1} parent=5 // pred_check_branch
        %128 = sbr.rel (%p125) target = $region12
      $region11: #{tpu_custom_call.1} parent=5 // pred_region
        %s129 = ssub.s32 %s16, 1
        // Predicated region
        $region13: #{tpu_custom_call.1} parent=11 // pred_check
          %p130 = pneg %p37
        $region14: #{tpu_custom_call.1} parent=11 // pred_check_branch
          %132 = sbr.rel (%p130) target = $region16
        $region15: #{tpu_custom_call.1} parent=11 // pred_region
          %s134 = ssub.s32 32, 32
          %135 = vsyncadd [#allocation3], %s134
          %s137 = sshll.u32 [#allocation2], 4
          %s138 = int_to_ptr.vmem [resolvable:$true] %s137
          %140 = dma.hbm_to_vmem [thread:$0]  %s0, 32, %s138, [#allocation3]
        $region16: #{tpu_custom_call.1} parent=11 // pred_fallthru
          _
      $region12: #{tpu_custom_call.1} parent=5 // pred_fallthru
        _
      %p141 = scmp.lt.s32.totalorder %s16, 2
      // Predicated region
      $region17: #{tpu_custom_call.1} parent=5 // pred_check
        %p142 = pneg %p141
      $region18: #{tpu_custom_call.1} parent=5 // pred_check_branch
        %144 = sbr.rel (%p142) target = $region20
      $region19: #{tpu_custom_call.1} parent=5 // pred_region
        // Predicated region
        $region21: #{tpu_custom_call.1} parent=19 // pred_check
          %p145 = pneg %p57
        $region22: #{tpu_custom_call.1} parent=19 // pred_check_branch
          %147 = sbr.rel (%p145) target = $region24
        $region23: #{tpu_custom_call.1} parent=19 // pred_region
          %s148 = sand.u32 %s16, 1
          %s149 = scalar_lea.sflag [#allocation6], %s148
          %s150 = sand.u32 %s47, 1
          %s151 = smul.addr %s150, 1536
          %s152 = scalar_lea.vmem [#allocation5], %s151
          %s153 = smul.u32 96, %s16
          %s155 = ssub.s32 24576, 24576
          %156 = vsyncadd %s149, %s155
          %s157 = smul.addr %s153, 64
          %s158 = scalar_lea.hbm %s1, %s157
          %s159 = sshll.u32 %s152, 4
          %s160 = int_to_ptr.vmem [resolvable:$true] %s159
          %165 = dma.hbm_to_vmem [thread:$0]  %s158, 24576, %s160, %s149, 12288, 6144, 384
        $region24: #{tpu_custom_call.1} parent=19 // pred_fallthru
          _
        // Predicated region
        $region25: #{tpu_custom_call.1} parent=19 // pred_check
          %p166 = pneg %p83
        $region26: #{tpu_custom_call.1} parent=19 // pred_check_branch
          %168 = sbr.rel (%p166) target = $region28
        $region27: #{tpu_custom_call.1} parent=19 // pred_region
          %s169 = sand.u32 %s16, 1
          %s170 = scalar_lea.sflag [#allocation6], %s169
          %s171 = sand.u32 %s73, 1
          %s172 = smul.addr %s171, 96
          %s173 = scalar_lea.vmem [#allocation7], %s172
          %s174 = smul.u32 96, %s16
          %s176 = ssub.s32 1536, 1536
          %177 = vsyncadd %s170, %s176
          %s178 = smul.addr %s174, 16
          %s179 = scalar_lea.hbm %s2, %s178
          %s181 = sshll.u32 %s173, 4
          %s182 = int_to_ptr.vmem [resolvable:$true] %s181
          %184 = dma.hbm_to_vmem [thread:$0]  %s179, 1536, %s182, %s170
        $region28: #{tpu_custom_call.1} parent=19 // pred_fallthru
          _
      $region20: #{tpu_custom_call.1} parent=5 // pred_fallthru
        _
      %p185 = scmp.le.s32.totalorder 1, %s16
      %p186 = scmp.lt.s32.totalorder %s16, 3
      %p187 = pnand %p185, %p186
      %p188 = pneg %p187
      // Predicated region
      $region29: #{tpu_custom_call.1} parent=5 // pred_check
        _
      $region30: #{tpu_custom_call.1} parent=5 // pred_check_branch
        %190 = sbr.rel (%p187) target = $region32
      $region31: #{tpu_custom_call.1} parent=5 // pred_region
        %s191 = ssub.s32 %s16, 1
        // Predicated region
        $region33: #{tpu_custom_call.1} parent=31 // pred_check
          %p192 = pneg %p37
        $region34: #{tpu_custom_call.1} parent=31 // pred_check_branch
          %194 = sbr.rel (%p192) target = $region36
        $region35: #{tpu_custom_call.1} parent=31 // pred_region
          %195 = dma.done [#allocation3], 32
        $region36: #{tpu_custom_call.1} parent=31 // pred_fallthru
          _
        %s196 = sand.u32 %s21, 1
        %s197 = scalar_lea.sflag [#allocation6], %s196
        %s198 = sand.u32 %s50, 1
        %s199 = smul.addr %s198, 1536
        %s200 = scalar_lea.vmem [#allocation5], %s199
        // Predicated region
        $region37: #{tpu_custom_call.1} parent=31 // pred_check
          %p201 = pneg %p63
        $region38: #{tpu_custom_call.1} parent=31 // pred_check_branch
          %203 = sbr.rel (%p201) target = $region40
        $region39: #{tpu_custom_call.1} parent=31 // pred_region
          %204 = dma.done %s197, 24576
        $region40: #{tpu_custom_call.1} parent=31 // pred_fallthru
          _
        %s205 = sand.u32 %s21, 1
        %s206 = scalar_lea.sflag [#allocation6], %s205
        %s207 = sand.u32 %s76, 1
        %s208 = smul.addr %s207, 96
        %s209 = scalar_lea.vmem [#allocation7], %s208
        // Predicated region
        $region41: #{tpu_custom_call.1} parent=31 // pred_check
          %p210 = pneg %p89
        $region42: #{tpu_custom_call.1} parent=31 // pred_check_branch
          %212 = sbr.rel (%p210) target = $region44
        $region43: #{tpu_custom_call.1} parent=31 // pred_region
          %213 = dma.done %s206, 1536
        $region44: #{tpu_custom_call.1} parent=31 // pred_fallthru
          _
        %p214 = pneg %p37
        %p215 = pneg %p34
        %s216 = sand.u32 %s21, 1
        %s217 = scalar_lea.sflag [#allocation6], %s216
        %s218 = sand.u32 %s50, 1
        %s219 = smul.addr %s218, 1536
        %s220 = scalar_lea.vmem [#allocation5], %s219
        %p221 = pneg %p63
        %p222 = pneg %p60
        %s223 = sand.u32 %s21, 1
        %s224 = scalar_lea.sflag [#allocation6], %s223
        %s225 = sand.u32 %s76, 1
        %s226 = smul.addr %s225, 96
        %s227 = scalar_lea.vmem [#allocation7], %s226
        %p228 = pneg %p89
        %p229 = pneg %p86
        %p230 = pneg %p115
        %p231 = pneg %p112
        %s232 = sand.u32 %s102, 1
        %s233 = scalar_lea.sflag [#allocation4], %s232
        %s234 = sand.u32 %s102, 1
        %s235 = smul.addr %s234, 192
        %s236 = scalar_lea.vmem [#allocation8], %s235
        %s237 = smul.u32 96, %s21
        %s238 = smul.u32 96, %s21
        %s239 = smul.u32 96, %s21
        %v241 = vld [vmem:[#allocation2] sm:$0x3]
        %v242 = vpack.c.bf16 %v241, %v241
        %v243 = vld [vmem:[%s200] sm:$0xff]
        %v244 = vld [vmem:[%s200 + $0x8] sm:$0xff]
        %v245 = vld [vmem:[%s200 + $0x10] sm:$0xff]
        %v246 = vld [vmem:[%s200 + $0x18] sm:$0xff]
        %v247 = vld [vmem:[%s200 + $0x20] sm:$0xff]
        %v248 = vld [vmem:[%s200 + $0x28] sm:$0xff]
        %v249 = vld [vmem:[%s200 + $0x30] sm:$0xff]
        %v250 = vld [vmem:[%s200 + $0x38] sm:$0xff]
        %v251 = vld [vmem:[%s200 + $0x40] sm:$0xff]
        %v252 = vld [vmem:[%s200 + $0x48] sm:$0xff]
        %v253 = vld [vmem:[%s200 + $0x50] sm:$0xff]
        %v254 = vld [vmem:[%s200 + $0x58] sm:$0xff]
        %v255 = vld [vmem:[%s200 + $0x60] sm:$0xff]
        %v256 = vld [vmem:[%s200 + $0x68] sm:$0xff]
        %v257 = vld [vmem:[%s200 + $0x70] sm:$0xff]
        %v258 = vld [vmem:[%s200 + $0x78] sm:$0xff]
        %v259 = vld [vmem:[%s200 + $0x80] sm:$0xff]
        %v260 = vld [vmem:[%s200 + $0x88] sm:$0xff]
        %v261 = vld [vmem:[%s200 + $0x90] sm:$0xff]
        %v262 = vld [vmem:[%s200 + $0x98] sm:$0xff]
        %v263 = vld [vmem:[%s200 + $0xa0] sm:$0xff]
        %v264 = vld [vmem:[%s200 + $0xa8] sm:$0xff]
        %v265 = vld [vmem:[%s200 + $0xb0] sm:$0xff]
        %v266 = vld [vmem:[%s200 + $0xb8] sm:$0xff]
        %v267 = vld [vmem:[%s200 + $0xc0] sm:$0xff]
        %v268 = vld [vmem:[%s200 + $0xc8] sm:$0xff]
        %v269 = vld [vmem:[%s200 + $0xd0] sm:$0xff]
        %v270 = vld [vmem:[%s200 + $0xd8] sm:$0xff]
        %v271 = vld [vmem:[%s200 + $0xe0] sm:$0xff]
        %v272 = vld [vmem:[%s200 + $0xe8] sm:$0xff]
        %v273 = vld [vmem:[%s200 + $0xf0] sm:$0xff]
        %v274 = vld [vmem:[%s200 + $0xf8] sm:$0xff]
        %v275 = vld [vmem:[%s200 + $0x100] sm:$0xff]
        %v276 = vld [vmem:[%s200 + $0x108] sm:$0xff]
        %v277 = vld [vmem:[%s200 + $0x110] sm:$0xff]
        %v278 = vld [vmem:[%s200 + $0x118] sm:$0xff]
        %v279 = vld [vmem:[%s200 + $0x120] sm:$0xff]
        %v280 = vld [vmem:[%s200 + $0x128] sm:$0xff]
        %v281 = vld [vmem:[%s200 + $0x130] sm:$0xff]
        %v282 = vld [vmem:[%s200 + $0x138] sm:$0xff]
        %v283 = vld [vmem:[%s200 + $0x140] sm:$0xff]
        %v284 = vld [vmem:[%s200 + $0x148] sm:$0xff]
        %v285 = vld [vmem:[%s200 + $0x150] sm:$0xff]
        %v286 = vld [vmem:[%s200 + $0x158] sm:$0xff]
        %v287 = vld [vmem:[%s200 + $0x160] sm:$0xff]
        %v288 = vld [vmem:[%s200 + $0x168] sm:$0xff]
        %v289 = vld [vmem:[%s200 + $0x170] sm:$0xff]
        %v290 = vld [vmem:[%s200 + $0x178] sm:$0xff]
        %v291 = vld [vmem:[%s200 + $0x180] sm:$0xff]
        %v292 = vld [vmem:[%s200 + $0x188] sm:$0xff]
        %v293 = vld [vmem:[%s200 + $0x190] sm:$0xff]
        %v294 = vld [vmem:[%s200 + $0x198] sm:$0xff]
        %v295 = vld [vmem:[%s200 + $0x1a0] sm:$0xff]
        %v296 = vld [vmem:[%s200 + $0x1a8] sm:$0xff]
        %v297 = vld [vmem:[%s200 + $0x1b0] sm:$0xff]
        %v298 = vld [vmem:[%s200 + $0x1b8] sm:$0xff]
        %v299 = vld [vmem:[%s200 + $0x1c0] sm:$0xff]
        %v300 = vld [vmem:[%s200 + $0x1c8] sm:$0xff]
        %v301 = vld [vmem:[%s200 + $0x1d0] sm:$0xff]
        %v302 = vld [vmem:[%s200 + $0x1d8] sm:$0xff]
        %v303 = vld [vmem:[%s200 + $0x1e0] sm:$0xff]
        %v304 = vld [vmem:[%s200 + $0x1e8] sm:$0xff]
        %v305 = vld [vmem:[%s200 + $0x1f0] sm:$0xff]
        %v306 = vld [vmem:[%s200 + $0x1f8] sm:$0xff]
        %v307 = vld [vmem:[%s200 + $0x200] sm:$0xff]
        %v308 = vld [vmem:[%s200 + $0x208] sm:$0xff]
        %v309 = vld [vmem:[%s200 + $0x210] sm:$0xff]
        %v310 = vld [vmem:[%s200 + $0x218] sm:$0xff]
        %v311 = vld [vmem:[%s200 + $0x220] sm:$0xff]
        %v312 = vld [vmem:[%s200 + $0x228] sm:$0xff]
        %v313 = vld [vmem:[%s200 + $0x230] sm:$0xff]
        %v314 = vld [vmem:[%s200 + $0x238] sm:$0xff]
        %v315 = vld [vmem:[%s200 + $0x240] sm:$0xff]
        %v316 = vld [vmem:[%s200 + $0x248] sm:$0xff]
        %v317 = vld [vmem:[%s200 + $0x250] sm:$0xff]
        %v318 = vld [vmem:[%s200 + $0x258] sm:$0xff]
        %v319 = vld [vmem:[%s200 + $0x260] sm:$0xff]
        %v320 = vld [vmem:[%s200 + $0x268] sm:$0xff]
        %v321 = vld [vmem:[%s200 + $0x270] sm:$0xff]
        %v322 = vld [vmem:[%s200 + $0x278] sm:$0xff]
        %v323 = vld [vmem:[%s200 + $0x280] sm:$0xff]
        %v324 = vld [vmem:[%s200 + $0x288] sm:$0xff]
        %v325 = vld [vmem:[%s200 + $0x290] sm:$0xff]
        %v326 = vld [vmem:[%s200 + $0x298] sm:$0xff]
        %v327 = vld [vmem:[%s200 + $0x2a0] sm:$0xff]
        %v328 = vld [vmem:[%s200 + $0x2a8] sm:$0xff]
        %v329 = vld [vmem:[%s200 + $0x2b0] sm:$0xff]
        %v330 = vld [vmem:[%s200 + $0x2b8] sm:$0xff]
        %v331 = vld [vmem:[%s200 + $0x2c0] sm:$0xff]
        %v332 = vld [vmem:[%s200 + $0x2c8] sm:$0xff]
        %v333 = vld [vmem:[%s200 + $0x2d0] sm:$0xff]
        %v334 = vld [vmem:[%s200 + $0x2d8] sm:$0xff]
        %v335 = vld [vmem:[%s200 + $0x2e0] sm:$0xff]
        %v336 = vld [vmem:[%s200 + $0x2e8] sm:$0xff]
        %v337 = vld [vmem:[%s200 + $0x2f0] sm:$0xff]
        %v338 = vld [vmem:[%s200 + $0x2f8] sm:$0xff]
        %v339 = vld [vmem:[%s200 + $0x300] sm:$0xff]
        %v340 = vld [vmem:[%s200 + $0x308] sm:$0xff]
        %v341 = vld [vmem:[%s200 + $0x310] sm:$0xff]
        %v342 = vld [vmem:[%s200 + $0x318] sm:$0xff]
        %v343 = vld [vmem:[%s200 + $0x320] sm:$0xff]
        %v344 = vld [vmem:[%s200 + $0x328] sm:$0xff]
        %v345 = vld [vmem:[%s200 + $0x330] sm:$0xff]
        %v346 = vld [vmem:[%s200 + $0x338] sm:$0xff]
        %v347 = vld [vmem:[%s200 + $0x340] sm:$0xff]
        %v348 = vld [vmem:[%s200 + $0x348] sm:$0xff]
        %v349 = vld [vmem:[%s200 + $0x350] sm:$0xff]
        %v350 = vld [vmem:[%s200 + $0x358] sm:$0xff]
        %v351 = vld [vmem:[%s200 + $0x360] sm:$0xff]
        %v352 = vld [vmem:[%s200 + $0x368] sm:$0xff]
        %v353 = vld [vmem:[%s200 + $0x370] sm:$0xff]
        %v354 = vld [vmem:[%s200 + $0x378] sm:$0xff]
        %v355 = vld [vmem:[%s200 + $0x380] sm:$0xff]
        %v356 = vld [vmem:[%s200 + $0x388] sm:$0xff]
        %v357 = vld [vmem:[%s200 + $0x390] sm:$0xff]
        %v358 = vld [vmem:[%s200 + $0x398] sm:$0xff]
        %v359 = vld [vmem:[%s200 + $0x3a0] sm:$0xff]
        %v360 = vld [vmem:[%s200 + $0x3a8] sm:$0xff]
        %v361 = vld [vmem:[%s200 + $0x3b0] sm:$0xff]
        %v362 = vld [vmem:[%s200 + $0x3b8] sm:$0xff]
        %v363 = vld [vmem:[%s200 + $0x3c0] sm:$0xff]
        %v364 = vld [vmem:[%s200 + $0x3c8] sm:$0xff]
        %v365 = vld [vmem:[%s200 + $0x3d0] sm:$0xff]
        %v366 = vld [vmem:[%s200 + $0x3d8] sm:$0xff]
        %v367 = vld [vmem:[%s200 + $0x3e0] sm:$0xff]
        %v368 = vld [vmem:[%s200 + $0x3e8] sm:$0xff]
        %v369 = vld [vmem:[%s200 + $0x3f0] sm:$0xff]
        %v370 = vld [vmem:[%s200 + $0x3f8] sm:$0xff]
        %v371 = vld [vmem:[%s200 + $0x400] sm:$0xff]
        %v372 = vld [vmem:[%s200 + $0x408] sm:$0xff]
        %v373 = vld [vmem:[%s200 + $0x410] sm:$0xff]
        %v374 = vld [vmem:[%s200 + $0x418] sm:$0xff]
        %v375 = vld [vmem:[%s200 + $0x420] sm:$0xff]
        %v376 = vld [vmem:[%s200 + $0x428] sm:$0xff]
        %v377 = vld [vmem:[%s200 + $0x430] sm:$0xff]
        %v378 = vld [vmem:[%s200 + $0x438] sm:$0xff]
        %v379 = vld [vmem:[%s200 + $0x440] sm:$0xff]
        %v380 = vld [vmem:[%s200 + $0x448] sm:$0xff]
        %v381 = vld [vmem:[%s200 + $0x450] sm:$0xff]
        %v382 = vld [vmem:[%s200 + $0x458] sm:$0xff]
        %v383 = vld [vmem:[%s200 + $0x460] sm:$0xff]
        %v384 = vld [vmem:[%s200 + $0x468] sm:$0xff]
        %v385 = vld [vmem:[%s200 + $0x470] sm:$0xff]
        %v386 = vld [vmem:[%s200 + $0x478] sm:$0xff]
        %v387 = vld [vmem:[%s200 + $0x480] sm:$0xff]
        %v388 = vld [vmem:[%s200 + $0x488] sm:$0xff]
        %v389 = vld [vmem:[%s200 + $0x490] sm:$0xff]
        %v390 = vld [vmem:[%s200 + $0x498] sm:$0xff]
        %v391 = vld [vmem:[%s200 + $0x4a0] sm:$0xff]
        %v392 = vld [vmem:[%s200 + $0x4a8] sm:$0xff]
        %v393 = vld [vmem:[%s200 + $0x4b0] sm:$0xff]
        %v394 = vld [vmem:[%s200 + $0x4b8] sm:$0xff]
        %v395 = vld [vmem:[%s200 + $0x4c0] sm:$0xff]
        %v396 = vld [vmem:[%s200 + $0x4c8] sm:$0xff]
        %v397 = vld [vmem:[%s200 + $0x4d0] sm:$0xff]
        %v398 = vld [vmem:[%s200 + $0x4d8] sm:$0xff]
        %v399 = vld [vmem:[%s200 + $0x4e0] sm:$0xff]
        %v400 = vld [vmem:[%s200 + $0x4e8] sm:$0xff]
        %v401 = vld [vmem:[%s200 + $0x4f0] sm:$0xff]
        %v402 = vld [vmem:[%s200 + $0x4f8] sm:$0xff]
        %v403 = vld [vmem:[%s200 + $0x500] sm:$0xff]
        %v404 = vld [vmem:[%s200 + $0x508] sm:$0xff]
        %v405 = vld [vmem:[%s200 + $0x510] sm:$0xff]
        %v406 = vld [vmem:[%s200 + $0x518] sm:$0xff]
        %v407 = vld [vmem:[%s200 + $0x520] sm:$0xff]
        %v408 = vld [vmem:[%s200 + $0x528] sm:$0xff]
        %v409 = vld [vmem:[%s200 + $0x530] sm:$0xff]
        %v410 = vld [vmem:[%s200 + $0x538] sm:$0xff]
        %v411 = vld [vmem:[%s200 + $0x540] sm:$0xff]
        %v412 = vld [vmem:[%s200 + $0x548] sm:$0xff]
        %v413 = vld [vmem:[%s200 + $0x550] sm:$0xff]
        %v414 = vld [vmem:[%s200 + $0x558] sm:$0xff]
        %v415 = vld [vmem:[%s200 + $0x560] sm:$0xff]
        %v416 = vld [vmem:[%s200 + $0x568] sm:$0xff]
        %v417 = vld [vmem:[%s200 + $0x570] sm:$0xff]
        %v418 = vld [vmem:[%s200 + $0x578] sm:$0xff]
        %v419 = vld [vmem:[%s200 + $0x580] sm:$0xff]
        %v420 = vld [vmem:[%s200 + $0x588] sm:$0xff]
        %v421 = vld [vmem:[%s200 + $0x590] sm:$0xff]
        %v422 = vld [vmem:[%s200 + $0x598] sm:$0xff]
        %v423 = vld [vmem:[%s200 + $0x5a0] sm:$0xff]
        %v424 = vld [vmem:[%s200 + $0x5a8] sm:$0xff]
        %v425 = vld [vmem:[%s200 + $0x5b0] sm:$0xff]
        %v426 = vld [vmem:[%s200 + $0x5b8] sm:$0xff]
        %v427 = vld [vmem:[%s200 + $0x5c0] sm:$0xff]
        %v428 = vld [vmem:[%s200 + $0x5c8] sm:$0xff]
        %v429 = vld [vmem:[%s200 + $0x5d0] sm:$0xff]
        %v430 = vld [vmem:[%s200 + $0x5d8] sm:$0xff]
        %v431 = vld [vmem:[%s200 + $0x5e0] sm:$0xff]
        %v432 = vld [vmem:[%s200 + $0x5e8] sm:$0xff]
        %v433 = vld [vmem:[%s200 + $0x5f0] sm:$0xff]
        %v434 = vld [vmem:[%s200 + $0x5f8] sm:$0xff]
        %v435 = vld [vmem:[%s209] sm:$0xff]
        %v436 = vld [vmem:[%s209 + $0x8] sm:$0xff]
        %v437 = vld [vmem:[%s209 + $0x10] sm:$0xff]
        %v438 = vld [vmem:[%s209 + $0x18] sm:$0xff]
        %v439 = vld [vmem:[%s209 + $0x20] sm:$0xff]
        %v440 = vld [vmem:[%s209 + $0x28] sm:$0xff]
        %v441 = vld [vmem:[%s209 + $0x30] sm:$0xff]
        %v442 = vld [vmem:[%s209 + $0x38] sm:$0xff]
        %v443 = vld [vmem:[%s209 + $0x40] sm:$0xff]
        %v444 = vld [vmem:[%s209 + $0x48] sm:$0xff]
        %v445 = vld [vmem:[%s209 + $0x50] sm:$0xff]
        %v446 = vld [vmem:[%s209 + $0x58] sm:$0xff]
        %v459 = vlaneseq
        %v460 = vshrl.u32 %v459, 7
        %v461 = vsub.s32 0, %v460
        %v462 = vrot.slane %v435, %v461
        %v463 = vlaneseq
        %v464 = vshrl.u32 %v463, 7
        %v465 = vsub.s32 1, %v464
        %v466 = vrot.slane %v435, %v465
        %v467 = vlaneseq
        %v468 = vshrl.u32 %v467, 7
        %v469 = vsub.s32 2, %v468
        %v470 = vrot.slane %v435, %v469
        %v471 = vlaneseq
        %v472 = vshrl.u32 %v471, 7
        %v473 = vsub.s32 3, %v472
        %v474 = vrot.slane %v435, %v473
        %v475 = vlaneseq
        %v476 = vshrl.u32 %v475, 7
        %v477 = vsub.s32 4, %v476
        %v478 = vrot.slane %v435, %v477
        %v479 = vlaneseq
        %v480 = vshrl.u32 %v479, 7
        %v481 = vsub.s32 5, %v480
        %v482 = vrot.slane %v435, %v481
        %v483 = vlaneseq
        %v484 = vshrl.u32 %v483, 7
        %v485 = vsub.s32 6, %v484
        %v486 = vrot.slane %v435, %v485
        %v487 = vlaneseq
        %v488 = vshrl.u32 %v487, 7
        %v489 = vsub.s32 7, %v488
        %v490 = vrot.slane %v435, %v489
        %v491 = vlaneseq
        %v492 = vshrl.u32 %v491, 7
        %v493 = vsub.s32 0, %v492
        %v494 = vrot.slane %v436, %v493
        %v495 = vlaneseq
        %v496 = vshrl.u32 %v495, 7
        %v497 = vsub.s32 1, %v496
        %v498 = vrot.slane %v436, %v497
        %v499 = vlaneseq
        %v500 = vshrl.u32 %v499, 7
        %v501 = vsub.s32 2, %v500
        %v502 = vrot.slane %v436, %v501
        %v503 = vlaneseq
        %v504 = vshrl.u32 %v503, 7
        %v505 = vsub.s32 3, %v504
        %v506 = vrot.slane %v436, %v505
        %v507 = vlaneseq
        %v508 = vshrl.u32 %v507, 7
        %v509 = vsub.s32 4, %v508
        %v510 = vrot.slane %v436, %v509
        %v511 = vlaneseq
        %v512 = vshrl.u32 %v511, 7
        %v513 = vsub.s32 5, %v512
        %v514 = vrot.slane %v436, %v513
        %v515 = vlaneseq
        %v516 = vshrl.u32 %v515, 7
        %v517 = vsub.s32 6, %v516
        %v518 = vrot.slane %v436, %v517
        %v519 = vlaneseq
        %v520 = vshrl.u32 %v519, 7
        %v521 = vsub.s32 7, %v520
        %v522 = vrot.slane %v436, %v521
        %v523 = vlaneseq
        %v524 = vshrl.u32 %v523, 7
        %v525 = vsub.s32 0, %v524
        %v526 = vrot.slane %v437, %v525
        %v527 = vlaneseq
        %v528 = vshrl.u32 %v527, 7
        %v529 = vsub.s32 1, %v528
        %v530 = vrot.slane %v437, %v529
        %v531 = vlaneseq
        %v532 = vshrl.u32 %v531, 7
        %v533 = vsub.s32 2, %v532
        %v534 = vrot.slane %v437, %v533
        %v535 = vlaneseq
        %v536 = vshrl.u32 %v535, 7
        %v537 = vsub.s32 3, %v536
        %v538 = vrot.slane %v437, %v537
        %v539 = vlaneseq
        %v540 = vshrl.u32 %v539, 7
        %v541 = vsub.s32 4, %v540
        %v542 = vrot.slane %v437, %v541
        %v543 = vlaneseq
        %v544 = vshrl.u32 %v543, 7
        %v545 = vsub.s32 5, %v544
        %v546 = vrot.slane %v437, %v545
        %v547 = vlaneseq
        %v548 = vshrl.u32 %v547, 7
        %v549 = vsub.s32 6, %v548
        %v550 = vrot.slane %v437, %v549
        %v551 = vlaneseq
        %v552 = vshrl.u32 %v551, 7
        %v553 = vsub.s32 7, %v552
        %v554 = vrot.slane %v437, %v553
        %v555 = vlaneseq
        %v556 = vshrl.u32 %v555, 7
        %v557 = vsub.s32 0, %v556
        %v558 = vrot.slane %v438, %v557
        %v559 = vlaneseq
        %v560 = vshrl.u32 %v559, 7
        %v561 = vsub.s32 1, %v560
        %v562 = vrot.slane %v438, %v561
        %v563 = vlaneseq
        %v564 = vshrl.u32 %v563, 7
        %v565 = vsub.s32 2, %v564
        %v566 = vrot.slane %v438, %v565
        %v567 = vlaneseq
        %v568 = vshrl.u32 %v567, 7
        %v569 = vsub.s32 3, %v568
        %v570 = vrot.slane %v438, %v569
        %v571 = vlaneseq
        %v572 = vshrl.u32 %v571, 7
        %v573 = vsub.s32 4, %v572
        %v574 = vrot.slane %v438, %v573
        %v575 = vlaneseq
        %v576 = vshrl.u32 %v575, 7
        %v577 = vsub.s32 5, %v576
        %v578 = vrot.slane %v438, %v577
        %v579 = vlaneseq
        %v580 = vshrl.u32 %v579, 7
        %v581 = vsub.s32 6, %v580
        %v582 = vrot.slane %v438, %v581
        %v583 = vlaneseq
        %v584 = vshrl.u32 %v583, 7
        %v585 = vsub.s32 7, %v584
        %v586 = vrot.slane %v438, %v585
        %v587 = vlaneseq
        %v588 = vshrl.u32 %v587, 7
        %v589 = vsub.s32 0, %v588
        %v590 = vrot.slane %v439, %v589
        %v591 = vlaneseq
        %v592 = vshrl.u32 %v591, 7
        %v593 = vsub.s32 1, %v592
        %v594 = vrot.slane %v439, %v593
        %v595 = vlaneseq
        %v596 = vshrl.u32 %v595, 7
        %v597 = vsub.s32 2, %v596
        %v598 = vrot.slane %v439, %v597
        %v599 = vlaneseq
        %v600 = vshrl.u32 %v599, 7
        %v601 = vsub.s32 3, %v600
        %v602 = vrot.slane %v439, %v601
        %v603 = vlaneseq
        %v604 = vshrl.u32 %v603, 7
        %v605 = vsub.s32 4, %v604
        %v606 = vrot.slane %v439, %v605
        %v607 = vlaneseq
        %v608 = vshrl.u32 %v607, 7
        %v609 = vsub.s32 5, %v608
        %v610 = vrot.slane %v439, %v609
        %v611 = vlaneseq
        %v612 = vshrl.u32 %v611, 7
        %v613 = vsub.s32 6, %v612
        %v614 = vrot.slane %v439, %v613
        %v615 = vlaneseq
        %v616 = vshrl.u32 %v615, 7
        %v617 = vsub.s32 7, %v616
        %v618 = vrot.slane %v439, %v617
        %v619 = vlaneseq
        %v620 = vshrl.u32 %v619, 7
        %v621 = vsub.s32 0, %v620
        %v622 = vrot.slane %v440, %v621
        %v623 = vlaneseq
        %v624 = vshrl.u32 %v623, 7
        %v625 = vsub.s32 1, %v624
        %v626 = vrot.slane %v440, %v625
        %v627 = vlaneseq
        %v628 = vshrl.u32 %v627, 7
        %v629 = vsub.s32 2, %v628
        %v630 = vrot.slane %v440, %v629
        %v631 = vlaneseq
        %v632 = vshrl.u32 %v631, 7
        %v633 = vsub.s32 3, %v632
        %v634 = vrot.slane %v440, %v633
        %v635 = vlaneseq
        %v636 = vshrl.u32 %v635, 7
        %v637 = vsub.s32 4, %v636
        %v638 = vrot.slane %v440, %v637
        %v639 = vlaneseq
        %v640 = vshrl.u32 %v639, 7
        %v641 = vsub.s32 5, %v640
        %v642 = vrot.slane %v440, %v641
        %v643 = vlaneseq
        %v644 = vshrl.u32 %v643, 7
        %v645 = vsub.s32 6, %v644
        %v646 = vrot.slane %v440, %v645
        %v647 = vlaneseq
        %v648 = vshrl.u32 %v647, 7
        %v649 = vsub.s32 7, %v648
        %v650 = vrot.slane %v440, %v649
        %v651 = vlaneseq
        %v652 = vshrl.u32 %v651, 7
        %v653 = vsub.s32 0, %v652
        %v654 = vrot.slane %v441, %v653
        %v655 = vlaneseq
        %v656 = vshrl.u32 %v655, 7
        %v657 = vsub.s32 1, %v656
        %v658 = vrot.slane %v441, %v657
        %v659 = vlaneseq
        %v660 = vshrl.u32 %v659, 7
        %v661 = vsub.s32 2, %v660
        %v662 = vrot.slane %v441, %v661
        %v663 = vlaneseq
        %v664 = vshrl.u32 %v663, 7
        %v665 = vsub.s32 3, %v664
        %v666 = vrot.slane %v441, %v665
        %v667 = vlaneseq
        %v668 = vshrl.u32 %v667, 7
        %v669 = vsub.s32 4, %v668
        %v670 = vrot.slane %v441, %v669
        %v671 = vlaneseq
        %v672 = vshrl.u32 %v671, 7
        %v673 = vsub.s32 5, %v672
        %v674 = vrot.slane %v441, %v673
        %v675 = vlaneseq
        %v676 = vshrl.u32 %v675, 7
        %v677 = vsub.s32 6, %v676
        %v678 = vrot.slane %v441, %v677
        %v679 = vlaneseq
        %v680 = vshrl.u32 %v679, 7
        %v681 = vsub.s32 7, %v680
        %v682 = vrot.slane %v441, %v681
        %v683 = vlaneseq
        %v684 = vshrl.u32 %v683, 7
        %v685 = vsub.s32 0, %v684
        %v686 = vrot.slane %v442, %v685
        %v687 = vlaneseq
        %v688 = vshrl.u32 %v687, 7
        %v689 = vsub.s32 1, %v688
        %v690 = vrot.slane %v442, %v689
        %v691 = vlaneseq
        %v692 = vshrl.u32 %v691, 7
        %v693 = vsub.s32 2, %v692
        %v694 = vrot.slane %v442, %v693
        %v695 = vlaneseq
        %v696 = vshrl.u32 %v695, 7
        %v697 = vsub.s32 3, %v696
        %v698 = vrot.slane %v442, %v697
        %v699 = vlaneseq
        %v700 = vshrl.u32 %v699, 7
        %v701 = vsub.s32 4, %v700
        %v702 = vrot.slane %v442, %v701
        %v703 = vlaneseq
        %v704 = vshrl.u32 %v703, 7
        %v705 = vsub.s32 5, %v704
        %v706 = vrot.slane %v442, %v705
        %v707 = vlaneseq
        %v708 = vshrl.u32 %v707, 7
        %v709 = vsub.s32 6, %v708
        %v710 = vrot.slane %v442, %v709
        %v711 = vlaneseq
        %v712 = vshrl.u32 %v711, 7
        %v713 = vsub.s32 7, %v712
        %v714 = vrot.slane %v442, %v713
        %v715 = vlaneseq
        %v716 = vshrl.u32 %v715, 7
        %v717 = vsub.s32 0, %v716
        %v718 = vrot.slane %v443, %v717
        %v719 = vlaneseq
        %v720 = vshrl.u32 %v719, 7
        %v721 = vsub.s32 1, %v720
        %v722 = vrot.slane %v443, %v721
        %v723 = vlaneseq
        %v724 = vshrl.u32 %v723, 7
        %v725 = vsub.s32 2, %v724
        %v726 = vrot.slane %v443, %v725
        %v727 = vlaneseq
        %v728 = vshrl.u32 %v727, 7
        %v729 = vsub.s32 3, %v728
        %v730 = vrot.slane %v443, %v729
        %v731 = vlaneseq
        %v732 = vshrl.u32 %v731, 7
        %v733 = vsub.s32 4, %v732
        %v734 = vrot.slane %v443, %v733
        %v735 = vlaneseq
        %v736 = vshrl.u32 %v735, 7
        %v737 = vsub.s32 5, %v736
        %v738 = vrot.slane %v443, %v737
        %v739 = vlaneseq
        %v740 = vshrl.u32 %v739, 7
        %v741 = vsub.s32 6, %v740
        %v742 = vrot.slane %v443, %v741
        %v743 = vlaneseq
        %v744 = vshrl.u32 %v743, 7
        %v745 = vsub.s32 7, %v744
        %v746 = vrot.slane %v443, %v745
        %v747 = vlaneseq
        %v748 = vshrl.u32 %v747, 7
        %v749 = vsub.s32 0, %v748
        %v750 = vrot.slane %v444, %v749
        %v751 = vlaneseq
        %v752 = vshrl.u32 %v751, 7
        %v753 = vsub.s32 1, %v752
        %v754 = vrot.slane %v444, %v753
        %v755 = vlaneseq
        %v756 = vshrl.u32 %v755, 7
        %v757 = vsub.s32 2, %v756
        %v758 = vrot.slane %v444, %v757
        %v759 = vlaneseq
        %v760 = vshrl.u32 %v759, 7
        %v761 = vsub.s32 3, %v760
        %v762 = vrot.slane %v444, %v761
        %v763 = vlaneseq
        %v764 = vshrl.u32 %v763, 7
        %v765 = vsub.s32 4, %v764
        %v766 = vrot.slane %v444, %v765
        %v767 = vlaneseq
        %v768 = vshrl.u32 %v767, 7
        %v769 = vsub.s32 5, %v768
        %v770 = vrot.slane %v444, %v769
        %v771 = vlaneseq
        %v772 = vshrl.u32 %v771, 7
        %v773 = vsub.s32 6, %v772
        %v774 = vrot.slane %v444, %v773
        %v775 = vlaneseq
        %v776 = vshrl.u32 %v775, 7
        %v777 = vsub.s32 7, %v776
        %v778 = vrot.slane %v444, %v777
        %v779 = vlaneseq
        %v780 = vshrl.u32 %v779, 7
        %v781 = vsub.s32 0, %v780
        %v782 = vrot.slane %v445, %v781
        %v783 = vlaneseq
        %v784 = vshrl.u32 %v783, 7
        %v785 = vsub.s32 1, %v784
        %v786 = vrot.slane %v445, %v785
        %v787 = vlaneseq
        %v788 = vshrl.u32 %v787, 7
        %v789 = vsub.s32 2, %v788
        %v790 = vrot.slane %v445, %v789
        %v791 = vlaneseq
        %v792 = vshrl.u32 %v791, 7
        %v793 = vsub.s32 3, %v792
        %v794 = vrot.slane %v445, %v793
        %v795 = vlaneseq
        %v796 = vshrl.u32 %v795, 7
        %v797 = vsub.s32 4, %v796
        %v798 = vrot.slane %v445, %v797
        %v799 = vlaneseq
        %v800 = vshrl.u32 %v799, 7
        %v801 = vsub.s32 5, %v800
        %v802 = vrot.slane %v445, %v801
        %v803 = vlaneseq
        %v804 = vshrl.u32 %v803, 7
        %v805 = vsub.s32 6, %v804
        %v806 = vrot.slane %v445, %v805
        %v807 = vlaneseq
        %v808 = vshrl.u32 %v807, 7
        %v809 = vsub.s32 7, %v808
        %v810 = vrot.slane %v445, %v809
        %v811 = vlaneseq
        %v812 = vshrl.u32 %v811, 7
        %v813 = vsub.s32 0, %v812
        %v814 = vrot.slane %v446, %v813
        %v815 = vlaneseq
        %v816 = vshrl.u32 %v815, 7
        %v817 = vsub.s32 1, %v816
        %v818 = vrot.slane %v446, %v817
        %v819 = vlaneseq
        %v820 = vshrl.u32 %v819, 7
        %v821 = vsub.s32 2, %v820
        %v822 = vrot.slane %v446, %v821
        %v823 = vlaneseq
        %v824 = vshrl.u32 %v823, 7
        %v825 = vsub.s32 3, %v824
        %v826 = vrot.slane %v446, %v825
        %v827 = vlaneseq
        %v828 = vshrl.u32 %v827, 7
        %v829 = vsub.s32 4, %v828
        %v830 = vrot.slane %v446, %v829
        %v831 = vlaneseq
        %v832 = vshrl.u32 %v831, 7
        %v833 = vsub.s32 5, %v832
        %v834 = vrot.slane %v446, %v833
        %v835 = vlaneseq
        %v836 = vshrl.u32 %v835, 7
        %v837 = vsub.s32 6, %v836
        %v838 = vrot.slane %v446, %v837
        %v839 = vlaneseq
        %v840 = vshrl.u32 %v839, 7
        %v841 = vsub.s32 7, %v840
        %v842 = vrot.slane %v446, %v841
        %v1131 = vunpack.c.l.b16 %v243
        %v1132 = vunpack.c.h.b16 %v243
        %v1133 = vunpack.c.l.b16 %v244
        %v1134 = vunpack.c.h.b16 %v244
        %v1135 = vunpack.c.l.b16 %v245
        %v1136 = vunpack.c.h.b16 %v245
        %v1137 = vunpack.c.l.b16 %v246
        %v1138 = vunpack.c.h.b16 %v246
        %v1139 = vunpack.c.l.b16 %v247
        %v1140 = vunpack.c.h.b16 %v247
        %v1141 = vunpack.c.l.b16 %v248
        %v1142 = vunpack.c.h.b16 %v248
        %v1143 = vunpack.c.l.b16 %v249
        %v1144 = vunpack.c.h.b16 %v249
        %v1145 = vunpack.c.l.b16 %v250
        %v1146 = vunpack.c.h.b16 %v250
        %v1147 = vunpack.c.l.b16 %v251
        %v1148 = vunpack.c.h.b16 %v251
        %v1149 = vunpack.c.l.b16 %v252
        %v1150 = vunpack.c.h.b16 %v252
        %v1151 = vunpack.c.l.b16 %v253
        %v1152 = vunpack.c.h.b16 %v253
        %v1153 = vunpack.c.l.b16 %v254
        %v1154 = vunpack.c.h.b16 %v254
        %v1155 = vunpack.c.l.b16 %v255
        %v1156 = vunpack.c.h.b16 %v255
        %v1157 = vunpack.c.l.b16 %v256
        %v1158 = vunpack.c.h.b16 %v256
        %v1159 = vunpack.c.l.b16 %v257
        %v1160 = vunpack.c.h.b16 %v257
        %v1161 = vunpack.c.l.b16 %v258
        %v1162 = vunpack.c.h.b16 %v258
        %v1163 = vunpack.c.l.b16 %v259
        %v1164 = vunpack.c.h.b16 %v259
        %v1165 = vunpack.c.l.b16 %v260
        %v1166 = vunpack.c.h.b16 %v260
        %v1167 = vunpack.c.l.b16 %v261
        %v1168 = vunpack.c.h.b16 %v261
        %v1169 = vunpack.c.l.b16 %v262
        %v1170 = vunpack.c.h.b16 %v262
        %v1171 = vunpack.c.l.b16 %v263
        %v1172 = vunpack.c.h.b16 %v263
        %v1173 = vunpack.c.l.b16 %v264
        %v1174 = vunpack.c.h.b16 %v264
        %v1175 = vunpack.c.l.b16 %v265
        %v1176 = vunpack.c.h.b16 %v265
        %v1177 = vunpack.c.l.b16 %v266
        %v1178 = vunpack.c.h.b16 %v266
        %v1179 = vunpack.c.l.b16 %v267
        %v1180 = vunpack.c.h.b16 %v267
        %v1181 = vunpack.c.l.b16 %v268
        %v1182 = vunpack.c.h.b16 %v268
        %v1183 = vunpack.c.l.b16 %v269
        %v1184 = vunpack.c.h.b16 %v269
        %v1185 = vunpack.c.l.b16 %v270
        %v1186 = vunpack.c.h.b16 %v270
        %v1187 = vunpack.c.l.b16 %v271
        %v1188 = vunpack.c.h.b16 %v271
        %v1189 = vunpack.c.l.b16 %v272
        %v1190 = vunpack.c.h.b16 %v272
        %v1191 = vunpack.c.l.b16 %v273
        %v1192 = vunpack.c.h.b16 %v273
        %v1193 = vunpack.c.l.b16 %v274
        %v1194 = vunpack.c.h.b16 %v274
        %v1195 = vunpack.c.l.b16 %v275
        %v1196 = vunpack.c.h.b16 %v275
        %v1197 = vunpack.c.l.b16 %v276
        %v1198 = vunpack.c.h.b16 %v276
        %v1199 = vunpack.c.l.b16 %v277
        %v1200 = vunpack.c.h.b16 %v277
        %v1201 = vunpack.c.l.b16 %v278
        %v1202 = vunpack.c.h.b16 %v278
        %v1203 = vunpack.c.l.b16 %v279
        %v1204 = vunpack.c.h.b16 %v279
        %v1205 = vunpack.c.l.b16 %v280
        %v1206 = vunpack.c.h.b16 %v280
        %v1207 = vunpack.c.l.b16 %v281
        %v1208 = vunpack.c.h.b16 %v281
        %v1209 = vunpack.c.l.b16 %v282
        %v1210 = vunpack.c.h.b16 %v282
        %v1211 = vunpack.c.l.b16 %v283
        %v1212 = vunpack.c.h.b16 %v283
        %v1213 = vunpack.c.l.b16 %v284
        %v1214 = vunpack.c.h.b16 %v284
        %v1215 = vunpack.c.l.b16 %v285
        %v1216 = vunpack.c.h.b16 %v285
        %v1217 = vunpack.c.l.b16 %v286
        %v1218 = vunpack.c.h.b16 %v286
        %v1219 = vunpack.c.l.b16 %v287
        %v1220 = vunpack.c.h.b16 %v287
        %v1221 = vunpack.c.l.b16 %v288
        %v1222 = vunpack.c.h.b16 %v288
        %v1223 = vunpack.c.l.b16 %v289
        %v1224 = vunpack.c.h.b16 %v289
        %v1225 = vunpack.c.l.b16 %v290
        %v1226 = vunpack.c.h.b16 %v290
        %v1227 = vunpack.c.l.b16 %v291
        %v1228 = vunpack.c.h.b16 %v291
        %v1229 = vunpack.c.l.b16 %v292
        %v1230 = vunpack.c.h.b16 %v292
        %v1231 = vunpack.c.l.b16 %v293
        %v1232 = vunpack.c.h.b16 %v293
        %v1233 = vunpack.c.l.b16 %v294
        %v1234 = vunpack.c.h.b16 %v294
        %v1235 = vunpack.c.l.b16 %v295
        %v1236 = vunpack.c.h.b16 %v295
        %v1237 = vunpack.c.l.b16 %v296
        %v1238 = vunpack.c.h.b16 %v296
        %v1239 = vunpack.c.l.b16 %v297
        %v1240 = vunpack.c.h.b16 %v297
        %v1241 = vunpack.c.l.b16 %v298
        %v1242 = vunpack.c.h.b16 %v298
        %v1243 = vunpack.c.l.b16 %v299
        %v1244 = vunpack.c.h.b16 %v299
        %v1245 = vunpack.c.l.b16 %v300
        %v1246 = vunpack.c.h.b16 %v300
        %v1247 = vunpack.c.l.b16 %v301
        %v1248 = vunpack.c.h.b16 %v301
        %v1249 = vunpack.c.l.b16 %v302
        %v1250 = vunpack.c.h.b16 %v302
        %v1251 = vunpack.c.l.b16 %v303
        %v1252 = vunpack.c.h.b16 %v303
        %v1253 = vunpack.c.l.b16 %v304
        %v1254 = vunpack.c.h.b16 %v304
        %v1255 = vunpack.c.l.b16 %v305
        %v1256 = vunpack.c.h.b16 %v305
        %v1257 = vunpack.c.l.b16 %v306
        %v1258 = vunpack.c.h.b16 %v306
        %v1259 = vunpack.c.l.b16 %v307
        %v1260 = vunpack.c.h.b16 %v307
        %v1261 = vunpack.c.l.b16 %v308
        %v1262 = vunpack.c.h.b16 %v308
        %v1263 = vunpack.c.l.b16 %v309
        %v1264 = vunpack.c.h.b16 %v309
        %v1265 = vunpack.c.l.b16 %v310
        %v1266 = vunpack.c.h.b16 %v310
        %v1267 = vunpack.c.l.b16 %v311
        %v1268 = vunpack.c.h.b16 %v311
        %v1269 = vunpack.c.l.b16 %v312
        %v1270 = vunpack.c.h.b16 %v312
        %v1271 = vunpack.c.l.b16 %v313
        %v1272 = vunpack.c.h.b16 %v313
        %v1273 = vunpack.c.l.b16 %v314
        %v1274 = vunpack.c.h.b16 %v314
        %v1275 = vunpack.c.l.b16 %v315
        %v1276 = vunpack.c.h.b16 %v315
        %v1277 = vunpack.c.l.b16 %v316
        %v1278 = vunpack.c.h.b16 %v316
        %v1279 = vunpack.c.l.b16 %v317
        %v1280 = vunpack.c.h.b16 %v317
        %v1281 = vunpack.c.l.b16 %v318
        %v1282 = vunpack.c.h.b16 %v318
        %v1283 = vunpack.c.l.b16 %v319
        %v1284 = vunpack.c.h.b16 %v319
        %v1285 = vunpack.c.l.b16 %v320
        %v1286 = vunpack.c.h.b16 %v320
        %v1287 = vunpack.c.l.b16 %v321
        %v1288 = vunpack.c.h.b16 %v321
        %v1289 = vunpack.c.l.b16 %v322
        %v1290 = vunpack.c.h.b16 %v322
        %v1291 = vunpack.c.l.b16 %v323
        %v1292 = vunpack.c.h.b16 %v323
        %v1293 = vunpack.c.l.b16 %v324
        %v1294 = vunpack.c.h.b16 %v324
        %v1295 = vunpack.c.l.b16 %v325
        %v1296 = vunpack.c.h.b16 %v325
        %v1297 = vunpack.c.l.b16 %v326
        %v1298 = vunpack.c.h.b16 %v326
        %v1299 = vunpack.c.l.b16 %v327
        %v1300 = vunpack.c.h.b16 %v327
        %v1301 = vunpack.c.l.b16 %v328
        %v1302 = vunpack.c.h.b16 %v328
        %v1303 = vunpack.c.l.b16 %v329
        %v1304 = vunpack.c.h.b16 %v329
        %v1305 = vunpack.c.l.b16 %v330
        %v1306 = vunpack.c.h.b16 %v330
        %v1307 = vunpack.c.l.b16 %v331
        %v1308 = vunpack.c.h.b16 %v331
        %v1309 = vunpack.c.l.b16 %v332
        %v1310 = vunpack.c.h.b16 %v332
        %v1311 = vunpack.c.l.b16 %v333
        %v1312 = vunpack.c.h.b16 %v333
        %v1313 = vunpack.c.l.b16 %v334
        %v1314 = vunpack.c.h.b16 %v334
        %v1315 = vunpack.c.l.b16 %v335
        %v1316 = vunpack.c.h.b16 %v335
        %v1317 = vunpack.c.l.b16 %v336
        %v1318 = vunpack.c.h.b16 %v336
        %v1319 = vunpack.c.l.b16 %v337
        %v1320 = vunpack.c.h.b16 %v337
        %v1321 = vunpack.c.l.b16 %v338
        %v1322 = vunpack.c.h.b16 %v338
        %v1323 = vunpack.c.l.b16 %v339
        %v1324 = vunpack.c.h.b16 %v339
        %v1325 = vunpack.c.l.b16 %v340
        %v1326 = vunpack.c.h.b16 %v340
        %v1327 = vunpack.c.l.b16 %v341
        %v1328 = vunpack.c.h.b16 %v341
        %v1329 = vunpack.c.l.b16 %v342
        %v1330 = vunpack.c.h.b16 %v342
        %v1331 = vunpack.c.l.b16 %v343
        %v1332 = vunpack.c.h.b16 %v343
        %v1333 = vunpack.c.l.b16 %v344
        %v1334 = vunpack.c.h.b16 %v344
        %v1335 = vunpack.c.l.b16 %v345
        %v1336 = vunpack.c.h.b16 %v345
        %v1337 = vunpack.c.l.b16 %v346
        %v1338 = vunpack.c.h.b16 %v346
        %v1339 = vunpack.c.l.b16 %v347
        %v1340 = vunpack.c.h.b16 %v347
        %v1341 = vunpack.c.l.b16 %v348
        %v1342 = vunpack.c.h.b16 %v348
        %v1343 = vunpack.c.l.b16 %v349
        %v1344 = vunpack.c.h.b16 %v349
        %v1345 = vunpack.c.l.b16 %v350
        %v1346 = vunpack.c.h.b16 %v350
        %v1347 = vunpack.c.l.b16 %v351
        %v1348 = vunpack.c.h.b16 %v351
        %v1349 = vunpack.c.l.b16 %v352
        %v1350 = vunpack.c.h.b16 %v352
        %v1351 = vunpack.c.l.b16 %v353
        %v1352 = vunpack.c.h.b16 %v353
        %v1353 = vunpack.c.l.b16 %v354
        %v1354 = vunpack.c.h.b16 %v354
        %v1355 = vunpack.c.l.b16 %v355
        %v1356 = vunpack.c.h.b16 %v355
        %v1357 = vunpack.c.l.b16 %v356
        %v1358 = vunpack.c.h.b16 %v356
        %v1359 = vunpack.c.l.b16 %v357
        %v1360 = vunpack.c.h.b16 %v357
        %v1361 = vunpack.c.l.b16 %v358
        %v1362 = vunpack.c.h.b16 %v358
        %v1363 = vunpack.c.l.b16 %v359
        %v1364 = vunpack.c.h.b16 %v359
        %v1365 = vunpack.c.l.b16 %v360
        %v1366 = vunpack.c.h.b16 %v360
        %v1367 = vunpack.c.l.b16 %v361
        %v1368 = vunpack.c.h.b16 %v361
        %v1369 = vunpack.c.l.b16 %v362
        %v1370 = vunpack.c.h.b16 %v362
        %v1371 = vunpack.c.l.b16 %v363
        %v1372 = vunpack.c.h.b16 %v363
        %v1373 = vunpack.c.l.b16 %v364
        %v1374 = vunpack.c.h.b16 %v364
        %v1375 = vunpack.c.l.b16 %v365
        %v1376 = vunpack.c.h.b16 %v365
        %v1377 = vunpack.c.l.b16 %v366
        %v1378 = vunpack.c.h.b16 %v366
        %v1379 = vunpack.c.l.b16 %v367
        %v1380 = vunpack.c.h.b16 %v367
        %v1381 = vunpack.c.l.b16 %v368
        %v1382 = vunpack.c.h.b16 %v368
        %v1383 = vunpack.c.l.b16 %v369
        %v1384 = vunpack.c.h.b16 %v369
        %v1385 = vunpack.c.l.b16 %v370
        %v1386 = vunpack.c.h.b16 %v370
        %v1387 = vunpack.c.l.b16 %v371
        %v1388 = vunpack.c.h.b16 %v371
        %v1389 = vunpack.c.l.b16 %v372
        %v1390 = vunpack.c.h.b16 %v372
        %v1391 = vunpack.c.l.b16 %v373
        %v1392 = vunpack.c.h.b16 %v373
        %v1393 = vunpack.c.l.b16 %v374
        %v1394 = vunpack.c.h.b16 %v374
        %v1395 = vunpack.c.l.b16 %v375
        %v1396 = vunpack.c.h.b16 %v375
        %v1397 = vunpack.c.l.b16 %v376
        %v1398 = vunpack.c.h.b16 %v376
        %v1399 = vunpack.c.l.b16 %v377
        %v1400 = vunpack.c.h.b16 %v377
        %v1401 = vunpack.c.l.b16 %v378
        %v1402 = vunpack.c.h.b16 %v378
        %v1403 = vunpack.c.l.b16 %v379
        %v1404 = vunpack.c.h.b16 %v379
        %v1405 = vunpack.c.l.b16 %v380
        %v1406 = vunpack.c.h.b16 %v380
        %v1407 = vunpack.c.l.b16 %v381
        %v1408 = vunpack.c.h.b16 %v381
        %v1409 = vunpack.c.l.b16 %v382
        %v1410 = vunpack.c.h.b16 %v382
        %v1411 = vunpack.c.l.b16 %v383
        %v1412 = vunpack.c.h.b16 %v383
        %v1413 = vunpack.c.l.b16 %v384
        %v1414 = vunpack.c.h.b16 %v384
        %v1415 = vunpack.c.l.b16 %v385
        %v1416 = vunpack.c.h.b16 %v385
        %v1417 = vunpack.c.l.b16 %v386
        %v1418 = vunpack.c.h.b16 %v386
        %v1419 = vunpack.c.l.b16 %v387
        %v1420 = vunpack.c.h.b16 %v387
        %v1421 = vunpack.c.l.b16 %v388
        %v1422 = vunpack.c.h.b16 %v388
        %v1423 = vunpack.c.l.b16 %v389
        %v1424 = vunpack.c.h.b16 %v389
        %v1425 = vunpack.c.l.b16 %v390
        %v1426 = vunpack.c.h.b16 %v390
        %v1427 = vunpack.c.l.b16 %v391
        %v1428 = vunpack.c.h.b16 %v391
        %v1429 = vunpack.c.l.b16 %v392
        %v1430 = vunpack.c.h.b16 %v392
        %v1431 = vunpack.c.l.b16 %v393
        %v1432 = vunpack.c.h.b16 %v393
        %v1433 = vunpack.c.l.b16 %v394
        %v1434 = vunpack.c.h.b16 %v394
        %v1435 = vunpack.c.l.b16 %v395
        %v1436 = vunpack.c.h.b16 %v395
        %v1437 = vunpack.c.l.b16 %v396
        %v1438 = vunpack.c.h.b16 %v396
        %v1439 = vunpack.c.l.b16 %v397
        %v1440 = vunpack.c.h.b16 %v397
        %v1441 = vunpack.c.l.b16 %v398
        %v1442 = vunpack.c.h.b16 %v398
        %v1443 = vunpack.c.l.b16 %v399
        %v1444 = vunpack.c.h.b16 %v399
        %v1445 = vunpack.c.l.b16 %v400
        %v1446 = vunpack.c.h.b16 %v400
        %v1447 = vunpack.c.l.b16 %v401
        %v1448 = vunpack.c.h.b16 %v401
        %v1449 = vunpack.c.l.b16 %v402
        %v1450 = vunpack.c.h.b16 %v402
        %v1451 = vunpack.c.l.b16 %v403
        %v1452 = vunpack.c.h.b16 %v403
        %v1453 = vunpack.c.l.b16 %v404
        %v1454 = vunpack.c.h.b16 %v404
        %v1455 = vunpack.c.l.b16 %v405
        %v1456 = vunpack.c.h.b16 %v405
        %v1457 = vunpack.c.l.b16 %v406
        %v1458 = vunpack.c.h.b16 %v406
        %v1459 = vunpack.c.l.b16 %v407
        %v1460 = vunpack.c.h.b16 %v407
        %v1461 = vunpack.c.l.b16 %v408
        %v1462 = vunpack.c.h.b16 %v408
        %v1463 = vunpack.c.l.b16 %v409
        %v1464 = vunpack.c.h.b16 %v409
        %v1465 = vunpack.c.l.b16 %v410
        %v1466 = vunpack.c.h.b16 %v410
        %v1467 = vunpack.c.l.b16 %v411
        %v1468 = vunpack.c.h.b16 %v411
        %v1469 = vunpack.c.l.b16 %v412
        %v1470 = vunpack.c.h.b16 %v412
        %v1471 = vunpack.c.l.b16 %v413
        %v1472 = vunpack.c.h.b16 %v413
        %v1473 = vunpack.c.l.b16 %v414
        %v1474 = vunpack.c.h.b16 %v414
        %v1475 = vunpack.c.l.b16 %v415
        %v1476 = vunpack.c.h.b16 %v415
        %v1477 = vunpack.c.l.b16 %v416
        %v1478 = vunpack.c.h.b16 %v416
        %v1479 = vunpack.c.l.b16 %v417
        %v1480 = vunpack.c.h.b16 %v417
        %v1481 = vunpack.c.l.b16 %v418
        %v1482 = vunpack.c.h.b16 %v418
        %v1483 = vunpack.c.l.b16 %v419
        %v1484 = vunpack.c.h.b16 %v419
        %v1485 = vunpack.c.l.b16 %v420
        %v1486 = vunpack.c.h.b16 %v420
        %v1487 = vunpack.c.l.b16 %v421
        %v1488 = vunpack.c.h.b16 %v421
        %v1489 = vunpack.c.l.b16 %v422
        %v1490 = vunpack.c.h.b16 %v422
        %v1491 = vunpack.c.l.b16 %v423
        %v1492 = vunpack.c.h.b16 %v423
        %v1493 = vunpack.c.l.b16 %v424
        %v1494 = vunpack.c.h.b16 %v424
        %v1495 = vunpack.c.l.b16 %v425
        %v1496 = vunpack.c.h.b16 %v425
        %v1497 = vunpack.c.l.b16 %v426
        %v1498 = vunpack.c.h.b16 %v426
        %v1499 = vunpack.c.l.b16 %v427
        %v1500 = vunpack.c.h.b16 %v427
        %v1501 = vunpack.c.l.b16 %v428
        %v1502 = vunpack.c.h.b16 %v428
        %v1503 = vunpack.c.l.b16 %v429
        %v1504 = vunpack.c.h.b16 %v429
        %v1505 = vunpack.c.l.b16 %v430
        %v1506 = vunpack.c.h.b16 %v430
        %v1507 = vunpack.c.l.b16 %v431
        %v1508 = vunpack.c.h.b16 %v431
        %v1509 = vunpack.c.l.b16 %v432
        %v1510 = vunpack.c.h.b16 %v432
        %v1511 = vunpack.c.l.b16 %v433
        %v1512 = vunpack.c.h.b16 %v433
        %v1513 = vunpack.c.l.b16 %v434
        %v1514 = vunpack.c.h.b16 %v434
        %v1515 = vpack.c.b16 %v1227, %v1131
        %v1516 = vpack.c.b16 %v1228, %v1132
        %v1517 = vpack.c.b16 %v1229, %v1133
        %v1518 = vpack.c.b16 %v1230, %v1134
        %v1519 = vpack.c.b16 %v1231, %v1135
        %v1520 = vpack.c.b16 %v1232, %v1136
        %v1521 = vpack.c.b16 %v1233, %v1137
        %v1522 = vpack.c.b16 %v1234, %v1138
        %v1523 = vpack.c.b16 %v1235, %v1139
        %v1524 = vpack.c.b16 %v1236, %v1140
        %v1525 = vpack.c.b16 %v1237, %v1141
        %v1526 = vpack.c.b16 %v1238, %v1142
        %v1527 = vpack.c.b16 %v1239, %v1143
        %v1528 = vpack.c.b16 %v1240, %v1144
        %v1529 = vpack.c.b16 %v1241, %v1145
        %v1530 = vpack.c.b16 %v1242, %v1146
        %v1531 = vpack.c.b16 %v1243, %v1147
        %v1532 = vpack.c.b16 %v1244, %v1148
        %v1533 = vpack.c.b16 %v1245, %v1149
        %v1534 = vpack.c.b16 %v1246, %v1150
        %v1535 = vpack.c.b16 %v1247, %v1151
        %v1536 = vpack.c.b16 %v1248, %v1152
        %v1537 = vpack.c.b16 %v1249, %v1153
        %v1538 = vpack.c.b16 %v1250, %v1154
        %v1539 = vpack.c.b16 %v1251, %v1155
        %v1540 = vpack.c.b16 %v1252, %v1156
        %v1541 = vpack.c.b16 %v1253, %v1157
        %v1542 = vpack.c.b16 %v1254, %v1158
        %v1543 = vpack.c.b16 %v1255, %v1159
        %v1544 = vpack.c.b16 %v1256, %v1160
        %v1545 = vpack.c.b16 %v1257, %v1161
        %v1546 = vpack.c.b16 %v1258, %v1162
        %v1547 = vpack.c.b16 %v1259, %v1163
        %v1548 = vpack.c.b16 %v1260, %v1164
        %v1549 = vpack.c.b16 %v1261, %v1165
        %v1550 = vpack.c.b16 %v1262, %v1166
        %v1551 = vpack.c.b16 %v1263, %v1167
        %v1552 = vpack.c.b16 %v1264, %v1168
        %v1553 = vpack.c.b16 %v1265, %v1169
        %v1554 = vpack.c.b16 %v1266, %v1170
        %v1555 = vpack.c.b16 %v1267, %v1171
        %v1556 = vpack.c.b16 %v1268, %v1172
        %v1557 = vpack.c.b16 %v1269, %v1173
        %v1558 = vpack.c.b16 %v1270, %v1174
        %v1559 = vpack.c.b16 %v1271, %v1175
        %v1560 = vpack.c.b16 %v1272, %v1176
        %v1561 = vpack.c.b16 %v1273, %v1177
        %v1562 = vpack.c.b16 %v1274, %v1178
        %v1563 = vpack.c.b16 %v1275, %v1179
        %v1564 = vpack.c.b16 %v1276, %v1180
        %v1565 = vpack.c.b16 %v1277, %v1181
        %v1566 = vpack.c.b16 %v1278, %v1182
        %v1567 = vpack.c.b16 %v1279, %v1183
        %v1568 = vpack.c.b16 %v1280, %v1184
        %v1569 = vpack.c.b16 %v1281, %v1185
        %v1570 = vpack.c.b16 %v1282, %v1186
        %v1571 = vpack.c.b16 %v1283, %v1187
        %v1572 = vpack.c.b16 %v1284, %v1188
        %v1573 = vpack.c.b16 %v1285, %v1189
        %v1574 = vpack.c.b16 %v1286, %v1190
        %v1575 = vpack.c.b16 %v1287, %v1191
        %v1576 = vpack.c.b16 %v1288, %v1192
        %v1577 = vpack.c.b16 %v1289, %v1193
        %v1578 = vpack.c.b16 %v1290, %v1194
        %v1579 = vpack.c.b16 %v1291, %v1195
        %v1580 = vpack.c.b16 %v1292, %v1196
        %v1581 = vpack.c.b16 %v1293, %v1197
        %v1582 = vpack.c.b16 %v1294, %v1198
        %v1583 = vpack.c.b16 %v1295, %v1199
        %v1584 = vpack.c.b16 %v1296, %v1200
        %v1585 = vpack.c.b16 %v1297, %v1201
        %v1586 = vpack.c.b16 %v1298, %v1202
        %v1587 = vpack.c.b16 %v1299, %v1203
        %v1588 = vpack.c.b16 %v1300, %v1204
        %v1589 = vpack.c.b16 %v1301, %v1205
        %v1590 = vpack.c.b16 %v1302, %v1206
        %v1591 = vpack.c.b16 %v1303, %v1207
        %v1592 = vpack.c.b16 %v1304, %v1208
        %v1593 = vpack.c.b16 %v1305, %v1209
        %v1594 = vpack.c.b16 %v1306, %v1210
        %v1595 = vpack.c.b16 %v1307, %v1211
        %v1596 = vpack.c.b16 %v1308, %v1212
        %v1597 = vpack.c.b16 %v1309, %v1213
        %v1598 = vpack.c.b16 %v1310, %v1214
        %v1599 = vpack.c.b16 %v1311, %v1215
        %v1600 = vpack.c.b16 %v1312, %v1216
        %v1601 = vpack.c.b16 %v1313, %v1217
        %v1602 = vpack.c.b16 %v1314, %v1218
        %v1603 = vpack.c.b16 %v1315, %v1219
        %v1604 = vpack.c.b16 %v1316, %v1220
        %v1605 = vpack.c.b16 %v1317, %v1221
        %v1606 = vpack.c.b16 %v1318, %v1222
        %v1607 = vpack.c.b16 %v1319, %v1223
        %v1608 = vpack.c.b16 %v1320, %v1224
        %v1609 = vpack.c.b16 %v1321, %v1225
        %v1610 = vpack.c.b16 %v1322, %v1226
        %v1611 = vpack.c.b16 %v1419, %v1323
        %v1612 = vpack.c.b16 %v1420, %v1324
        %v1613 = vpack.c.b16 %v1421, %v1325
        %v1614 = vpack.c.b16 %v1422, %v1326
        %v1615 = vpack.c.b16 %v1423, %v1327
        %v1616 = vpack.c.b16 %v1424, %v1328
        %v1617 = vpack.c.b16 %v1425, %v1329
        %v1618 = vpack.c.b16 %v1426, %v1330
        %v1619 = vpack.c.b16 %v1427, %v1331
        %v1620 = vpack.c.b16 %v1428, %v1332
        %v1621 = vpack.c.b16 %v1429, %v1333
        %v1622 = vpack.c.b16 %v1430, %v1334
        %v1623 = vpack.c.b16 %v1431, %v1335
        %v1624 = vpack.c.b16 %v1432, %v1336
        %v1625 = vpack.c.b16 %v1433, %v1337
        %v1626 = vpack.c.b16 %v1434, %v1338
        %v1627 = vpack.c.b16 %v1435, %v1339
        %v1628 = vpack.c.b16 %v1436, %v1340
        %v1629 = vpack.c.b16 %v1437, %v1341
        %v1630 = vpack.c.b16 %v1438, %v1342
        %v1631 = vpack.c.b16 %v1439, %v1343
        %v1632 = vpack.c.b16 %v1440, %v1344
        %v1633 = vpack.c.b16 %v1441, %v1345
        %v1634 = vpack.c.b16 %v1442, %v1346
        %v1635 = vpack.c.b16 %v1443, %v1347
        %v1636 = vpack.c.b16 %v1444, %v1348
        %v1637 = vpack.c.b16 %v1445, %v1349
        %v1638 = vpack.c.b16 %v1446, %v1350
        %v1639 = vpack.c.b16 %v1447, %v1351
        %v1640 = vpack.c.b16 %v1448, %v1352
        %v1641 = vpack.c.b16 %v1449, %v1353
        %v1642 = vpack.c.b16 %v1450, %v1354
        %v1643 = vpack.c.b16 %v1451, %v1355
        %v1644 = vpack.c.b16 %v1452, %v1356
        %v1645 = vpack.c.b16 %v1453, %v1357
        %v1646 = vpack.c.b16 %v1454, %v1358
        %v1647 = vpack.c.b16 %v1455, %v1359
        %v1648 = vpack.c.b16 %v1456, %v1360
        %v1649 = vpack.c.b16 %v1457, %v1361
        %v1650 = vpack.c.b16 %v1458, %v1362
        %v1651 = vpack.c.b16 %v1459, %v1363
        %v1652 = vpack.c.b16 %v1460, %v1364
        %v1653 = vpack.c.b16 %v1461, %v1365
        %v1654 = vpack.c.b16 %v1462, %v1366
        %v1655 = vpack.c.b16 %v1463, %v1367
        %v1656 = vpack.c.b16 %v1464, %v1368
        %v1657 = vpack.c.b16 %v1465, %v1369
        %v1658 = vpack.c.b16 %v1466, %v1370
        %v1659 = vpack.c.b16 %v1467, %v1371
        %v1660 = vpack.c.b16 %v1468, %v1372
        %v1661 = vpack.c.b16 %v1469, %v1373
        %v1662 = vpack.c.b16 %v1470, %v1374
        %v1663 = vpack.c.b16 %v1471, %v1375
        %v1664 = vpack.c.b16 %v1472, %v1376
        %v1665 = vpack.c.b16 %v1473, %v1377
        %v1666 = vpack.c.b16 %v1474, %v1378
        %v1667 = vpack.c.b16 %v1475, %v1379
        %v1668 = vpack.c.b16 %v1476, %v1380
        %v1669 = vpack.c.b16 %v1477, %v1381
        %v1670 = vpack.c.b16 %v1478, %v1382
        %v1671 = vpack.c.b16 %v1479, %v1383
        %v1672 = vpack.c.b16 %v1480, %v1384
        %v1673 = vpack.c.b16 %v1481, %v1385
        %v1674 = vpack.c.b16 %v1482, %v1386
        %v1675 = vpack.c.b16 %v1483, %v1387
        %v1676 = vpack.c.b16 %v1484, %v1388
        %v1677 = vpack.c.b16 %v1485, %v1389
        %v1678 = vpack.c.b16 %v1486, %v1390
        %v1679 = vpack.c.b16 %v1487, %v1391
        %v1680 = vpack.c.b16 %v1488, %v1392
        %v1681 = vpack.c.b16 %v1489, %v1393
        %v1682 = vpack.c.b16 %v1490, %v1394
        %v1683 = vpack.c.b16 %v1491, %v1395
        %v1684 = vpack.c.b16 %v1492, %v1396
        %v1685 = vpack.c.b16 %v1493, %v1397
        %v1686 = vpack.c.b16 %v1494, %v1398
        %v1687 = vpack.c.b16 %v1495, %v1399
        %v1688 = vpack.c.b16 %v1496, %v1400
        %v1689 = vpack.c.b16 %v1497, %v1401
        %v1690 = vpack.c.b16 %v1498, %v1402
        %v1691 = vpack.c.b16 %v1499, %v1403
        %v1692 = vpack.c.b16 %v1500, %v1404
        %v1693 = vpack.c.b16 %v1501, %v1405
        %v1694 = vpack.c.b16 %v1502, %v1406
        %v1695 = vpack.c.b16 %v1503, %v1407
        %v1696 = vpack.c.b16 %v1504, %v1408
        %v1697 = vpack.c.b16 %v1505, %v1409
        %v1698 = vpack.c.b16 %v1506, %v1410
        %v1699 = vpack.c.b16 %v1507, %v1411
        %v1700 = vpack.c.b16 %v1508, %v1412
        %v1701 = vpack.c.b16 %v1509, %v1413
        %v1702 = vpack.c.b16 %v1510, %v1414
        %v1703 = vpack.c.b16 %v1511, %v1415
        %v1704 = vpack.c.b16 %v1512, %v1416
        %v1705 = vpack.c.b16 %v1513, %v1417
        %v1706 = vpack.c.b16 %v1514, %v1418
        %vm1899 = vcmask 261120
        %v1901 = vsel %vm1899, %v242, 0
        %1903 = vmatprep.subr.bf16.mxu0 %v1516
        %1904 = vmatpush1.bf16.msra.mxu0 %v1515
        %1905 = vmatprep.subr.bf16.mxu0 %v1612
        %1906 = vmatpush1.bf16.msra.mxu0 %v1611
        %1907 = vmatprep.subr.bf16.mxu0 0
        %1908 = vmatpush1.bf16.msra.mxu0 0
        %1909 = vmatprep.subr.bf16.mxu0 0
        %1910 = vmatpush1.bf16.msra.mxu0 0
        %1911 = vmatprep.subr.bf16.mxu0 0
        %1912 = vmatpush1.bf16.msra.mxu0 0
        %1913 = vmatprep.subr.bf16.mxu0 0
        %1914 = vmatpush1.bf16.msra.mxu0 0
        %1915 = vmatprep.subr.bf16.mxu0 0
        %1916 = vmatpush1.bf16.msra.mxu0 0
        %1917 = vmatprep.subr.bf16.mxu0 0
        %1918 = vmatpush1.bf16.msra.mxu0 0
        %1919 = vmatprep.subr.bf16.mxu0 0
        %1920 = vmatpush1.bf16.msra.mxu0 0
        %1921 = vmatprep.subr.bf16.mxu0 0
        %1922 = vmatpush1.bf16.msra.mxu0 0
        %1923 = vmatprep.subr.bf16.mxu0 0
        %1924 = vmatpush1.bf16.msra.mxu0 0
        %1925 = vmatprep.subr.bf16.mxu0 0
        %1926 = vmatpush1.bf16.msra.mxu0 0
        %1927 = vmatprep.subr.bf16.mxu0 0
        %1928 = vmatpush1.bf16.msra.mxu0 0
        %1929 = vmatprep.subr.bf16.mxu0 0
        %1930 = vmatpush1.bf16.msra.mxu0 0
        %1931 = vmatprep.subr.bf16.mxu0 0
        %1932 = vmatpush1.bf16.msra.mxu0 0
        %1933 = vmatprep.subr.bf16.mxu0 0
        %1934 = vmatpush1.bf16.msra.mxu0 0
        %1935 = vmatprep.mubr.bf16.mxu0 0
        %1936 = vmatmul.mubr.bf16.gmra.mrb[0].mxu0 %v1901
        %v1937 = vpop.f32.mrb[0].mxu0
        %v1938 = vadd.f32 %v462, %v1937
        %v1939 = vpop.f32.mrb[0].mxu0
        %v1940 = vadd.f32 %v466, %v1939
        %v1941 = vpop.f32.mrb[0].mxu0
        %v1942 = vpop.f32.mrb[0].mxu0
        %1943 = vdwg.mxu0
        %1944 = vmatprep.subr.bf16.mxu0 %v1518
        %1945 = vmatpush1.bf16.msra.mxu0 %v1517
        %1946 = vmatprep.subr.bf16.mxu0 %v1614
        %1947 = vmatpush1.bf16.msra.mxu0 %v1613
        %1948 = vmatprep.subr.bf16.mxu0 0
        %1949 = vmatpush1.bf16.msra.mxu0 0
        %1950 = vmatprep.subr.bf16.mxu0 0
        %1951 = vmatpush1.bf16.msra.mxu0 0
        %1952 = vmatprep.subr.bf16.mxu0 0
        %1953 = vmatpush1.bf16.msra.mxu0 0
        %1954 = vmatprep.subr.bf16.mxu0 0
        %1955 = vmatpush1.bf16.msra.mxu0 0
        %1956 = vmatprep.subr.bf16.mxu0 0
        %1957 = vmatpush1.bf16.msra.mxu0 0
        %1958 = vmatprep.subr.bf16.mxu0 0
        %1959 = vmatpush1.bf16.msra.mxu0 0
        %1960 = vmatprep.subr.bf16.mxu0 0
        %1961 = vmatpush1.bf16.msra.mxu0 0
        %1962 = vmatprep.subr.bf16.mxu0 0
        %1963 = vmatpush1.bf16.msra.mxu0 0
        %1964 = vmatprep.subr.bf16.mxu0 0
        %1965 = vmatpush1.bf16.msra.mxu0 0
        %1966 = vmatprep.subr.bf16.mxu0 0
        %1967 = vmatpush1.bf16.msra.mxu0 0
        %1968 = vmatprep.subr.bf16.mxu0 0
        %1969 = vmatpush1.bf16.msra.mxu0 0
        %1970 = vmatprep.subr.bf16.mxu0 0
        %1971 = vmatpush1.bf16.msra.mxu0 0
        %1972 = vmatprep.subr.bf16.mxu0 0
        %1973 = vmatpush1.bf16.msra.mxu0 0
        %1974 = vmatprep.subr.bf16.mxu0 0
        %1975 = vmatpush1.bf16.msra.mxu0 0
        %1976 = vmatprep.mubr.bf16.mxu0 0
        %1977 = vmatmul.mubr.bf16.gmra.mrb[0].mxu0 %v1901
        %v1978 = vpop.f32.mrb[0].mxu0
        %v1979 = vadd.f32 %v470, %v1978
        %v1980 = vpop.f32.mrb[0].mxu0
        %v1981 = vadd.f32 %v474, %v1980
        %v1982 = vpop.f32.mrb[0].mxu0
        %v1983 = vpop.f32.mrb[0].mxu0
        %1984 = vdwg.mxu0
        %1985 = vmatprep.subr.bf16.mxu0 %v1520
        %1986 = vmatpush1.bf16.msra.mxu0 %v1519
        %1987 = vmatprep.subr.bf16.mxu0 %v1616
        %1988 = vmatpush1.bf16.msra.mxu0 %v1615
        %1989 = vmatprep.subr.bf16.mxu0 0
        %1990 = vmatpush1.bf16.msra.mxu0 0
        %1991 = vmatprep.subr.bf16.mxu0 0
        %1992 = vmatpush1.bf16.msra.mxu0 0
        %1993 = vmatprep.subr.bf16.mxu0 0
        %1994 = vmatpush1.bf16.msra.mxu0 0
        %1995 = vmatprep.subr.bf16.mxu0 0
        %1996 = vmatpush1.bf16.msra.mxu0 0
        %1997 = vmatprep.subr.bf16.mxu0 0
        %1998 = vmatpush1.bf16.msra.mxu0 0
        %1999 = vmatprep.subr.bf16.mxu0 0
        %2000 = vmatpush1.bf16.msra.mxu0 0
        %2001 = vmatprep.subr.bf16.mxu0 0
        %2002 = vmatpush1.bf16.msra.mxu0 0
        %2003 = vmatprep.subr.bf16.mxu0 0
        %2004 = vmatpush1.bf16.msra.mxu0 0
        %2005 = vmatprep.subr.bf16.mxu0 0
        %2006 = vmatpush1.bf16.msra.mxu0 0
        %2007 = vmatprep.subr.bf16.mxu0 0
        %2008 = vmatpush1.bf16.msra.mxu0 0
        %2009 = vmatprep.subr.bf16.mxu0 0
        %2010 = vmatpush1.bf16.msra.mxu0 0
        %2011 = vmatprep.subr.bf16.mxu0 0
        %2012 = vmatpush1.bf16.msra.mxu0 0
        %2013 = vmatprep.subr.bf16.mxu0 0
        %2014 = vmatpush1.bf16.msra.mxu0 0
        %2015 = vmatprep.subr.bf16.mxu0 0
        %2016 = vmatpush1.bf16.msra.mxu0 0
        %2017 = vmatprep.mubr.bf16.mxu0 0
        %2018 = vmatmul.mubr.bf16.gmra.mrb[0].mxu0 %v1901
        %v2019 = vpop.f32.mrb[0].mxu0
        %v2020 = vadd.f32 %v478, %v2019
        %v2021 = vpop.f32.mrb[0].mxu0
        %v2022 = vadd.f32 %v482, %v2021
        %v2023 = vpop.f32.mrb[0].mxu0
        %v2024 = vpop.f32.mrb[0].mxu0
        %2025 = vdwg.mxu0
        %2026 = vmatprep.subr.bf16.mxu0 %v1522
        %2027 = vmatpush1.bf16.msra.mxu0 %v1521
        %2028 = vmatprep.subr.bf16.mxu0 %v1618
        %2029 = vmatpush1.bf16.msra.mxu0 %v1617
        %2030 = vmatprep.subr.bf16.mxu0 0
        %2031 = vmatpush1.bf16.msra.mxu0 0
        %2032 = vmatprep.subr.bf16.mxu0 0
        %2033 = vmatpush1.bf16.msra.mxu0 0
        %2034 = vmatprep.subr.bf16.mxu0 0
        %2035 = vmatpush1.bf16.msra.mxu0 0
        %2036 = vmatprep.subr.bf16.mxu0 0
        %2037 = vmatpush1.bf16.msra.mxu0 0
        %2038 = vmatprep.subr.bf16.mxu0 0
        %2039 = vmatpush1.bf16.msra.mxu0 0
        %2040 = vmatprep.subr.bf16.mxu0 0
        %2041 = vmatpush1.bf16.msra.mxu0 0
        %2042 = vmatprep.subr.bf16.mxu0 0
        %2043 = vmatpush1.bf16.msra.mxu0 0
        %2044 = vmatprep.subr.bf16.mxu0 0
        %2045 = vmatpush1.bf16.msra.mxu0 0
        %2046 = vmatprep.subr.bf16.mxu0 0
        %2047 = vmatpush1.bf16.msra.mxu0 0
        %2048 = vmatprep.subr.bf16.mxu0 0
        %2049 = vmatpush1.bf16.msra.mxu0 0
        %2050 = vmatprep.subr.bf16.mxu0 0
        %2051 = vmatpush1.bf16.msra.mxu0 0
        %2052 = vmatprep.subr.bf16.mxu0 0
        %2053 = vmatpush1.bf16.msra.mxu0 0
        %2054 = vmatprep.subr.bf16.mxu0 0
        %2055 = vmatpush1.bf16.msra.mxu0 0
        %2056 = vmatprep.subr.bf16.mxu0 0
        %2057 = vmatpush1.bf16.msra.mxu0 0
        %2058 = vmatprep.mubr.bf16.mxu0 0
        %2059 = vmatmul.mubr.bf16.gmra.mrb[0].mxu0 %v1901
        %v2060 = vpop.f32.mrb[0].mxu0
        %v2061 = vadd.f32 %v486, %v2060
        %v2062 = vpop.f32.mrb[0].mxu0
        %v2063 = vadd.f32 %v490, %v2062
        %v2064 = vpop.f32.mrb[0].mxu0
        %v2065 = vpop.f32.mrb[0].mxu0
        %2066 = vdwg.mxu0
        %2067 = vmatprep.subr.bf16.mxu0 %v1524
        %2068 = vmatpush1.bf16.msra.mxu0 %v1523
        %2069 = vmatprep.subr.bf16.mxu0 %v1620
        %2070 = vmatpush1.bf16.msra.mxu0 %v1619
        %2071 = vmatprep.subr.bf16.mxu0 0
        %2072 = vmatpush1.bf16.msra.mxu0 0
        %2073 = vmatprep.subr.bf16.mxu0 0
        %2074 = vmatpush1.bf16.msra.mxu0 0
        %2075 = vmatprep.subr.bf16.mxu0 0
        %2076 = vmatpush1.bf16.msra.mxu0 0
        %2077 = vmatprep.subr.bf16.mxu0 0
        %2078 = vmatpush1.bf16.msra.mxu0 0
        %2079 = vmatprep.subr.bf16.mxu0 0
        %2080 = vmatpush1.bf16.msra.mxu0 0
        %2081 = vmatprep.subr.bf16.mxu0 0
        %2082 = vmatpush1.bf16.msra.mxu0 0
        %2083 = vmatprep.subr.bf16.mxu0 0
        %2084 = vmatpush1.bf16.msra.mxu0 0
        %2085 = vmatprep.subr.bf16.mxu0 0
        %2086 = vmatpush1.bf16.msra.mxu0 0
        %2087 = vmatprep.subr.bf16.mxu0 0
        %2088 = vmatpush1.bf16.msra.mxu0 0
        %2089 = vmatprep.subr.bf16.mxu0 0
        %2090 = vmatpush1.bf16.msra.mxu0 0
        %2091 = vmatprep.subr.bf16.mxu0 0
        %2092 = vmatpush1.bf16.msra.mxu0 0
        %2093 = vmatprep.subr.bf16.mxu0 0
        %2094 = vmatpush1.bf16.msra.mxu0 0
        %2095 = vmatprep.subr.bf16.mxu0 0
        %2096 = vmatpush1.bf16.msra.mxu0 0
        %2097 = vmatprep.subr.bf16.mxu0 0
        %2098 = vmatpush1.bf16.msra.mxu0 0
        %2099 = vmatprep.mubr.bf16.mxu0 0
        %2100 = vmatmul.mubr.bf16.gmra.mrb[0].mxu0 %v1901
        %v2101 = vpop.f32.mrb[0].mxu0
        %v2102 = vadd.f32 %v494, %v2101
        %v2103 = vpop.f32.mrb[0].mxu0
        %v2104 = vadd.f32 %v498, %v2103
        %v2105 = vpop.f32.mrb[0].mxu0
        %v2106 = vpop.f32.mrb[0].mxu0
        %2107 = vdwg.mxu0
        %2108 = vmatprep.subr.bf16.mxu0 %v1526
        %2109 = vmatpush1.bf16.msra.mxu0 %v1525
        %2110 = vmatprep.subr.bf16.mxu0 %v1622
        %2111 = vmatpush1.bf16.msra.mxu0 %v1621
        %2112 = vmatprep.subr.bf16.mxu0 0
        %2113 = vmatpush1.bf16.msra.mxu0 0
        %2114 = vmatprep.subr.bf16.mxu0 0
        %2115 = vmatpush1.bf16.msra.mxu0 0
        %2116 = vmatprep.subr.bf16.mxu0 0
        %2117 = vmatpush1.bf16.msra.mxu0 0
        %2118 = vmatprep.subr.bf16.mxu0 0
        %2119 = vmatpush1.bf16.msra.mxu0 0
        %2120 = vmatprep.subr.bf16.mxu0 0
        %2121 = vmatpush1.bf16.msra.mxu0 0
        %2122 = vmatprep.subr.bf16.mxu0 0
        %2123 = vmatpush1.bf16.msra.mxu0 0
        %2124 = vmatprep.subr.bf16.mxu0 0
        %2125 = vmatpush1.bf16.msra.mxu0 0
        %2126 = vmatprep.subr.bf16.mxu0 0
        %2127 = vmatpush1.bf16.msra.mxu0 0
        %2128 = vmatprep.subr.bf16.mxu0 0
        %2129 = vmatpush1.bf16.msra.mxu0 0
        %2130 = vmatprep.subr.bf16.mxu0 0
        %2131 = vmatpush1.bf16.msra.mxu0 0
        %2132 = vmatprep.subr.bf16.mxu0 0
        %2133 = vmatpush1.bf16.msra.mxu0 0
        %2134 = vmatprep.subr.bf16.mxu0 0
        %2135 = vmatpush1.bf16.msra.mxu0 0
        %2136 = vmatprep.subr.bf16.mxu0 0
        %2137 = vmatpush1.bf16.msra.mxu0 0
        %2138 = vmatprep.subr.bf16.mxu0 0
        %2139 = vmatpush1.bf16.msra.mxu0 0
        %2140 = vmatprep.mubr.bf16.mxu0 0
        %2141 = vmatmul.mubr.bf16.gmra.mrb[0].mxu0 %v1901
        %v2142 = vpop.f32.mrb[0].mxu0
        %v2143 = vadd.f32 %v502, %v2142
        %v2144 = vpop.f32.mrb[0].mxu0
        %v2145 = vadd.f32 %v506, %v2144
        %v2146 = vpop.f32.mrb[0].mxu0
        %v2147 = vpop.f32.mrb[0].mxu0
        %2148 = vdwg.mxu0
        %2149 = vmatprep.subr.bf16.mxu0 %v1528
        %2150 = vmatpush1.bf16.msra.mxu0 %v1527
        %2151 = vmatprep.subr.bf16.mxu0 %v1624
        %2152 = vmatpush1.bf16.msra.mxu0 %v1623
        %2153 = vmatprep.subr.bf16.mxu0 0
        %2154 = vmatpush1.bf16.msra.mxu0 0
        %2155 = vmatprep.subr.bf16.mxu0 0
        %2156 = vmatpush1.bf16.msra.mxu0 0
        %2157 = vmatprep.subr.bf16.mxu0 0
        %2158 = vmatpush1.bf16.msra.mxu0 0
        %2159 = vmatprep.subr.bf16.mxu0 0
        %2160 = vmatpush1.bf16.msra.mxu0 0
        %2161 = vmatprep.subr.bf16.mxu0 0
        %2162 = vmatpush1.bf16.msra.mxu0 0
        %2163 = vmatprep.subr.bf16.mxu0 0
        %2164 = vmatpush1.bf16.msra.mxu0 0
        %2165 = vmatprep.subr.bf16.mxu0 0
        %2166 = vmatpush1.bf16.msra.mxu0 0
        %2167 = vmatprep.subr.bf16.mxu0 0
        %2168 = vmatpush1.bf16.msra.mxu0 0
        %2169 = vmatprep.subr.bf16.mxu0 0
        %2170 = vmatpush1.bf16.msra.mxu0 0
        %2171 = vmatprep.subr.bf16.mxu0 0
        %2172 = vmatpush1.bf16.msra.mxu0 0
        %2173 = vmatprep.subr.bf16.mxu0 0
        %2174 = vmatpush1.bf16.msra.mxu0 0
        %2175 = vmatprep.subr.bf16.mxu0 0
        %2176 = vmatpush1.bf16.msra.mxu0 0
        %2177 = vmatprep.subr.bf16.mxu0 0
        %2178 = vmatpush1.bf16.msra.mxu0 0
        %2179 = vmatprep.subr.bf16.mxu0 0
        %2180 = vmatpush1.bf16.msra.mxu0 0
        %2181 = vmatprep.mubr.bf16.mxu0 0
        %2182 = vmatmul.mubr.bf16.gmra.mrb[0].mxu0 %v1901
        %v2183 = vpop.f32.mrb[0].mxu0
        %v2184 = vadd.f32 %v510, %v2183
        %v2185 = vpop.f32.mrb[0].mxu0
        %v2186 = vadd.f32 %v514, %v2185
        %v2187 = vpop.f32.mrb[0].mxu0
        %v2188 = vpop.f32.mrb[0].mxu0
        %2189 = vdwg.mxu0
        %2190 = vmatprep.subr.bf16.mxu0 %v1530
        %2191 = vmatpush1.bf16.msra.mxu0 %v1529
        %2192 = vmatprep.subr.bf16.mxu0 %v1626
        %2193 = vmatpush1.bf16.msra.mxu0 %v1625
        %2194 = vmatprep.subr.bf16.mxu0 0
        %2195 = vmatpush1.bf16.msra.mxu0 0
        %2196 = vmatprep.subr.bf16.mxu0 0
        %2197 = vmatpush1.bf16.msra.mxu0 0
        %2198 = vmatprep.subr.bf16.mxu0 0
        %2199 = vmatpush1.bf16.msra.mxu0 0
        %2200 = vmatprep.subr.bf16.mxu0 0
        %2201 = vmatpush1.bf16.msra.mxu0 0
        %2202 = vmatprep.subr.bf16.mxu0 0
        %2203 = vmatpush1.bf16.msra.mxu0 0
        %2204 = vmatprep.subr.bf16.mxu0 0
        %2205 = vmatpush1.bf16.msra.mxu0 0
        %2206 = vmatprep.subr.bf16.mxu0 0
        %2207 = vmatpush1.bf16.msra.mxu0 0
        %2208 = vmatprep.subr.bf16.mxu0 0
        %2209 = vmatpush1.bf16.msra.mxu0 0
        %2210 = vmatprep.subr.bf16.mxu0 0
        %2211 = vmatpush1.bf16.msra.mxu0 0
        %2212 = vmatprep.subr.bf16.mxu0 0
        %2213 = vmatpush1.bf16.msra.mxu0 0
        %2214 = vmatprep.subr.bf16.mxu0 0
        %2215 = vmatpush1.bf16.msra.mxu0 0
        %2216 = vmatprep.subr.bf16.mxu0 0
        %2217 = vmatpush1.bf16.msra.mxu0 0
        %2218 = vmatprep.subr.bf16.mxu0 0
        %2219 = vmatpush1.bf16.msra.mxu0 0
        %2220 = vmatprep.subr.bf16.mxu0 0
        %2221 = vmatpush1.bf16.msra.mxu0 0
        %2222 = vmatprep.mubr.bf16.mxu0 0
        %2223 = vmatmul.mubr.bf16.gmra.mrb[0].mxu0 %v1901
        %v2224 = vpop.f32.mrb[0].mxu0
        %v2225 = vadd.f32 %v518, %v2224
        %v2226 = vpop.f32.mrb[0].mxu0
        %v2227 = vadd.f32 %v522, %v2226
        %v2228 = vpop.f32.mrb[0].mxu0
        %v2229 = vpop.f32.mrb[0].mxu0
        %2230 = vdwg.mxu0
        %2231 = vmatprep.subr.bf16.mxu0 %v1532
        %2232 = vmatpush1.bf16.msra.mxu0 %v1531
        %2233 = vmatprep.subr.bf16.mxu0 %v1628
        %2234 = vmatpush1.bf16.msra.mxu0 %v1627
        %2235 = vmatprep.subr.bf16.mxu0 0
        %2236 = vmatpush1.bf16.msra.mxu0 0
        %2237 = vmatprep.subr.bf16.mxu0 0
        %2238 = vmatpush1.bf16.msra.mxu0 0
        %2239 = vmatprep.subr.bf16.mxu0 0
        %2240 = vmatpush1.bf16.msra.mxu0 0
        %2241 = vmatprep.subr.bf16.mxu0 0
        %2242 = vmatpush1.bf16.msra.mxu0 0
        %2243 = vmatprep.subr.bf16.mxu0 0
        %2244 = vmatpush1.bf16.msra.mxu0 0
        %2245 = vmatprep.subr.bf16.mxu0 0
        %2246 = vmatpush1.bf16.msra.mxu0 0
        %2247 = vmatprep.subr.bf16.mxu0 0
        %2248 = vmatpush1.bf16.msra.mxu0 0
        %2249 = vmatprep.subr.bf16.mxu0 0
        %2250 = vmatpush1.bf16.msra.mxu0 0
        %2251 = vmatprep.subr.bf16.mxu0 0
        %2252 = vmatpush1.bf16.msra.mxu0 0
        %2253 = vmatprep.subr.bf16.mxu0 0
        %2254 = vmatpush1.bf16.msra.mxu0 0
        %2255 = vmatprep.subr.bf16.mxu0 0
        %2256 = vmatpush1.bf16.msra.mxu0 0
        %2257 = vmatprep.subr.bf16.mxu0 0
        %2258 = vmatpush1.bf16.msra.mxu0 0
        %2259 = vmatprep.subr.bf16.mxu0 0
        %2260 = vmatpush1.bf16.msra.mxu0 0
        %2261 = vmatprep.subr.bf16.mxu0 0
        %2262 = vmatpush1.bf16.msra.mxu0 0
        %2263 = vmatprep.mubr.bf16.mxu0 0
        %2264 = vmatmul.mubr.bf16.gmra.mrb[0].mxu0 %v1901
        %v2265 = vpop.f32.mrb[0].mxu0
        %v2266 = vadd.f32 %v526, %v2265
        %v2267 = vpop.f32.mrb[0].mxu0
        %v2268 = vadd.f32 %v530, %v2267
        %v2269 = vpop.f32.mrb[0].mxu0
        %v2270 = vpop.f32.mrb[0].mxu0
        %2271 = vdwg.mxu0
        %2272 = vmatprep.subr.bf16.mxu0 %v1534
        %2273 = vmatpush1.bf16.msra.mxu0 %v1533
        %2274 = vmatprep.subr.bf16.mxu0 %v1630
        %2275 = vmatpush1.bf16.msra.mxu0 %v1629
        %2276 = vmatprep.subr.bf16.mxu0 0
        %2277 = vmatpush1.bf16.msra.mxu0 0
        %2278 = vmatprep.subr.bf16.mxu0 0
        %2279 = vmatpush1.bf16.msra.mxu0 0
        %2280 = vmatprep.subr.bf16.mxu0 0
        %2281 = vmatpush1.bf16.msra.mxu0 0
        %2282 = vmatprep.subr.bf16.mxu0 0
        %2283 = vmatpush1.bf16.msra.mxu0 0
        %2284 = vmatprep.subr.bf16.mxu0 0
        %2285 = vmatpush1.bf16.msra.mxu0 0
        %2286 = vmatprep.subr.bf16.mxu0 0
        %2287 = vmatpush1.bf16.msra.mxu0 0
        %2288 = vmatprep.subr.bf16.mxu0 0
        %2289 = vmatpush1.bf16.msra.mxu0 0
        %2290 = vmatprep.subr.bf16.mxu0 0
        %2291 = vmatpush1.bf16.msra.mxu0 0
        %2292 = vmatprep.subr.bf16.mxu0 0
        %2293 = vmatpush1.bf16.msra.mxu0 0
        %2294 = vmatprep.subr.bf16.mxu0 0
        %2295 = vmatpush1.bf16.msra.mxu0 0
        %2296 = vmatprep.subr.bf16.mxu0 0
        %2297 = vmatpush1.bf16.msra.mxu0 0
        %2298 = vmatprep.subr.bf16.mxu0 0
        %2299 = vmatpush1.bf16.msra.mxu0 0
        %2300 = vmatprep.subr.bf16.mxu0 0
        %2301 = vmatpush1.bf16.msra.mxu0 0
        %2302 = vmatprep.subr.bf16.mxu0 0
        %2303 = vmatpush1.bf16.msra.mxu0 0
        %2304 = vmatprep.mubr.bf16.mxu0 0
        %2305 = vmatmul.mubr.bf16.gmra.mrb[0].mxu0 %v1901
        %v2306 = vpop.f32.mrb[0].mxu0
        %v2307 = vadd.f32 %v534, %v2306
        %v2308 = vpop.f32.mrb[0].mxu0
        %v2309 = vadd.f32 %v538, %v2308
        %v2310 = vpop.f32.mrb[0].mxu0
        %v2311 = vpop.f32.mrb[0].mxu0
        %2312 = vdwg.mxu0
        %2313 = vmatprep.subr.bf16.mxu0 %v1536
        %2314 = vmatpush1.bf16.msra.mxu0 %v1535
        %2315 = vmatprep.subr.bf16.mxu0 %v1632
        %2316 = vmatpush1.bf16.msra.mxu0 %v1631
        %2317 = vmatprep.subr.bf16.mxu0 0
        %2318 = vmatpush1.bf16.msra.mxu0 0
        %2319 = vmatprep.subr.bf16.mxu0 0
        %2320 = vmatpush1.bf16.msra.mxu0 0
        %2321 = vmatprep.subr.bf16.mxu0 0
        %2322 = vmatpush1.bf16.msra.mxu0 0
        %2323 = vmatprep.subr.bf16.mxu0 0
        %2324 = vmatpush1.bf16.msra.mxu0 0
        %2325 = vmatprep.subr.bf16.mxu0 0
        %2326 = vmatpush1.bf16.msra.mxu0 0
        %2327 = vmatprep.subr.bf16.mxu0 0
        %2328 = vmatpush1.bf16.msra.mxu0 0
        %2329 = vmatprep.subr.bf16.mxu0 0
        %2330 = vmatpush1.bf16.msra.mxu0 0
        %2331 = vmatprep.subr.bf16.mxu0 0
        %2332 = vmatpush1.bf16.msra.mxu0 0
        %2333 = vmatprep.subr.bf16.mxu0 0
        %2334 = vmatpush1.bf16.msra.mxu0 0
        %2335 = vmatprep.subr.bf16.mxu0 0
        %2336 = vmatpush1.bf16.msra.mxu0 0
        %2337 = vmatprep.subr.bf16.mxu0 0
        %2338 = vmatpush1.bf16.msra.mxu0 0
        %2339 = vmatprep.subr.bf16.mxu0 0
        %2340 = vmatpush1.bf16.msra.mxu0 0
        %2341 = vmatprep.subr.bf16.mxu0 0
        %2342 = vmatpush1.bf16.msra.mxu0 0
        %2343 = vmatprep.subr.bf16.mxu0 0
        %2344 = vmatpush1.bf16.msra.mxu0 0
        %2345 = vmatprep.mubr.bf16.mxu0 0
        %2346 = vmatmul.mubr.bf16.gmra.mrb[0].mxu0 %v1901
        %v2347 = vpop.f32.mrb[0].mxu0
        %v2348 = vadd.f32 %v542, %v2347
        %v2349 = vpop.f32.mrb[0].mxu0
        %v2350 = vadd.f32 %v546, %v2349
        %v2351 = vpop.f32.mrb[0].mxu0
        %v2352 = vpop.f32.mrb[0].mxu0
        %2353 = vdwg.mxu0
        %2354 = vmatprep.subr.bf16.mxu0 %v1538
        %2355 = vmatpush1.bf16.msra.mxu0 %v1537
        %2356 = vmatprep.subr.bf16.mxu0 %v1634
        %2357 = vmatpush1.bf16.msra.mxu0 %v1633
        %2358 = vmatprep.subr.bf16.mxu0 0
        %2359 = vmatpush1.bf16.msra.mxu0 0
        %2360 = vmatprep.subr.bf16.mxu0 0
        %2361 = vmatpush1.bf16.msra.mxu0 0
        %2362 = vmatprep.subr.bf16.mxu0 0
        %2363 = vmatpush1.bf16.msra.mxu0 0
        %2364 = vmatprep.subr.bf16.mxu0 0
        %2365 = vmatpush1.bf16.msra.mxu0 0
        %2366 = vmatprep.subr.bf16.mxu0 0
        %2367 = vmatpush1.bf16.msra.mxu0 0
        %2368 = vmatprep.subr.bf16.mxu0 0
        %2369 = vmatpush1.bf16.msra.mxu0 0
        %2370 = vmatprep.subr.bf16.mxu0 0
        %2371 = vmatpush1.bf16.msra.mxu0 0
        %2372 = vmatprep.subr.bf16.mxu0 0
        %2373 = vmatpush1.bf16.msra.mxu0 0
        %2374 = vmatprep.subr.bf16.mxu0 0
        %2375 = vmatpush1.bf16.msra.mxu0 0
        %2376 = vmatprep.subr.bf16.mxu0 0
        %2377 = vmatpush1.bf16.msra.mxu0 0
        %2378 = vmatprep.subr.bf16.mxu0 0
        %2379 = vmatpush1.bf16.msra.mxu0 0
        %2380 = vmatprep.subr.bf16.mxu0 0
        %2381 = vmatpush1.bf16.msra.mxu0 0
        %2382 = vmatprep.subr.bf16.mxu0 0
        %2383 = vmatpush1.bf16.msra.mxu0 0
        %2384 = vmatprep.subr.bf16.mxu0 0
        %2385 = vmatpush1.bf16.msra.mxu0 0
        %2386 = vmatprep.mubr.bf16.mxu0 0
        %2387 = vmatmul.mubr.bf16.gmra.mrb[0].mxu0 %v1901
        %v2388 = vpop.f32.mrb[0].mxu0
        %v2389 = vadd.f32 %v550, %v2388
        %v2390 = vpop.f32.mrb[0].mxu0
        %v2391 = vadd.f32 %v554, %v2390
        %v2392 = vpop.f32.mrb[0].mxu0
        %v2393 = vpop.f32.mrb[0].mxu0
        %2394 = vdwg.mxu0
        %2395 = vmatprep.subr.bf16.mxu0 %v1540
        %2396 = vmatpush1.bf16.msra.mxu0 %v1539
        %2397 = vmatprep.subr.bf16.mxu0 %v1636
        %2398 = vmatpush1.bf16.msra.mxu0 %v1635
        %2399 = vmatprep.subr.bf16.mxu0 0
        %2400 = vmatpush1.bf16.msra.mxu0 0
        %2401 = vmatprep.subr.bf16.mxu0 0
        %2402 = vmatpush1.bf16.msra.mxu0 0
        %2403 = vmatprep.subr.bf16.mxu0 0
        %2404 = vmatpush1.bf16.msra.mxu0 0
        %2405 = vmatprep.subr.bf16.mxu0 0
        %2406 = vmatpush1.bf16.msra.mxu0 0
        %2407 = vmatprep.subr.bf16.mxu0 0
        %2408 = vmatpush1.bf16.msra.mxu0 0
        %2409 = vmatprep.subr.bf16.mxu0 0
        %2410 = vmatpush1.bf16.msra.mxu0 0
        %2411 = vmatprep.subr.bf16.mxu0 0
        %2412 = vmatpush1.bf16.msra.mxu0 0
        %2413 = vmatprep.subr.bf16.mxu0 0
        %2414 = vmatpush1.bf16.msra.mxu0 0
        %2415 = vmatprep.subr.bf16.mxu0 0
        %2416 = vmatpush1.bf16.msra.mxu0 0
        %2417 = vmatprep.subr.bf16.mxu0 0
        %2418 = vmatpush1.bf16.msra.mxu0 0
        %2419 = vmatprep.subr.bf16.mxu0 0
        %2420 = vmatpush1.bf16.msra.mxu0 0
        %2421 = vmatprep.subr.bf16.mxu0 0
        %2422 = vmatpush1.bf16.msra.mxu0 0
        %2423 = vmatprep.subr.bf16.mxu0 0
        %2424 = vmatpush1.bf16.msra.mxu0 0
        %2425 = vmatprep.subr.bf16.mxu0 0
        %2426 = vmatpush1.bf16.msra.mxu0 0
        %2427 = vmatprep.mubr.bf16.mxu0 0
        %2428 = vmatmul.mubr.bf16.gmra.mrb[0].mxu0 %v1901
        %v2429 = vpop.f32.mrb[0].mxu0
        %v2430 = vadd.f32 %v558, %v2429
        %v2431 = vpop.f32.mrb[0].mxu0
        %v2432 = vadd.f32 %v562, %v2431
        %v2433 = vpop.f32.mrb[0].mxu0
        %v2434 = vpop.f32.mrb[0].mxu0
        %2435 = vdwg.mxu0
        %2436 = vmatprep.subr.bf16.mxu0 %v1542
        %2437 = vmatpush1.bf16.msra.mxu0 %v1541
        %2438 = vmatprep.subr.bf16.mxu0 %v1638
        %2439 = vmatpush1.bf16.msra.mxu0 %v1637
        %2440 = vmatprep.subr.bf16.mxu0 0
        %2441 = vmatpush1.bf16.msra.mxu0 0
        %2442 = vmatprep.subr.bf16.mxu0 0
        %2443 = vmatpush1.bf16.msra.mxu0 0
        %2444 = vmatprep.subr.bf16.mxu0 0
        %2445 = vmatpush1.bf16.msra.mxu0 0
        %2446 = vmatprep.subr.bf16.mxu0 0
        %2447 = vmatpush1.bf16.msra.mxu0 0
        %2448 = vmatprep.subr.bf16.mxu0 0
        %2449 = vmatpush1.bf16.msra.mxu0 0
        %2450 = vmatprep.subr.bf16.mxu0 0
        %2451 = vmatpush1.bf16.msra.mxu0 0
        %2452 = vmatprep.subr.bf16.mxu0 0
        %2453 = vmatpush1.bf16.msra.mxu0 0
        %2454 = vmatprep.subr.bf16.mxu0 0
        %2455 = vmatpush1.bf16.msra.mxu0 0
        %2456 = vmatprep.subr.bf16.mxu0 0
        %2457 = vmatpush1.bf16.msra.mxu0 0
        %2458 = vmatprep.subr.bf16.mxu0 0
        %2459 = vmatpush1.bf16.msra.mxu0 0
        %2460 = vmatprep.subr.bf16.mxu0 0
        %2461 = vmatpush1.bf16.msra.mxu0 0
        %2462 = vmatprep.subr.bf16.mxu0 0
        %2463 = vmatpush1.bf16.msra.mxu0 0
        %2464 = vmatprep.subr.bf16.mxu0 0
        %2465 = vmatpush1.bf16.msra.mxu0 0
        %2466 = vmatprep.subr.bf16.mxu0 0
        %2467 = vmatpush1.bf16.msra.mxu0 0
        %2468 = vmatprep.mubr.bf16.mxu0 0
        %2469 = vmatmul.mubr.bf16.gmra.mrb[0].mxu0 %v1901
        %v2470 = vpop.f32.mrb[0].mxu0
        %v2471 = vadd.f32 %v566, %v2470
        %v2472 = vpop.f32.mrb[0].mxu0
        %v2473 = vadd.f32 %v570, %v2472
        %v2474 = vpop.f32.mrb[0].mxu0
        %v2475 = vpop.f32.mrb[0].mxu0
        %2476 = vdwg.mxu0
        %2477 = vmatprep.subr.bf16.mxu0 %v1544
        %2478 = vmatpush1.bf16.msra.mxu0 %v1543
        %2479 = vmatprep.subr.bf16.mxu0 %v1640
        %2480 = vmatpush1.bf16.msra.mxu0 %v1639
        %2481 = vmatprep.subr.bf16.mxu0 0
        %2482 = vmatpush1.bf16.msra.mxu0 0
        %2483 = vmatprep.subr.bf16.mxu0 0
        %2484 = vmatpush1.bf16.msra.mxu0 0
        %2485 = vmatprep.subr.bf16.mxu0 0
        %2486 = vmatpush1.bf16.msra.mxu0 0
        %2487 = vmatprep.subr.bf16.mxu0 0
        %2488 = vmatpush1.bf16.msra.mxu0 0
        %2489 = vmatprep.subr.bf16.mxu0 0
        %2490 = vmatpush1.bf16.msra.mxu0 0
        %2491 = vmatprep.subr.bf16.mxu0 0
        %2492 = vmatpush1.bf16.msra.mxu0 0
        %2493 = vmatprep.subr.bf16.mxu0 0
        %2494 = vmatpush1.bf16.msra.mxu0 0
        %2495 = vmatprep.subr.bf16.mxu0 0
        %2496 = vmatpush1.bf16.msra.mxu0 0
        %2497 = vmatprep.subr.bf16.mxu0 0
        %2498 = vmatpush1.bf16.msra.mxu0 0
        %2499 = vmatprep.subr.bf16.mxu0 0
        %2500 = vmatpush1.bf16.msra.mxu0 0
        %2501 = vmatprep.subr.bf16.mxu0 0
        %2502 = vmatpush1.bf16.msra.mxu0 0
        %2503 = vmatprep.subr.bf16.mxu0 0
        %2504 = vmatpush1.bf16.msra.mxu0 0
        %2505 = vmatprep.subr.bf16.mxu0 0
        %2506 = vmatpush1.bf16.msra.mxu0 0
        %2507 = vmatprep.subr.bf16.mxu0 0
        %2508 = vmatpush1.bf16.msra.mxu0 0
        %2509 = vmatprep.mubr.bf16.mxu0 0
        %2510 = vmatmul.mubr.bf16.gmra.mrb[0].mxu0 %v1901
        %v2511 = vpop.f32.mrb[0].mxu0
        %v2512 = vadd.f32 %v574, %v2511
        %v2513 = vpop.f32.mrb[0].mxu0
        %v2514 = vadd.f32 %v578, %v2513
        %v2515 = vpop.f32.mrb[0].mxu0
        %v2516 = vpop.f32.mrb[0].mxu0
        %2517 = vdwg.mxu0
        %2518 = vmatprep.subr.bf16.mxu0 %v1546
        %2519 = vmatpush1.bf16.msra.mxu0 %v1545
        %2520 = vmatprep.subr.bf16.mxu0 %v1642
        %2521 = vmatpush1.bf16.msra.mxu0 %v1641
        %2522 = vmatprep.subr.bf16.mxu0 0
        %2523 = vmatpush1.bf16.msra.mxu0 0
        %2524 = vmatprep.subr.bf16.mxu0 0
        %2525 = vmatpush1.bf16.msra.mxu0 0
        %2526 = vmatprep.subr.bf16.mxu0 0
        %2527 = vmatpush1.bf16.msra.mxu0 0
        %2528 = vmatprep.subr.bf16.mxu0 0
        %2529 = vmatpush1.bf16.msra.mxu0 0
        %2530 = vmatprep.subr.bf16.mxu0 0
        %2531 = vmatpush1.bf16.msra.mxu0 0
        %2532 = vmatprep.subr.bf16.mxu0 0
        %2533 = vmatpush1.bf16.msra.mxu0 0
        %2534 = vmatprep.subr.bf16.mxu0 0
        %2535 = vmatpush1.bf16.msra.mxu0 0
        %2536 = vmatprep.subr.bf16.mxu0 0
        %2537 = vmatpush1.bf16.msra.mxu0 0
        %2538 = vmatprep.subr.bf16.mxu0 0
        %2539 = vmatpush1.bf16.msra.mxu0 0
        %2540 = vmatprep.subr.bf16.mxu0 0
        %2541 = vmatpush1.bf16.msra.mxu0 0
        %2542 = vmatprep.subr.bf16.mxu0 0
        %2543 = vmatpush1.bf16.msra.mxu0 0
        %2544 = vmatprep.subr.bf16.mxu0 0
        %2545 = vmatpush1.bf16.msra.mxu0 0
        %2546 = vmatprep.subr.bf16.mxu0 0
        %2547 = vmatpush1.bf16.msra.mxu0 0
        %2548 = vmatprep.subr.bf16.mxu0 0
        %2549 = vmatpush1.bf16.msra.mxu0 0
        %2550 = vmatprep.mubr.bf16.mxu0 0
        %2551 = vmatmul.mubr.bf16.gmra.mrb[0].mxu0 %v1901
        %v2552 = vpop.f32.mrb[0].mxu0
        %v2553 = vadd.f32 %v582, %v2552
        %v2554 = vpop.f32.mrb[0].mxu0
        %v2555 = vadd.f32 %v586, %v2554
        %v2556 = vpop.f32.mrb[0].mxu0
        %v2557 = vpop.f32.mrb[0].mxu0
        %2558 = vdwg.mxu0
        %2559 = vmatprep.subr.bf16.mxu0 %v1548
        %2560 = vmatpush1.bf16.msra.mxu0 %v1547
        %2561 = vmatprep.subr.bf16.mxu0 %v1644
        %2562 = vmatpush1.bf16.msra.mxu0 %v1643
        %2563 = vmatprep.subr.bf16.mxu0 0
        %2564 = vmatpush1.bf16.msra.mxu0 0
        %2565 = vmatprep.subr.bf16.mxu0 0
        %2566 = vmatpush1.bf16.msra.mxu0 0
        %2567 = vmatprep.subr.bf16.mxu0 0
        %2568 = vmatpush1.bf16.msra.mxu0 0
        %2569 = vmatprep.subr.bf16.mxu0 0
        %2570 = vmatpush1.bf16.msra.mxu0 0
        %2571 = vmatprep.subr.bf16.mxu0 0
        %2572 = vmatpush1.bf16.msra.mxu0 0
        %2573 = vmatprep.subr.bf16.mxu0 0
        %2574 = vmatpush1.bf16.msra.mxu0 0
        %2575 = vmatprep.subr.bf16.mxu0 0
        %2576 = vmatpush1.bf16.msra.mxu0 0
        %2577 = vmatprep.subr.bf16.mxu0 0
        %2578 = vmatpush1.bf16.msra.mxu0 0
        %2579 = vmatprep.subr.bf16.mxu0 0
        %2580 = vmatpush1.bf16.msra.mxu0 0
        %2581 = vmatprep.subr.bf16.mxu0 0
        %2582 = vmatpush1.bf16.msra.mxu0 0
        %2583 = vmatprep.subr.bf16.mxu0 0
        %2584 = vmatpush1.bf16.msra.mxu0 0
        %2585 = vmatprep.subr.bf16.mxu0 0
        %2586 = vmatpush1.bf16.msra.mxu0 0
        %2587 = vmatprep.subr.bf16.mxu0 0
        %2588 = vmatpush1.bf16.msra.mxu0 0
        %2589 = vmatprep.subr.bf16.mxu0 0
        %2590 = vmatpush1.bf16.msra.mxu0 0
        %2591 = vmatprep.mubr.bf16.mxu0 0
        %2592 = vmatmul.mubr.bf16.gmra.mrb[0].mxu0 %v1901
        %v2593 = vpop.f32.mrb[0].mxu0
        %v2594 = vadd.f32 %v590, %v2593
        %v2595 = vpop.f32.mrb[0].mxu0
        %v2596 = vadd.f32 %v594, %v2595
        %v2597 = vpop.f32.mrb[0].mxu0
        %v2598 = vpop.f32.mrb[0].mxu0
        %2599 = vdwg.mxu0
        %2600 = vmatprep.subr.bf16.mxu0 %v1550
        %2601 = vmatpush1.bf16.msra.mxu0 %v1549
        %2602 = vmatprep.subr.bf16.mxu0 %v1646
        %2603 = vmatpush1.bf16.msra.mxu0 %v1645
        %2604 = vmatprep.subr.bf16.mxu0 0
        %2605 = vmatpush1.bf16.msra.mxu0 0
        %2606 = vmatprep.subr.bf16.mxu0 0
        %2607 = vmatpush1.bf16.msra.mxu0 0
        %2608 = vmatprep.subr.bf16.mxu0 0
        %2609 = vmatpush1.bf16.msra.mxu0 0
        %2610 = vmatprep.subr.bf16.mxu0 0
        %2611 = vmatpush1.bf16.msra.mxu0 0
        %2612 = vmatprep.subr.bf16.mxu0 0
        %2613 = vmatpush1.bf16.msra.mxu0 0
        %2614 = vmatprep.subr.bf16.mxu0 0
        %2615 = vmatpush1.bf16.msra.mxu0 0
        %2616 = vmatprep.subr.bf16.mxu0 0
        %2617 = vmatpush1.bf16.msra.mxu0 0
        %2618 = vmatprep.subr.bf16.mxu0 0
        %2619 = vmatpush1.bf16.msra.mxu0 0
        %2620 = vmatprep.subr.bf16.mxu0 0
        %2621 = vmatpush1.bf16.msra.mxu0 0
        %2622 = vmatprep.subr.bf16.mxu0 0
        %2623 = vmatpush1.bf16.msra.mxu0 0
        %2624 = vmatprep.subr.bf16.mxu0 0
        %2625 = vmatpush1.bf16.msra.mxu0 0
        %2626 = vmatprep.subr.bf16.mxu0 0
        %2627 = vmatpush1.bf16.msra.mxu0 0
        %2628 = vmatprep.subr.bf16.mxu0 0
        %2629 = vmatpush1.bf16.msra.mxu0 0
        %2630 = vmatprep.subr.bf16.mxu0 0
        %2631 = vmatpush1.bf16.msra.mxu0 0
        %2632 = vmatprep.mubr.bf16.mxu0 0
        %2633 = vmatmul.mubr.bf16.gmra.mrb[0].mxu0 %v1901
        %v2634 = vpop.f32.mrb[0].mxu0
        %v2635 = vadd.f32 %v598, %v2634
        %v2636 = vpop.f32.mrb[0].mxu0
        %v2637 = vadd.f32 %v602, %v2636
        %v2638 = vpop.f32.mrb[0].mxu0
        %v2639 = vpop.f32.mrb[0].mxu0
        %2640 = vdwg.mxu0
        %2641 = vmatprep.subr.bf16.mxu0 %v1552
        %2642 = vmatpush1.bf16.msra.mxu0 %v1551
        %2643 = vmatprep.subr.bf16.mxu0 %v1648
        %2644 = vmatpush1.bf16.msra.mxu0 %v1647
        %2645 = vmatprep.subr.bf16.mxu0 0
        %2646 = vmatpush1.bf16.msra.mxu0 0
        %2647 = vmatprep.subr.bf16.mxu0 0
        %2648 = vmatpush1.bf16.msra.mxu0 0
        %2649 = vmatprep.subr.bf16.mxu0 0
        %2650 = vmatpush1.bf16.msra.mxu0 0
        %2651 = vmatprep.subr.bf16.mxu0 0
        %2652 = vmatpush1.bf16.msra.mxu0 0
        %2653 = vmatprep.subr.bf16.mxu0 0
        %2654 = vmatpush1.bf16.msra.mxu0 0
        %2655 = vmatprep.subr.bf16.mxu0 0
        %2656 = vmatpush1.bf16.msra.mxu0 0
        %2657 = vmatprep.subr.bf16.mxu0 0
        %2658 = vmatpush1.bf16.msra.mxu0 0
        %2659 = vmatprep.subr.bf16.mxu0 0
        %2660 = vmatpush1.bf16.msra.mxu0 0
        %2661 = vmatprep.subr.bf16.mxu0 0
        %2662 = vmatpush1.bf16.msra.mxu0 0
        %2663 = vmatprep.subr.bf16.mxu0 0
        %2664 = vmatpush1.bf16.msra.mxu0 0
        %2665 = vmatprep.subr.bf16.mxu0 0
        %2666 = vmatpush1.bf16.msra.mxu0 0
        %2667 = vmatprep.subr.bf16.mxu0 0
        %2668 = vmatpush1.bf16.msra.mxu0 0
        %2669 = vmatprep.subr.bf16.mxu0 0
        %2670 = vmatpush1.bf16.msra.mxu0 0
        %2671 = vmatprep.subr.bf16.mxu0 0
        %2672 = vmatpush1.bf16.msra.mxu0 0
        %2673 = vmatprep.mubr.bf16.mxu0 0
        %2674 = vmatmul.mubr.bf16.gmra.mrb[0].mxu0 %v1901
        %v2675 = vpop.f32.mrb[0].mxu0
        %v2676 = vadd.f32 %v606, %v2675
        %v2677 = vpop.f32.mrb[0].mxu0
        %v2678 = vadd.f32 %v610, %v2677
        %v2679 = vpop.f32.mrb[0].mxu0
        %v2680 = vpop.f32.mrb[0].mxu0
        %2681 = vdwg.mxu0
        %2682 = vmatprep.subr.bf16.mxu0 %v1554
        %2683 = vmatpush1.bf16.msra.mxu0 %v1553
        %2684 = vmatprep.subr.bf16.mxu0 %v1650
        %2685 = vmatpush1.bf16.msra.mxu0 %v1649
        %2686 = vmatprep.subr.bf16.mxu0 0
        %2687 = vmatpush1.bf16.msra.mxu0 0
        %2688 = vmatprep.subr.bf16.mxu0 0
        %2689 = vmatpush1.bf16.msra.mxu0 0
        %2690 = vmatprep.subr.bf16.mxu0 0
        %2691 = vmatpush1.bf16.msra.mxu0 0
        %2692 = vmatprep.subr.bf16.mxu0 0
        %2693 = vmatpush1.bf16.msra.mxu0 0
        %2694 = vmatprep.subr.bf16.mxu0 0
        %2695 = vmatpush1.bf16.msra.mxu0 0
        %2696 = vmatprep.subr.bf16.mxu0 0
        %2697 = vmatpush1.bf16.msra.mxu0 0
        %2698 = vmatprep.subr.bf16.mxu0 0
        %2699 = vmatpush1.bf16.msra.mxu0 0
        %2700 = vmatprep.subr.bf16.mxu0 0
        %2701 = vmatpush1.bf16.msra.mxu0 0
        %2702 = vmatprep.subr.bf16.mxu0 0
        %2703 = vmatpush1.bf16.msra.mxu0 0
        %2704 = vmatprep.subr.bf16.mxu0 0
        %2705 = vmatpush1.bf16.msra.mxu0 0
        %2706 = vmatprep.subr.bf16.mxu0 0
        %2707 = vmatpush1.bf16.msra.mxu0 0
        %2708 = vmatprep.subr.bf16.mxu0 0
        %2709 = vmatpush1.bf16.msra.mxu0 0
        %2710 = vmatprep.subr.bf16.mxu0 0
        %2711 = vmatpush1.bf16.msra.mxu0 0
        %2712 = vmatprep.subr.bf16.mxu0 0
        %2713 = vmatpush1.bf16.msra.mxu0 0
        %2714 = vmatprep.mubr.bf16.mxu0 0
        %2715 = vmatmul.mubr.bf16.gmra.mrb[0].mxu0 %v1901
        %v2716 = vpop.f32.mrb[0].mxu0
        %v2717 = vadd.f32 %v614, %v2716
        %v2718 = vpop.f32.mrb[0].mxu0
        %v2719 = vadd.f32 %v618, %v2718
        %v2720 = vpop.f32.mrb[0].mxu0
        %v2721 = vpop.f32.mrb[0].mxu0
        %2722 = vdwg.mxu0
        %2723 = vmatprep.subr.bf16.mxu0 %v1556
        %2724 = vmatpush1.bf16.msra.mxu0 %v1555
        %2725 = vmatprep.subr.bf16.mxu0 %v1652
        %2726 = vmatpush1.bf16.msra.mxu0 %v1651
        %2727 = vmatprep.subr.bf16.mxu0 0
        %2728 = vmatpush1.bf16.msra.mxu0 0
        %2729 = vmatprep.subr.bf16.mxu0 0
        %2730 = vmatpush1.bf16.msra.mxu0 0
        %2731 = vmatprep.subr.bf16.mxu0 0
        %2732 = vmatpush1.bf16.msra.mxu0 0
        %2733 = vmatprep.subr.bf16.mxu0 0
        %2734 = vmatpush1.bf16.msra.mxu0 0
        %2735 = vmatprep.subr.bf16.mxu0 0
        %2736 = vmatpush1.bf16.msra.mxu0 0
        %2737 = vmatprep.subr.bf16.mxu0 0
        %2738 = vmatpush1.bf16.msra.mxu0 0
        %2739 = vmatprep.subr.bf16.mxu0 0
        %2740 = vmatpush1.bf16.msra.mxu0 0
        %2741 = vmatprep.subr.bf16.mxu0 0
        %2742 = vmatpush1.bf16.msra.mxu0 0
        %2743 = vmatprep.subr.bf16.mxu0 0
        %2744 = vmatpush1.bf16.msra.mxu0 0
        %2745 = vmatprep.subr.bf16.mxu0 0
        %2746 = vmatpush1.bf16.msra.mxu0 0
        %2747 = vmatprep.subr.bf16.mxu0 0
        %2748 = vmatpush1.bf16.msra.mxu0 0
        %2749 = vmatprep.subr.bf16.mxu0 0
        %2750 = vmatpush1.bf16.msra.mxu0 0
        %2751 = vmatprep.subr.bf16.mxu0 0
        %2752 = vmatpush1.bf16.msra.mxu0 0
        %2753 = vmatprep.subr.bf16.mxu0 0
        %2754 = vmatpush1.bf16.msra.mxu0 0
        %2755 = vmatprep.mubr.bf16.mxu0 0
        %2756 = vmatmul.mubr.bf16.gmra.mrb[0].mxu0 %v1901
        %v2757 = vpop.f32.mrb[0].mxu0
        %v2758 = vadd.f32 %v622, %v2757
        %v2759 = vpop.f32.mrb[0].mxu0
        %v2760 = vadd.f32 %v626, %v2759
        %v2761 = vpop.f32.mrb[0].mxu0
        %v2762 = vpop.f32.mrb[0].mxu0
        %2763 = vdwg.mxu0
        %2764 = vmatprep.subr.bf16.mxu0 %v1558
        %2765 = vmatpush1.bf16.msra.mxu0 %v1557
        %2766 = vmatprep.subr.bf16.mxu0 %v1654
        %2767 = vmatpush1.bf16.msra.mxu0 %v1653
        %2768 = vmatprep.subr.bf16.mxu0 0
        %2769 = vmatpush1.bf16.msra.mxu0 0
        %2770 = vmatprep.subr.bf16.mxu0 0
        %2771 = vmatpush1.bf16.msra.mxu0 0
        %2772 = vmatprep.subr.bf16.mxu0 0
        %2773 = vmatpush1.bf16.msra.mxu0 0
        %2774 = vmatprep.subr.bf16.mxu0 0
        %2775 = vmatpush1.bf16.msra.mxu0 0
        %2776 = vmatprep.subr.bf16.mxu0 0
        %2777 = vmatpush1.bf16.msra.mxu0 0
        %2778 = vmatprep.subr.bf16.mxu0 0
        %2779 = vmatpush1.bf16.msra.mxu0 0
        %2780 = vmatprep.subr.bf16.mxu0 0
        %2781 = vmatpush1.bf16.msra.mxu0 0
        %2782 = vmatprep.subr.bf16.mxu0 0
        %2783 = vmatpush1.bf16.msra.mxu0 0
        %2784 = vmatprep.subr.bf16.mxu0 0
        %2785 = vmatpush1.bf16.msra.mxu0 0
        %2786 = vmatprep.subr.bf16.mxu0 0
        %2787 = vmatpush1.bf16.msra.mxu0 0
        %2788 = vmatprep.subr.bf16.mxu0 0
        %2789 = vmatpush1.bf16.msra.mxu0 0
        %2790 = vmatprep.subr.bf16.mxu0 0
        %2791 = vmatpush1.bf16.msra.mxu0 0
        %2792 = vmatprep.subr.bf16.mxu0 0
        %2793 = vmatpush1.bf16.msra.mxu0 0
        %2794 = vmatprep.subr.bf16.mxu0 0
        %2795 = vmatpush1.bf16.msra.mxu0 0
        %2796 = vmatprep.mubr.bf16.mxu0 0
        %2797 = vmatmul.mubr.bf16.gmra.mrb[0].mxu0 %v1901
        %v2798 = vpop.f32.mrb[0].mxu0
        %v2799 = vadd.f32 %v630, %v2798
        %v2800 = vpop.f32.mrb[0].mxu0
        %v2801 = vadd.f32 %v634, %v2800
        %v2802 = vpop.f32.mrb[0].mxu0
        %v2803 = vpop.f32.mrb[0].mxu0
        %2804 = vdwg.mxu0
        %2805 = vmatprep.subr.bf16.mxu0 %v1560
        %2806 = vmatpush1.bf16.msra.mxu0 %v1559
        %2807 = vmatprep.subr.bf16.mxu0 %v1656
        %2808 = vmatpush1.bf16.msra.mxu0 %v1655
        %2809 = vmatprep.subr.bf16.mxu0 0
        %2810 = vmatpush1.bf16.msra.mxu0 0
        %2811 = vmatprep.subr.bf16.mxu0 0
        %2812 = vmatpush1.bf16.msra.mxu0 0
        %2813 = vmatprep.subr.bf16.mxu0 0
        %2814 = vmatpush1.bf16.msra.mxu0 0
        %2815 = vmatprep.subr.bf16.mxu0 0
        %2816 = vmatpush1.bf16.msra.mxu0 0
        %2817 = vmatprep.subr.bf16.mxu0 0
        %2818 = vmatpush1.bf16.msra.mxu0 0
        %2819 = vmatprep.subr.bf16.mxu0 0
        %2820 = vmatpush1.bf16.msra.mxu0 0
        %2821 = vmatprep.subr.bf16.mxu0 0
        %2822 = vmatpush1.bf16.msra.mxu0 0
        %2823 = vmatprep.subr.bf16.mxu0 0
        %2824 = vmatpush1.bf16.msra.mxu0 0
        %2825 = vmatprep.subr.bf16.mxu0 0
        %2826 = vmatpush1.bf16.msra.mxu0 0
        %2827 = vmatprep.subr.bf16.mxu0 0
        %2828 = vmatpush1.bf16.msra.mxu0 0
        %2829 = vmatprep.subr.bf16.mxu0 0
        %2830 = vmatpush1.bf16.msra.mxu0 0
        %2831 = vmatprep.subr.bf16.mxu0 0
        %2832 = vmatpush1.bf16.msra.mxu0 0
        %2833 = vmatprep.subr.bf16.mxu0 0
        %2834 = vmatpush1.bf16.msra.mxu0 0
        %2835 = vmatprep.subr.bf16.mxu0 0
        %2836 = vmatpush1.bf16.msra.mxu0 0
        %2837 = vmatprep.mubr.bf16.mxu0 0
        %2838 = vmatmul.mubr.bf16.gmra.mrb[0].mxu0 %v1901
        %v2839 = vpop.f32.mrb[0].mxu0
        %v2840 = vadd.f32 %v638, %v2839
        %v2841 = vpop.f32.mrb[0].mxu0
        %v2842 = vadd.f32 %v642, %v2841
        %v2843 = vpop.f32.mrb[0].mxu0
        %v2844 = vpop.f32.mrb[0].mxu0
        %2845 = vdwg.mxu0
        %2846 = vmatprep.subr.bf16.mxu0 %v1562
        %2847 = vmatpush1.bf16.msra.mxu0 %v1561
        %2848 = vmatprep.subr.bf16.mxu0 %v1658
        %2849 = vmatpush1.bf16.msra.mxu0 %v1657
        %2850 = vmatprep.subr.bf16.mxu0 0
        %2851 = vmatpush1.bf16.msra.mxu0 0
        %2852 = vmatprep.subr.bf16.mxu0 0
        %2853 = vmatpush1.bf16.msra.mxu0 0
        %2854 = vmatprep.subr.bf16.mxu0 0
        %2855 = vmatpush1.bf16.msra.mxu0 0
        %2856 = vmatprep.subr.bf16.mxu0 0
        %2857 = vmatpush1.bf16.msra.mxu0 0
        %2858 = vmatprep.subr.bf16.mxu0 0
        %2859 = vmatpush1.bf16.msra.mxu0 0
        %2860 = vmatprep.subr.bf16.mxu0 0
        %2861 = vmatpush1.bf16.msra.mxu0 0
        %2862 = vmatprep.subr.bf16.mxu0 0
        %2863 = vmatpush1.bf16.msra.mxu0 0
        %2864 = vmatprep.subr.bf16.mxu0 0
        %2865 = vmatpush1.bf16.msra.mxu0 0
        %2866 = vmatprep.subr.bf16.mxu0 0
        %2867 = vmatpush1.bf16.msra.mxu0 0
        %2868 = vmatprep.subr.bf16.mxu0 0
        %2869 = vmatpush1.bf16.msra.mxu0 0
        %2870 = vmatprep.subr.bf16.mxu0 0
        %2871 = vmatpush1.bf16.msra.mxu0 0
        %2872 = vmatprep.subr.bf16.mxu0 0
        %2873 = vmatpush1.bf16.msra.mxu0 0
        %2874 = vmatprep.subr.bf16.mxu0 0
        %2875 = vmatpush1.bf16.msra.mxu0 0
        %2876 = vmatprep.subr.bf16.mxu0 0
        %2877 = vmatpush1.bf16.msra.mxu0 0
        %2878 = vmatprep.mubr.bf16.mxu0 0
        %2879 = vmatmul.mubr.bf16.gmra.mrb[0].mxu0 %v1901
        %v2880 = vpop.f32.mrb[0].mxu0
        %v2881 = vadd.f32 %v646, %v2880
        %v2882 = vpop.f32.mrb[0].mxu0
        %v2883 = vadd.f32 %v650, %v2882
        %v2884 = vpop.f32.mrb[0].mxu0
        %v2885 = vpop.f32.mrb[0].mxu0
        %2886 = vdwg.mxu0
        %2887 = vmatprep.subr.bf16.mxu0 %v1564
        %2888 = vmatpush1.bf16.msra.mxu0 %v1563
        %2889 = vmatprep.subr.bf16.mxu0 %v1660
        %2890 = vmatpush1.bf16.msra.mxu0 %v1659
        %2891 = vmatprep.subr.bf16.mxu0 0
        %2892 = vmatpush1.bf16.msra.mxu0 0
        %2893 = vmatprep.subr.bf16.mxu0 0
        %2894 = vmatpush1.bf16.msra.mxu0 0
        %2895 = vmatprep.subr.bf16.mxu0 0
        %2896 = vmatpush1.bf16.msra.mxu0 0
        %2897 = vmatprep.subr.bf16.mxu0 0
        %2898 = vmatpush1.bf16.msra.mxu0 0
        %2899 = vmatprep.subr.bf16.mxu0 0
        %2900 = vmatpush1.bf16.msra.mxu0 0
        %2901 = vmatprep.subr.bf16.mxu0 0
        %2902 = vmatpush1.bf16.msra.mxu0 0
        %2903 = vmatprep.subr.bf16.mxu0 0
        %2904 = vmatpush1.bf16.msra.mxu0 0
        %2905 = vmatprep.subr.bf16.mxu0 0
        %2906 = vmatpush1.bf16.msra.mxu0 0
        %2907 = vmatprep.subr.bf16.mxu0 0
        %2908 = vmatpush1.bf16.msra.mxu0 0
        %2909 = vmatprep.subr.bf16.mxu0 0
        %2910 = vmatpush1.bf16.msra.mxu0 0
        %2911 = vmatprep.subr.bf16.mxu0 0
        %2912 = vmatpush1.bf16.msra.mxu0 0
        %2913 = vmatprep.subr.bf16.mxu0 0
        %2914 = vmatpush1.bf16.msra.mxu0 0
        %2915 = vmatprep.subr.bf16.mxu0 0
        %2916 = vmatpush1.bf16.msra.mxu0 0
        %2917 = vmatprep.subr.bf16.mxu0 0
        %2918 = vmatpush1.bf16.msra.mxu0 0
        %2919 = vmatprep.mubr.bf16.mxu0 0
        %2920 = vmatmul.mubr.bf16.gmra.mrb[0].mxu0 %v1901
        %v2921 = vpop.f32.mrb[0].mxu0
        %v2922 = vadd.f32 %v654, %v2921
        %v2923 = vpop.f32.mrb[0].mxu0
        %v2924 = vadd.f32 %v658, %v2923
        %v2925 = vpop.f32.mrb[0].mxu0
        %v2926 = vpop.f32.mrb[0].mxu0
        %2927 = vdwg.mxu0
        %2928 = vmatprep.subr.bf16.mxu0 %v1566
        %2929 = vmatpush1.bf16.msra.mxu0 %v1565
        %2930 = vmatprep.subr.bf16.mxu0 %v1662
        %2931 = vmatpush1.bf16.msra.mxu0 %v1661
        %2932 = vmatprep.subr.bf16.mxu0 0
        %2933 = vmatpush1.bf16.msra.mxu0 0
        %2934 = vmatprep.subr.bf16.mxu0 0
        %2935 = vmatpush1.bf16.msra.mxu0 0
        %2936 = vmatprep.subr.bf16.mxu0 0
        %2937 = vmatpush1.bf16.msra.mxu0 0
        %2938 = vmatprep.subr.bf16.mxu0 0
        %2939 = vmatpush1.bf16.msra.mxu0 0
        %2940 = vmatprep.subr.bf16.mxu0 0
        %2941 = vmatpush1.bf16.msra.mxu0 0
        %2942 = vmatprep.subr.bf16.mxu0 0
        %2943 = vmatpush1.bf16.msra.mxu0 0
        %2944 = vmatprep.subr.bf16.mxu0 0
        %2945 = vmatpush1.bf16.msra.mxu0 0
        %2946 = vmatprep.subr.bf16.mxu0 0
        %2947 = vmatpush1.bf16.msra.mxu0 0
        %2948 = vmatprep.subr.bf16.mxu0 0
        %2949 = vmatpush1.bf16.msra.mxu0 0
        %2950 = vmatprep.subr.bf16.mxu0 0
        %2951 = vmatpush1.bf16.msra.mxu0 0
        %2952 = vmatprep.subr.bf16.mxu0 0
        %2953 = vmatpush1.bf16.msra.mxu0 0
        %2954 = vmatprep.subr.bf16.mxu0 0
        %2955 = vmatpush1.bf16.msra.mxu0 0
        %2956 = vmatprep.subr.bf16.mxu0 0
        %2957 = vmatpush1.bf16.msra.mxu0 0
        %2958 = vmatprep.subr.bf16.mxu0 0
        %2959 = vmatpush1.bf16.msra.mxu0 0
        %2960 = vmatprep.mubr.bf16.mxu0 0
        %2961 = vmatmul.mubr.bf16.gmra.mrb[0].mxu0 %v1901
        %v2962 = vpop.f32.mrb[0].mxu0
        %v2963 = vadd.f32 %v662, %v2962
        %v2964 = vpop.f32.mrb[0].mxu0
        %v2965 = vadd.f32 %v666, %v2964
        %v2966 = vpop.f32.mrb[0].mxu0
        %v2967 = vpop.f32.mrb[0].mxu0
        %2968 = vdwg.mxu0
        %2969 = vmatprep.subr.bf16.mxu0 %v1568
        %2970 = vmatpush1.bf16.msra.mxu0 %v1567
        %2971 = vmatprep.subr.bf16.mxu0 %v1664
        %2972 = vmatpush1.bf16.msra.mxu0 %v1663
        %2973 = vmatprep.subr.bf16.mxu0 0
        %2974 = vmatpush1.bf16.msra.mxu0 0
        %2975 = vmatprep.subr.bf16.mxu0 0
        %2976 = vmatpush1.bf16.msra.mxu0 0
        %2977 = vmatprep.subr.bf16.mxu0 0
        %2978 = vmatpush1.bf16.msra.mxu0 0
        %2979 = vmatprep.subr.bf16.mxu0 0
        %2980 = vmatpush1.bf16.msra.mxu0 0
        %2981 = vmatprep.subr.bf16.mxu0 0
        %2982 = vmatpush1.bf16.msra.mxu0 0
        %2983 = vmatprep.subr.bf16.mxu0 0
        %2984 = vmatpush1.bf16.msra.mxu0 0
        %2985 = vmatprep.subr.bf16.mxu0 0
        %2986 = vmatpush1.bf16.msra.mxu0 0
        %2987 = vmatprep.subr.bf16.mxu0 0
        %2988 = vmatpush1.bf16.msra.mxu0 0
        %2989 = vmatprep.subr.bf16.mxu0 0
        %2990 = vmatpush1.bf16.msra.mxu0 0
        %2991 = vmatprep.subr.bf16.mxu0 0
        %2992 = vmatpush1.bf16.msra.mxu0 0
        %2993 = vmatprep.subr.bf16.mxu0 0
        %2994 = vmatpush1.bf16.msra.mxu0 0
        %2995 = vmatprep.subr.bf16.mxu0 0
        %2996 = vmatpush1.bf16.msra.mxu0 0
        %2997 = vmatprep.subr.bf16.mxu0 0
        %2998 = vmatpush1.bf16.msra.mxu0 0
        %2999 = vmatprep.subr.bf16.mxu0 0
        %3000 = vmatpush1.bf16.msra.mxu0 0
        %3001 = vmatprep.mubr.bf16.mxu0 0
        %3002 = vmatmul.mubr.bf16.gmra.mrb[0].mxu0 %v1901
        %v3003 = vpop.f32.mrb[0].mxu0
        %v3004 = vadd.f32 %v670, %v3003
        %v3005 = vpop.f32.mrb[0].mxu0
        %v3006 = vadd.f32 %v674, %v3005
        %v3007 = vpop.f32.mrb[0].mxu0
        %v3008 = vpop.f32.mrb[0].mxu0
        %3009 = vdwg.mxu0
        %3010 = vmatprep.subr.bf16.mxu0 %v1570
        %3011 = vmatpush1.bf16.msra.mxu0 %v1569
        %3012 = vmatprep.subr.bf16.mxu0 %v1666
        %3013 = vmatpush1.bf16.msra.mxu0 %v1665
        %3014 = vmatprep.subr.bf16.mxu0 0
        %3015 = vmatpush1.bf16.msra.mxu0 0
        %3016 = vmatprep.subr.bf16.mxu0 0
        %3017 = vmatpush1.bf16.msra.mxu0 0
        %3018 = vmatprep.subr.bf16.mxu0 0
        %3019 = vmatpush1.bf16.msra.mxu0 0
        %3020 = vmatprep.subr.bf16.mxu0 0
        %3021 = vmatpush1.bf16.msra.mxu0 0
        %3022 = vmatprep.subr.bf16.mxu0 0
        %3023 = vmatpush1.bf16.msra.mxu0 0
        %3024 = vmatprep.subr.bf16.mxu0 0
        %3025 = vmatpush1.bf16.msra.mxu0 0
        %3026 = vmatprep.subr.bf16.mxu0 0
        %3027 = vmatpush1.bf16.msra.mxu0 0
        %3028 = vmatprep.subr.bf16.mxu0 0
        %3029 = vmatpush1.bf16.msra.mxu0 0
        %3030 = vmatprep.subr.bf16.mxu0 0
        %3031 = vmatpush1.bf16.msra.mxu0 0
        %3032 = vmatprep.subr.bf16.mxu0 0
        %3033 = vmatpush1.bf16.msra.mxu0 0
        %3034 = vmatprep.subr.bf16.mxu0 0
        %3035 = vmatpush1.bf16.msra.mxu0 0
        %3036 = vmatprep.subr.bf16.mxu0 0
        %3037 = vmatpush1.bf16.msra.mxu0 0
        %3038 = vmatprep.subr.bf16.mxu0 0
        %3039 = vmatpush1.bf16.msra.mxu0 0
        %3040 = vmatprep.subr.bf16.mxu0 0
        %3041 = vmatpush1.bf16.msra.mxu0 0
        %3042 = vmatprep.mubr.bf16.mxu0 0
        %3043 = vmatmul.mubr.bf16.gmra.mrb[0].mxu0 %v1901
        %v3044 = vpop.f32.mrb[0].mxu0
        %v3045 = vadd.f32 %v678, %v3044
        %v3046 = vpop.f32.mrb[0].mxu0
        %v3047 = vadd.f32 %v682, %v3046
        %v3048 = vpop.f32.mrb[0].mxu0
        %v3049 = vpop.f32.mrb[0].mxu0
        %3050 = vdwg.mxu0
        %3051 = vmatprep.subr.bf16.mxu0 %v1572
        %3052 = vmatpush1.bf16.msra.mxu0 %v1571
        %3053 = vmatprep.subr.bf16.mxu0 %v1668
        %3054 = vmatpush1.bf16.msra.mxu0 %v1667
        %3055 = vmatprep.subr.bf16.mxu0 0
        %3056 = vmatpush1.bf16.msra.mxu0 0
        %3057 = vmatprep.subr.bf16.mxu0 0
        %3058 = vmatpush1.bf16.msra.mxu0 0
        %3059 = vmatprep.subr.bf16.mxu0 0
        %3060 = vmatpush1.bf16.msra.mxu0 0
        %3061 = vmatprep.subr.bf16.mxu0 0
        %3062 = vmatpush1.bf16.msra.mxu0 0
        %3063 = vmatprep.subr.bf16.mxu0 0
        %3064 = vmatpush1.bf16.msra.mxu0 0
        %3065 = vmatprep.subr.bf16.mxu0 0
        %3066 = vmatpush1.bf16.msra.mxu0 0
        %3067 = vmatprep.subr.bf16.mxu0 0
        %3068 = vmatpush1.bf16.msra.mxu0 0
        %3069 = vmatprep.subr.bf16.mxu0 0
        %3070 = vmatpush1.bf16.msra.mxu0 0
        %3071 = vmatprep.subr.bf16.mxu0 0
        %3072 = vmatpush1.bf16.msra.mxu0 0
        %3073 = vmatprep.subr.bf16.mxu0 0
        %3074 = vmatpush1.bf16.msra.mxu0 0
        %3075 = vmatprep.subr.bf16.mxu0 0
        %3076 = vmatpush1.bf16.msra.mxu0 0
        %3077 = vmatprep.subr.bf16.mxu0 0
        %3078 = vmatpush1.bf16.msra.mxu0 0
        %3079 = vmatprep.subr.bf16.mxu0 0
        %3080 = vmatpush1.bf16.msra.mxu0 0
        %3081 = vmatprep.subr.bf16.mxu0 0
        %3082 = vmatpush1.bf16.msra.mxu0 0
        %3083 = vmatprep.mubr.bf16.mxu0 0
        %3084 = vmatmul.mubr.bf16.gmra.mrb[0].mxu0 %v1901
        %v3085 = vpop.f32.mrb[0].mxu0
        %v3086 = vadd.f32 %v686, %v3085
        %v3087 = vpop.f32.mrb[0].mxu0
        %v3088 = vadd.f32 %v690, %v3087
        %v3089 = vpop.f32.mrb[0].mxu0
        %v3090 = vpop.f32.mrb[0].mxu0
        %3091 = vdwg.mxu0
        %3092 = vmatprep.subr.bf16.mxu0 %v1574
        %3093 = vmatpush1.bf16.msra.mxu0 %v1573
        %3094 = vmatprep.subr.bf16.mxu0 %v1670
        %3095 = vmatpush1.bf16.msra.mxu0 %v1669
        %3096 = vmatprep.subr.bf16.mxu0 0
        %3097 = vmatpush1.bf16.msra.mxu0 0
        %3098 = vmatprep.subr.bf16.mxu0 0
        %3099 = vmatpush1.bf16.msra.mxu0 0
        %3100 = vmatprep.subr.bf16.mxu0 0
        %3101 = vmatpush1.bf16.msra.mxu0 0
        %3102 = vmatprep.subr.bf16.mxu0 0
        %3103 = vmatpush1.bf16.msra.mxu0 0
        %3104 = vmatprep.subr.bf16.mxu0 0
        %3105 = vmatpush1.bf16.msra.mxu0 0
        %3106 = vmatprep.subr.bf16.mxu0 0
        %3107 = vmatpush1.bf16.msra.mxu0 0
        %3108 = vmatprep.subr.bf16.mxu0 0
        %3109 = vmatpush1.bf16.msra.mxu0 0
        %3110 = vmatprep.subr.bf16.mxu0 0
        %3111 = vmatpush1.bf16.msra.mxu0 0
        %3112 = vmatprep.subr.bf16.mxu0 0
        %3113 = vmatpush1.bf16.msra.mxu0 0
        %3114 = vmatprep.subr.bf16.mxu0 0
        %3115 = vmatpush1.bf16.msra.mxu0 0
        %3116 = vmatprep.subr.bf16.mxu0 0
        %3117 = vmatpush1.bf16.msra.mxu0 0
        %3118 = vmatprep.subr.bf16.mxu0 0
        %3119 = vmatpush1.bf16.msra.mxu0 0
        %3120 = vmatprep.subr.bf16.mxu0 0
        %3121 = vmatpush1.bf16.msra.mxu0 0
        %3122 = vmatprep.subr.bf16.mxu0 0
        %3123 = vmatpush1.bf16.msra.mxu0 0
        %3124 = vmatprep.mubr.bf16.mxu0 0
        %3125 = vmatmul.mubr.bf16.gmra.mrb[0].mxu0 %v1901
        %v3126 = vpop.f32.mrb[0].mxu0
        %v3127 = vadd.f32 %v694, %v3126
        %v3128 = vpop.f32.mrb[0].mxu0
        %v3129 = vadd.f32 %v698, %v3128
        %v3130 = vpop.f32.mrb[0].mxu0
        %v3131 = vpop.f32.mrb[0].mxu0
        %3132 = vdwg.mxu0
        %3133 = vmatprep.subr.bf16.mxu0 %v1576
        %3134 = vmatpush1.bf16.msra.mxu0 %v1575
        %3135 = vmatprep.subr.bf16.mxu0 %v1672
        %3136 = vmatpush1.bf16.msra.mxu0 %v1671
        %3137 = vmatprep.subr.bf16.mxu0 0
        %3138 = vmatpush1.bf16.msra.mxu0 0
        %3139 = vmatprep.subr.bf16.mxu0 0
        %3140 = vmatpush1.bf16.msra.mxu0 0
        %3141 = vmatprep.subr.bf16.mxu0 0
        %3142 = vmatpush1.bf16.msra.mxu0 0
        %3143 = vmatprep.subr.bf16.mxu0 0
        %3144 = vmatpush1.bf16.msra.mxu0 0
        %3145 = vmatprep.subr.bf16.mxu0 0
        %3146 = vmatpush1.bf16.msra.mxu0 0
        %3147 = vmatprep.subr.bf16.mxu0 0
        %3148 = vmatpush1.bf16.msra.mxu0 0
        %3149 = vmatprep.subr.bf16.mxu0 0
        %3150 = vmatpush1.bf16.msra.mxu0 0
        %3151 = vmatprep.subr.bf16.mxu0 0
        %3152 = vmatpush1.bf16.msra.mxu0 0
        %3153 = vmatprep.subr.bf16.mxu0 0
        %3154 = vmatpush1.bf16.msra.mxu0 0
        %3155 = vmatprep.subr.bf16.mxu0 0
        %3156 = vmatpush1.bf16.msra.mxu0 0
        %3157 = vmatprep.subr.bf16.mxu0 0
        %3158 = vmatpush1.bf16.msra.mxu0 0
        %3159 = vmatprep.subr.bf16.mxu0 0
        %3160 = vmatpush1.bf16.msra.mxu0 0
        %3161 = vmatprep.subr.bf16.mxu0 0
        %3162 = vmatpush1.bf16.msra.mxu0 0
        %3163 = vmatprep.subr.bf16.mxu0 0
        %3164 = vmatpush1.bf16.msra.mxu0 0
        %3165 = vmatprep.mubr.bf16.mxu0 0
        %3166 = vmatmul.mubr.bf16.gmra.mrb[0].mxu0 %v1901
        %v3167 = vpop.f32.mrb[0].mxu0
        %v3168 = vadd.f32 %v702, %v3167
        %v3169 = vpop.f32.mrb[0].mxu0
        %v3170 = vadd.f32 %v706, %v3169
        %v3171 = vpop.f32.mrb[0].mxu0
        %v3172 = vpop.f32.mrb[0].mxu0
        %3173 = vdwg.mxu0
        %3174 = vmatprep.subr.bf16.mxu0 %v1578
        %3175 = vmatpush1.bf16.msra.mxu0 %v1577
        %3176 = vmatprep.subr.bf16.mxu0 %v1674
        %3177 = vmatpush1.bf16.msra.mxu0 %v1673
        %3178 = vmatprep.subr.bf16.mxu0 0
        %3179 = vmatpush1.bf16.msra.mxu0 0
        %3180 = vmatprep.subr.bf16.mxu0 0
        %3181 = vmatpush1.bf16.msra.mxu0 0
        %3182 = vmatprep.subr.bf16.mxu0 0
        %3183 = vmatpush1.bf16.msra.mxu0 0
        %3184 = vmatprep.subr.bf16.mxu0 0
        %3185 = vmatpush1.bf16.msra.mxu0 0
        %3186 = vmatprep.subr.bf16.mxu0 0
        %3187 = vmatpush1.bf16.msra.mxu0 0
        %3188 = vmatprep.subr.bf16.mxu0 0
        %3189 = vmatpush1.bf16.msra.mxu0 0
        %3190 = vmatprep.subr.bf16.mxu0 0
        %3191 = vmatpush1.bf16.msra.mxu0 0
        %3192 = vmatprep.subr.bf16.mxu0 0
        %3193 = vmatpush1.bf16.msra.mxu0 0
        %3194 = vmatprep.subr.bf16.mxu0 0
        %3195 = vmatpush1.bf16.msra.mxu0 0
        %3196 = vmatprep.subr.bf16.mxu0 0
        %3197 = vmatpush1.bf16.msra.mxu0 0
        %3198 = vmatprep.subr.bf16.mxu0 0
        %3199 = vmatpush1.bf16.msra.mxu0 0
        %3200 = vmatprep.subr.bf16.mxu0 0
        %3201 = vmatpush1.bf16.msra.mxu0 0
        %3202 = vmatprep.subr.bf16.mxu0 0
        %3203 = vmatpush1.bf16.msra.mxu0 0
        %3204 = vmatprep.subr.bf16.mxu0 0
        %3205 = vmatpush1.bf16.msra.mxu0 0
        %3206 = vmatprep.mubr.bf16.mxu0 0
        %3207 = vmatmul.mubr.bf16.gmra.mrb[0].mxu0 %v1901
        %v3208 = vpop.f32.mrb[0].mxu0
        %v3209 = vadd.f32 %v710, %v3208
        %v3210 = vpop.f32.mrb[0].mxu0
        %v3211 = vadd.f32 %v714, %v3210
        %v3212 = vpop.f32.mrb[0].mxu0
        %v3213 = vpop.f32.mrb[0].mxu0
        %3214 = vdwg.mxu0
        %3215 = vmatprep.subr.bf16.mxu0 %v1580
        %3216 = vmatpush1.bf16.msra.mxu0 %v1579
        %3217 = vmatprep.subr.bf16.mxu0 %v1676
        %3218 = vmatpush1.bf16.msra.mxu0 %v1675
        %3219 = vmatprep.subr.bf16.mxu0 0
        %3220 = vmatpush1.bf16.msra.mxu0 0
        %3221 = vmatprep.subr.bf16.mxu0 0
        %3222 = vmatpush1.bf16.msra.mxu0 0
        %3223 = vmatprep.subr.bf16.mxu0 0
        %3224 = vmatpush1.bf16.msra.mxu0 0
        %3225 = vmatprep.subr.bf16.mxu0 0
        %3226 = vmatpush1.bf16.msra.mxu0 0
        %3227 = vmatprep.subr.bf16.mxu0 0
        %3228 = vmatpush1.bf16.msra.mxu0 0
        %3229 = vmatprep.subr.bf16.mxu0 0
        %3230 = vmatpush1.bf16.msra.mxu0 0
        %3231 = vmatprep.subr.bf16.mxu0 0
        %3232 = vmatpush1.bf16.msra.mxu0 0
        %3233 = vmatprep.subr.bf16.mxu0 0
        %3234 = vmatpush1.bf16.msra.mxu0 0
        %3235 = vmatprep.subr.bf16.mxu0 0
        %3236 = vmatpush1.bf16.msra.mxu0 0
        %3237 = vmatprep.subr.bf16.mxu0 0
        %3238 = vmatpush1.bf16.msra.mxu0 0
        %3239 = vmatprep.subr.bf16.mxu0 0
        %3240 = vmatpush1.bf16.msra.mxu0 0
        %3241 = vmatprep.subr.bf16.mxu0 0
        %3242 = vmatpush1.bf16.msra.mxu0 0
        %3243 = vmatprep.subr.bf16.mxu0 0
        %3244 = vmatpush1.bf16.msra.mxu0 0
        %3245 = vmatprep.subr.bf16.mxu0 0
        %3246 = vmatpush1.bf16.msra.mxu0 0
        %3247 = vmatprep.mubr.bf16.mxu0 0
        %3248 = vmatmul.mubr.bf16.gmra.mrb[0].mxu0 %v1901
        %v3249 = vpop.f32.mrb[0].mxu0
        %v3250 = vadd.f32 %v718, %v3249
        %v3251 = vpop.f32.mrb[0].mxu0
        %v3252 = vadd.f32 %v722, %v3251
        %v3253 = vpop.f32.mrb[0].mxu0
        %v3254 = vpop.f32.mrb[0].mxu0
        %3255 = vdwg.mxu0
        %3256 = vmatprep.subr.bf16.mxu0 %v1582
        %3257 = vmatpush1.bf16.msra.mxu0 %v1581
        %3258 = vmatprep.subr.bf16.mxu0 %v1678
        %3259 = vmatpush1.bf16.msra.mxu0 %v1677
        %3260 = vmatprep.subr.bf16.mxu0 0
        %3261 = vmatpush1.bf16.msra.mxu0 0
        %3262 = vmatprep.subr.bf16.mxu0 0
        %3263 = vmatpush1.bf16.msra.mxu0 0
        %3264 = vmatprep.subr.bf16.mxu0 0
        %3265 = vmatpush1.bf16.msra.mxu0 0
        %3266 = vmatprep.subr.bf16.mxu0 0
        %3267 = vmatpush1.bf16.msra.mxu0 0
        %3268 = vmatprep.subr.bf16.mxu0 0
        %3269 = vmatpush1.bf16.msra.mxu0 0
        %3270 = vmatprep.subr.bf16.mxu0 0
        %3271 = vmatpush1.bf16.msra.mxu0 0
        %3272 = vmatprep.subr.bf16.mxu0 0
        %3273 = vmatpush1.bf16.msra.mxu0 0
        %3274 = vmatprep.subr.bf16.mxu0 0
        %3275 = vmatpush1.bf16.msra.mxu0 0
        %3276 = vmatprep.subr.bf16.mxu0 0
        %3277 = vmatpush1.bf16.msra.mxu0 0
        %3278 = vmatprep.subr.bf16.mxu0 0
        %3279 = vmatpush1.bf16.msra.mxu0 0
        %3280 = vmatprep.subr.bf16.mxu0 0
        %3281 = vmatpush1.bf16.msra.mxu0 0
        %3282 = vmatprep.subr.bf16.mxu0 0
        %3283 = vmatpush1.bf16.msra.mxu0 0
        %3284 = vmatprep.subr.bf16.mxu0 0
        %3285 = vmatpush1.bf16.msra.mxu0 0
        %3286 = vmatprep.subr.bf16.mxu0 0
        %3287 = vmatpush1.bf16.msra.mxu0 0
        %3288 = vmatprep.mubr.bf16.mxu0 0
        %3289 = vmatmul.mubr.bf16.gmra.mrb[0].mxu0 %v1901
        %v3290 = vpop.f32.mrb[0].mxu0
        %v3291 = vadd.f32 %v726, %v3290
        %v3292 = vpop.f32.mrb[0].mxu0
        %v3293 = vadd.f32 %v730, %v3292
        %v3294 = vpop.f32.mrb[0].mxu0
        %v3295 = vpop.f32.mrb[0].mxu0
        %3296 = vdwg.mxu0
        %3297 = vmatprep.subr.bf16.mxu0 %v1584
        %3298 = vmatpush1.bf16.msra.mxu0 %v1583
        %3299 = vmatprep.subr.bf16.mxu0 %v1680
        %3300 = vmatpush1.bf16.msra.mxu0 %v1679
        %3301 = vmatprep.subr.bf16.mxu0 0
        %3302 = vmatpush1.bf16.msra.mxu0 0
        %3303 = vmatprep.subr.bf16.mxu0 0
        %3304 = vmatpush1.bf16.msra.mxu0 0
        %3305 = vmatprep.subr.bf16.mxu0 0
        %3306 = vmatpush1.bf16.msra.mxu0 0
        %3307 = vmatprep.subr.bf16.mxu0 0
        %3308 = vmatpush1.bf16.msra.mxu0 0
        %3309 = vmatprep.subr.bf16.mxu0 0
        %3310 = vmatpush1.bf16.msra.mxu0 0
        %3311 = vmatprep.subr.bf16.mxu0 0
        %3312 = vmatpush1.bf16.msra.mxu0 0
        %3313 = vmatprep.subr.bf16.mxu0 0
        %3314 = vmatpush1.bf16.msra.mxu0 0
        %3315 = vmatprep.subr.bf16.mxu0 0
        %3316 = vmatpush1.bf16.msra.mxu0 0
        %3317 = vmatprep.subr.bf16.mxu0 0
        %3318 = vmatpush1.bf16.msra.mxu0 0
        %3319 = vmatprep.subr.bf16.mxu0 0
        %3320 = vmatpush1.bf16.msra.mxu0 0
        %3321 = vmatprep.subr.bf16.mxu0 0
        %3322 = vmatpush1.bf16.msra.mxu0 0
        %3323 = vmatprep.subr.bf16.mxu0 0
        %3324 = vmatpush1.bf16.msra.mxu0 0
        %3325 = vmatprep.subr.bf16.mxu0 0
        %3326 = vmatpush1.bf16.msra.mxu0 0
        %3327 = vmatprep.subr.bf16.mxu0 0
        %3328 = vmatpush1.bf16.msra.mxu0 0
        %3329 = vmatprep.mubr.bf16.mxu0 0
        %3330 = vmatmul.mubr.bf16.gmra.mrb[0].mxu0 %v1901
        %v3331 = vpop.f32.mrb[0].mxu0
        %v3332 = vadd.f32 %v734, %v3331
        %v3333 = vpop.f32.mrb[0].mxu0
        %v3334 = vadd.f32 %v738, %v3333
        %v3335 = vpop.f32.mrb[0].mxu0
        %v3336 = vpop.f32.mrb[0].mxu0
        %3337 = vdwg.mxu0
        %3338 = vmatprep.subr.bf16.mxu0 %v1586
        %3339 = vmatpush1.bf16.msra.mxu0 %v1585
        %3340 = vmatprep.subr.bf16.mxu0 %v1682
        %3341 = vmatpush1.bf16.msra.mxu0 %v1681
        %3342 = vmatprep.subr.bf16.mxu0 0
        %3343 = vmatpush1.bf16.msra.mxu0 0
        %3344 = vmatprep.subr.bf16.mxu0 0
        %3345 = vmatpush1.bf16.msra.mxu0 0
        %3346 = vmatprep.subr.bf16.mxu0 0
        %3347 = vmatpush1.bf16.msra.mxu0 0
        %3348 = vmatprep.subr.bf16.mxu0 0
        %3349 = vmatpush1.bf16.msra.mxu0 0
        %3350 = vmatprep.subr.bf16.mxu0 0
        %3351 = vmatpush1.bf16.msra.mxu0 0
        %3352 = vmatprep.subr.bf16.mxu0 0
        %3353 = vmatpush1.bf16.msra.mxu0 0
        %3354 = vmatprep.subr.bf16.mxu0 0
        %3355 = vmatpush1.bf16.msra.mxu0 0
        %3356 = vmatprep.subr.bf16.mxu0 0
        %3357 = vmatpush1.bf16.msra.mxu0 0
        %3358 = vmatprep.subr.bf16.mxu0 0
        %3359 = vmatpush1.bf16.msra.mxu0 0
        %3360 = vmatprep.subr.bf16.mxu0 0
        %3361 = vmatpush1.bf16.msra.mxu0 0
        %3362 = vmatprep.subr.bf16.mxu0 0
        %3363 = vmatpush1.bf16.msra.mxu0 0
        %3364 = vmatprep.subr.bf16.mxu0 0
        %3365 = vmatpush1.bf16.msra.mxu0 0
        %3366 = vmatprep.subr.bf16.mxu0 0
        %3367 = vmatpush1.bf16.msra.mxu0 0
        %3368 = vmatprep.subr.bf16.mxu0 0
        %3369 = vmatpush1.bf16.msra.mxu0 0
        %3370 = vmatprep.mubr.bf16.mxu0 0
        %3371 = vmatmul.mubr.bf16.gmra.mrb[0].mxu0 %v1901
        %v3372 = vpop.f32.mrb[0].mxu0
        %v3373 = vadd.f32 %v742, %v3372
        %v3374 = vpop.f32.mrb[0].mxu0
        %v3375 = vadd.f32 %v746, %v3374
        %v3376 = vpop.f32.mrb[0].mxu0
        %v3377 = vpop.f32.mrb[0].mxu0
        %3378 = vdwg.mxu0
        %3379 = vmatprep.subr.bf16.mxu0 %v1588
        %3380 = vmatpush1.bf16.msra.mxu0 %v1587
        %3381 = vmatprep.subr.bf16.mxu0 %v1684
        %3382 = vmatpush1.bf16.msra.mxu0 %v1683
        %3383 = vmatprep.subr.bf16.mxu0 0
        %3384 = vmatpush1.bf16.msra.mxu0 0
        %3385 = vmatprep.subr.bf16.mxu0 0
        %3386 = vmatpush1.bf16.msra.mxu0 0
        %3387 = vmatprep.subr.bf16.mxu0 0
        %3388 = vmatpush1.bf16.msra.mxu0 0
        %3389 = vmatprep.subr.bf16.mxu0 0
        %3390 = vmatpush1.bf16.msra.mxu0 0
        %3391 = vmatprep.subr.bf16.mxu0 0
        %3392 = vmatpush1.bf16.msra.mxu0 0
        %3393 = vmatprep.subr.bf16.mxu0 0
        %3394 = vmatpush1.bf16.msra.mxu0 0
        %3395 = vmatprep.subr.bf16.mxu0 0
        %3396 = vmatpush1.bf16.msra.mxu0 0
        %3397 = vmatprep.subr.bf16.mxu0 0
        %3398 = vmatpush1.bf16.msra.mxu0 0
        %3399 = vmatprep.subr.bf16.mxu0 0
        %3400 = vmatpush1.bf16.msra.mxu0 0
        %3401 = vmatprep.subr.bf16.mxu0 0
        %3402 = vmatpush1.bf16.msra.mxu0 0
        %3403 = vmatprep.subr.bf16.mxu0 0
        %3404 = vmatpush1.bf16.msra.mxu0 0
        %3405 = vmatprep.subr.bf16.mxu0 0
        %3406 = vmatpush1.bf16.msra.mxu0 0
        %3407 = vmatprep.subr.bf16.mxu0 0
        %3408 = vmatpush1.bf16.msra.mxu0 0
        %3409 = vmatprep.subr.bf16.mxu0 0
        %3410 = vmatpush1.bf16.msra.mxu0 0
        %3411 = vmatprep.mubr.bf16.mxu0 0
        %3412 = vmatmul.mubr.bf16.gmra.mrb[0].mxu0 %v1901
        %v3413 = vpop.f32.mrb[0].mxu0
        %v3414 = vadd.f32 %v750, %v3413
        %v3415 = vpop.f32.mrb[0].mxu0
        %v3416 = vadd.f32 %v754, %v3415
        %v3417 = vpop.f32.mrb[0].mxu0
        %v3418 = vpop.f32.mrb[0].mxu0
        %3419 = vdwg.mxu0
        %3420 = vmatprep.subr.bf16.mxu0 %v1590
        %3421 = vmatpush1.bf16.msra.mxu0 %v1589
        %3422 = vmatprep.subr.bf16.mxu0 %v1686
        %3423 = vmatpush1.bf16.msra.mxu0 %v1685
        %3424 = vmatprep.subr.bf16.mxu0 0
        %3425 = vmatpush1.bf16.msra.mxu0 0
        %3426 = vmatprep.subr.bf16.mxu0 0
        %3427 = vmatpush1.bf16.msra.mxu0 0
        %3428 = vmatprep.subr.bf16.mxu0 0
        %3429 = vmatpush1.bf16.msra.mxu0 0
        %3430 = vmatprep.subr.bf16.mxu0 0
        %3431 = vmatpush1.bf16.msra.mxu0 0
        %3432 = vmatprep.subr.bf16.mxu0 0
        %3433 = vmatpush1.bf16.msra.mxu0 0
        %3434 = vmatprep.subr.bf16.mxu0 0
        %3435 = vmatpush1.bf16.msra.mxu0 0
        %3436 = vmatprep.subr.bf16.mxu0 0
        %3437 = vmatpush1.bf16.msra.mxu0 0
        %3438 = vmatprep.subr.bf16.mxu0 0
        %3439 = vmatpush1.bf16.msra.mxu0 0
        %3440 = vmatprep.subr.bf16.mxu0 0
        %3441 = vmatpush1.bf16.msra.mxu0 0
        %3442 = vmatprep.subr.bf16.mxu0 0
        %3443 = vmatpush1.bf16.msra.mxu0 0
        %3444 = vmatprep.subr.bf16.mxu0 0
        %3445 = vmatpush1.bf16.msra.mxu0 0
        %3446 = vmatprep.subr.bf16.mxu0 0
        %3447 = vmatpush1.bf16.msra.mxu0 0
        %3448 = vmatprep.subr.bf16.mxu0 0
        %3449 = vmatpush1.bf16.msra.mxu0 0
        %3450 = vmatprep.subr.bf16.mxu0 0
        %3451 = vmatpush1.bf16.msra.mxu0 0
        %3452 = vmatprep.mubr.bf16.mxu0 0
        %3453 = vmatmul.mubr.bf16.gmra.mrb[0].mxu0 %v1901
        %v3454 = vpop.f32.mrb[0].mxu0
        %v3455 = vadd.f32 %v758, %v3454
        %v3456 = vpop.f32.mrb[0].mxu0
        %v3457 = vadd.f32 %v762, %v3456
        %v3458 = vpop.f32.mrb[0].mxu0
        %v3459 = vpop.f32.mrb[0].mxu0
        %3460 = vdwg.mxu0
        %3461 = vmatprep.subr.bf16.mxu0 %v1592
        %3462 = vmatpush1.bf16.msra.mxu0 %v1591
        %3463 = vmatprep.subr.bf16.mxu0 %v1688
        %3464 = vmatpush1.bf16.msra.mxu0 %v1687
        %3465 = vmatprep.subr.bf16.mxu0 0
        %3466 = vmatpush1.bf16.msra.mxu0 0
        %3467 = vmatprep.subr.bf16.mxu0 0
        %3468 = vmatpush1.bf16.msra.mxu0 0
        %3469 = vmatprep.subr.bf16.mxu0 0
        %3470 = vmatpush1.bf16.msra.mxu0 0
        %3471 = vmatprep.subr.bf16.mxu0 0
        %3472 = vmatpush1.bf16.msra.mxu0 0
        %3473 = vmatprep.subr.bf16.mxu0 0
        %3474 = vmatpush1.bf16.msra.mxu0 0
        %3475 = vmatprep.subr.bf16.mxu0 0
        %3476 = vmatpush1.bf16.msra.mxu0 0
        %3477 = vmatprep.subr.bf16.mxu0 0
        %3478 = vmatpush1.bf16.msra.mxu0 0
        %3479 = vmatprep.subr.bf16.mxu0 0
        %3480 = vmatpush1.bf16.msra.mxu0 0
        %3481 = vmatprep.subr.bf16.mxu0 0
        %3482 = vmatpush1.bf16.msra.mxu0 0
        %3483 = vmatprep.subr.bf16.mxu0 0
        %3484 = vmatpush1.bf16.msra.mxu0 0
        %3485 = vmatprep.subr.bf16.mxu0 0
        %3486 = vmatpush1.bf16.msra.mxu0 0
        %3487 = vmatprep.subr.bf16.mxu0 0
        %3488 = vmatpush1.bf16.msra.mxu0 0
        %3489 = vmatprep.subr.bf16.mxu0 0
        %3490 = vmatpush1.bf16.msra.mxu0 0
        %3491 = vmatprep.subr.bf16.mxu0 0
        %3492 = vmatpush1.bf16.msra.mxu0 0
        %3493 = vmatprep.mubr.bf16.mxu0 0
        %3494 = vmatmul.mubr.bf16.gmra.mrb[0].mxu0 %v1901
        %v3495 = vpop.f32.mrb[0].mxu0
        %v3496 = vadd.f32 %v766, %v3495
        %v3497 = vpop.f32.mrb[0].mxu0
        %v3498 = vadd.f32 %v770, %v3497
        %v3499 = vpop.f32.mrb[0].mxu0
        %v3500 = vpop.f32.mrb[0].mxu0
        %3501 = vdwg.mxu0
        %3502 = vmatprep.subr.bf16.mxu0 %v1594
        %3503 = vmatpush1.bf16.msra.mxu0 %v1593
        %3504 = vmatprep.subr.bf16.mxu0 %v1690
        %3505 = vmatpush1.bf16.msra.mxu0 %v1689
        %3506 = vmatprep.subr.bf16.mxu0 0
        %3507 = vmatpush1.bf16.msra.mxu0 0
        %3508 = vmatprep.subr.bf16.mxu0 0
        %3509 = vmatpush1.bf16.msra.mxu0 0
        %3510 = vmatprep.subr.bf16.mxu0 0
        %3511 = vmatpush1.bf16.msra.mxu0 0
        %3512 = vmatprep.subr.bf16.mxu0 0
        %3513 = vmatpush1.bf16.msra.mxu0 0
        %3514 = vmatprep.subr.bf16.mxu0 0
        %3515 = vmatpush1.bf16.msra.mxu0 0
        %3516 = vmatprep.subr.bf16.mxu0 0
        %3517 = vmatpush1.bf16.msra.mxu0 0
        %3518 = vmatprep.subr.bf16.mxu0 0
        %3519 = vmatpush1.bf16.msra.mxu0 0
        %3520 = vmatprep.subr.bf16.mxu0 0
        %3521 = vmatpush1.bf16.msra.mxu0 0
        %3522 = vmatprep.subr.bf16.mxu0 0
        %3523 = vmatpush1.bf16.msra.mxu0 0
        %3524 = vmatprep.subr.bf16.mxu0 0
        %3525 = vmatpush1.bf16.msra.mxu0 0
        %3526 = vmatprep.subr.bf16.mxu0 0
        %3527 = vmatpush1.bf16.msra.mxu0 0
        %3528 = vmatprep.subr.bf16.mxu0 0
        %3529 = vmatpush1.bf16.msra.mxu0 0
        %3530 = vmatprep.subr.bf16.mxu0 0
        %3531 = vmatpush1.bf16.msra.mxu0 0
        %3532 = vmatprep.subr.bf16.mxu0 0
        %3533 = vmatpush1.bf16.msra.mxu0 0
        %3534 = vmatprep.mubr.bf16.mxu0 0
        %3535 = vmatmul.mubr.bf16.gmra.mrb[0].mxu0 %v1901
        %v3536 = vpop.f32.mrb[0].mxu0
        %v3537 = vadd.f32 %v774, %v3536
        %v3538 = vpop.f32.mrb[0].mxu0
        %v3539 = vadd.f32 %v778, %v3538
        %v3540 = vpop.f32.mrb[0].mxu0
        %v3541 = vpop.f32.mrb[0].mxu0
        %3542 = vdwg.mxu0
        %3543 = vmatprep.subr.bf16.mxu0 %v1596
        %3544 = vmatpush1.bf16.msra.mxu0 %v1595
        %3545 = vmatprep.subr.bf16.mxu0 %v1692
        %3546 = vmatpush1.bf16.msra.mxu0 %v1691
        %3547 = vmatprep.subr.bf16.mxu0 0
        %3548 = vmatpush1.bf16.msra.mxu0 0
        %3549 = vmatprep.subr.bf16.mxu0 0
        %3550 = vmatpush1.bf16.msra.mxu0 0
        %3551 = vmatprep.subr.bf16.mxu0 0
        %3552 = vmatpush1.bf16.msra.mxu0 0
        %3553 = vmatprep.subr.bf16.mxu0 0
        %3554 = vmatpush1.bf16.msra.mxu0 0
        %3555 = vmatprep.subr.bf16.mxu0 0
        %3556 = vmatpush1.bf16.msra.mxu0 0
        %3557 = vmatprep.subr.bf16.mxu0 0
        %3558 = vmatpush1.bf16.msra.mxu0 0
        %3559 = vmatprep.subr.bf16.mxu0 0
        %3560 = vmatpush1.bf16.msra.mxu0 0
        %3561 = vmatprep.subr.bf16.mxu0 0
        %3562 = vmatpush1.bf16.msra.mxu0 0
        %3563 = vmatprep.subr.bf16.mxu0 0
        %3564 = vmatpush1.bf16.msra.mxu0 0
        %3565 = vmatprep.subr.bf16.mxu0 0
        %3566 = vmatpush1.bf16.msra.mxu0 0
        %3567 = vmatprep.subr.bf16.mxu0 0
        %3568 = vmatpush1.bf16.msra.mxu0 0
        %3569 = vmatprep.subr.bf16.mxu0 0
        %3570 = vmatpush1.bf16.msra.mxu0 0
        %3571 = vmatprep.subr.bf16.mxu0 0
        %3572 = vmatpush1.bf16.msra.mxu0 0
        %3573 = vmatprep.subr.bf16.mxu0 0
        %3574 = vmatpush1.bf16.msra.mxu0 0
        %3575 = vmatprep.mubr.bf16.mxu0 0
        %3576 = vmatmul.mubr.bf16.gmra.mrb[0].mxu0 %v1901
        %v3577 = vpop.f32.mrb[0].mxu0
        %v3578 = vadd.f32 %v782, %v3577
        %v3579 = vpop.f32.mrb[0].mxu0
        %v3580 = vadd.f32 %v786, %v3579
        %v3581 = vpop.f32.mrb[0].mxu0
        %v3582 = vpop.f32.mrb[0].mxu0
        %3583 = vdwg.mxu0
        %3584 = vmatprep.subr.bf16.mxu0 %v1598
        %3585 = vmatpush1.bf16.msra.mxu0 %v1597
        %3586 = vmatprep.subr.bf16.mxu0 %v1694
        %3587 = vmatpush1.bf16.msra.mxu0 %v1693
        %3588 = vmatprep.subr.bf16.mxu0 0
        %3589 = vmatpush1.bf16.msra.mxu0 0
        %3590 = vmatprep.subr.bf16.mxu0 0
        %3591 = vmatpush1.bf16.msra.mxu0 0
        %3592 = vmatprep.subr.bf16.mxu0 0
        %3593 = vmatpush1.bf16.msra.mxu0 0
        %3594 = vmatprep.subr.bf16.mxu0 0
        %3595 = vmatpush1.bf16.msra.mxu0 0
        %3596 = vmatprep.subr.bf16.mxu0 0
        %3597 = vmatpush1.bf16.msra.mxu0 0
        %3598 = vmatprep.subr.bf16.mxu0 0
        %3599 = vmatpush1.bf16.msra.mxu0 0
        %3600 = vmatprep.subr.bf16.mxu0 0
        %3601 = vmatpush1.bf16.msra.mxu0 0
        %3602 = vmatprep.subr.bf16.mxu0 0
        %3603 = vmatpush1.bf16.msra.mxu0 0
        %3604 = vmatprep.subr.bf16.mxu0 0
        %3605 = vmatpush1.bf16.msra.mxu0 0
        %3606 = vmatprep.subr.bf16.mxu0 0
        %3607 = vmatpush1.bf16.msra.mxu0 0
        %3608 = vmatprep.subr.bf16.mxu0 0
        %3609 = vmatpush1.bf16.msra.mxu0 0
        %3610 = vmatprep.subr.bf16.mxu0 0
        %3611 = vmatpush1.bf16.msra.mxu0 0
        %3612 = vmatprep.subr.bf16.mxu0 0
        %3613 = vmatpush1.bf16.msra.mxu0 0
        %3614 = vmatprep.subr.bf16.mxu0 0
        %3615 = vmatpush1.bf16.msra.mxu0 0
        %3616 = vmatprep.mubr.bf16.mxu0 0
        %3617 = vmatmul.mubr.bf16.gmra.mrb[0].mxu0 %v1901
        %v3618 = vpop.f32.mrb[0].mxu0
        %v3619 = vadd.f32 %v790, %v3618
        %v3620 = vpop.f32.mrb[0].mxu0
        %v3621 = vadd.f32 %v794, %v3620
        %v3622 = vpop.f32.mrb[0].mxu0
        %v3623 = vpop.f32.mrb[0].mxu0
        %3624 = vdwg.mxu0
        %3625 = vmatprep.subr.bf16.mxu0 %v1600
        %3626 = vmatpush1.bf16.msra.mxu0 %v1599
        %3627 = vmatprep.subr.bf16.mxu0 %v1696
        %3628 = vmatpush1.bf16.msra.mxu0 %v1695
        %3629 = vmatprep.subr.bf16.mxu0 0
        %3630 = vmatpush1.bf16.msra.mxu0 0
        %3631 = vmatprep.subr.bf16.mxu0 0
        %3632 = vmatpush1.bf16.msra.mxu0 0
        %3633 = vmatprep.subr.bf16.mxu0 0
        %3634 = vmatpush1.bf16.msra.mxu0 0
        %3635 = vmatprep.subr.bf16.mxu0 0
        %3636 = vmatpush1.bf16.msra.mxu0 0
        %3637 = vmatprep.subr.bf16.mxu0 0
        %3638 = vmatpush1.bf16.msra.mxu0 0
        %3639 = vmatprep.subr.bf16.mxu0 0
        %3640 = vmatpush1.bf16.msra.mxu0 0
        %3641 = vmatprep.subr.bf16.mxu0 0
        %3642 = vmatpush1.bf16.msra.mxu0 0
        %3643 = vmatprep.subr.bf16.mxu0 0
        %3644 = vmatpush1.bf16.msra.mxu0 0
        %3645 = vmatprep.subr.bf16.mxu0 0
        %3646 = vmatpush1.bf16.msra.mxu0 0
        %3647 = vmatprep.subr.bf16.mxu0 0
        %3648 = vmatpush1.bf16.msra.mxu0 0
        %3649 = vmatprep.subr.bf16.mxu0 0
        %3650 = vmatpush1.bf16.msra.mxu0 0
        %3651 = vmatprep.subr.bf16.mxu0 0
        %3652 = vmatpush1.bf16.msra.mxu0 0
        %3653 = vmatprep.subr.bf16.mxu0 0
        %3654 = vmatpush1.bf16.msra.mxu0 0
        %3655 = vmatprep.subr.bf16.mxu0 0
        %3656 = vmatpush1.bf16.msra.mxu0 0
        %3657 = vmatprep.mubr.bf16.mxu0 0
        %3658 = vmatmul.mubr.bf16.gmra.mrb[0].mxu0 %v1901
        %v3659 = vpop.f32.mrb[0].mxu0
        %v3660 = vadd.f32 %v798, %v3659
        %v3661 = vpop.f32.mrb[0].mxu0
        %v3662 = vadd.f32 %v802, %v3661
        %v3663 = vpop.f32.mrb[0].mxu0
        %v3664 = vpop.f32.mrb[0].mxu0
        %3665 = vdwg.mxu0
        %3666 = vmatprep.subr.bf16.mxu0 %v1602
        %3667 = vmatpush1.bf16.msra.mxu0 %v1601
        %3668 = vmatprep.subr.bf16.mxu0 %v1698
        %3669 = vmatpush1.bf16.msra.mxu0 %v1697
        %3670 = vmatprep.subr.bf16.mxu0 0
        %3671 = vmatpush1.bf16.msra.mxu0 0
        %3672 = vmatprep.subr.bf16.mxu0 0
        %3673 = vmatpush1.bf16.msra.mxu0 0
        %3674 = vmatprep.subr.bf16.mxu0 0
        %3675 = vmatpush1.bf16.msra.mxu0 0
        %3676 = vmatprep.subr.bf16.mxu0 0
        %3677 = vmatpush1.bf16.msra.mxu0 0
        %3678 = vmatprep.subr.bf16.mxu0 0
        %3679 = vmatpush1.bf16.msra.mxu0 0
        %3680 = vmatprep.subr.bf16.mxu0 0
        %3681 = vmatpush1.bf16.msra.mxu0 0
        %3682 = vmatprep.subr.bf16.mxu0 0
        %3683 = vmatpush1.bf16.msra.mxu0 0
        %3684 = vmatprep.subr.bf16.mxu0 0
        %3685 = vmatpush1.bf16.msra.mxu0 0
        %3686 = vmatprep.subr.bf16.mxu0 0
        %3687 = vmatpush1.bf16.msra.mxu0 0
        %3688 = vmatprep.subr.bf16.mxu0 0
        %3689 = vmatpush1.bf16.msra.mxu0 0
        %3690 = vmatprep.subr.bf16.mxu0 0
        %3691 = vmatpush1.bf16.msra.mxu0 0
        %3692 = vmatprep.subr.bf16.mxu0 0
        %3693 = vmatpush1.bf16.msra.mxu0 0
        %3694 = vmatprep.subr.bf16.mxu0 0
        %3695 = vmatpush1.bf16.msra.mxu0 0
        %3696 = vmatprep.subr.bf16.mxu0 0
        %3697 = vmatpush1.bf16.msra.mxu0 0
        %3698 = vmatprep.mubr.bf16.mxu0 0
        %3699 = vmatmul.mubr.bf16.gmra.mrb[0].mxu0 %v1901
        %v3700 = vpop.f32.mrb[0].mxu0
        %v3701 = vadd.f32 %v806, %v3700
        %v3702 = vpop.f32.mrb[0].mxu0
        %v3703 = vadd.f32 %v810, %v3702
        %v3704 = vpop.f32.mrb[0].mxu0
        %v3705 = vpop.f32.mrb[0].mxu0
        %3706 = vdwg.mxu0
        %3707 = vmatprep.subr.bf16.mxu0 %v1604
        %3708 = vmatpush1.bf16.msra.mxu0 %v1603
        %3709 = vmatprep.subr.bf16.mxu0 %v1700
        %3710 = vmatpush1.bf16.msra.mxu0 %v1699
        %3711 = vmatprep.subr.bf16.mxu0 0
        %3712 = vmatpush1.bf16.msra.mxu0 0
        %3713 = vmatprep.subr.bf16.mxu0 0
        %3714 = vmatpush1.bf16.msra.mxu0 0
        %3715 = vmatprep.subr.bf16.mxu0 0
        %3716 = vmatpush1.bf16.msra.mxu0 0
        %3717 = vmatprep.subr.bf16.mxu0 0
        %3718 = vmatpush1.bf16.msra.mxu0 0
        %3719 = vmatprep.subr.bf16.mxu0 0
        %3720 = vmatpush1.bf16.msra.mxu0 0
        %3721 = vmatprep.subr.bf16.mxu0 0
        %3722 = vmatpush1.bf16.msra.mxu0 0
        %3723 = vmatprep.subr.bf16.mxu0 0
        %3724 = vmatpush1.bf16.msra.mxu0 0
        %3725 = vmatprep.subr.bf16.mxu0 0
        %3726 = vmatpush1.bf16.msra.mxu0 0
        %3727 = vmatprep.subr.bf16.mxu0 0
        %3728 = vmatpush1.bf16.msra.mxu0 0
        %3729 = vmatprep.subr.bf16.mxu0 0
        %3730 = vmatpush1.bf16.msra.mxu0 0
        %3731 = vmatprep.subr.bf16.mxu0 0
        %3732 = vmatpush1.bf16.msra.mxu0 0
        %3733 = vmatprep.subr.bf16.mxu0 0
        %3734 = vmatpush1.bf16.msra.mxu0 0
        %3735 = vmatprep.subr.bf16.mxu0 0
        %3736 = vmatpush1.bf16.msra.mxu0 0
        %3737 = vmatprep.subr.bf16.mxu0 0
        %3738 = vmatpush1.bf16.msra.mxu0 0
        %3739 = vmatprep.mubr.bf16.mxu0 0
        %3740 = vmatmul.mubr.bf16.gmra.mrb[0].mxu0 %v1901
        %v3741 = vpop.f32.mrb[0].mxu0
        %v3742 = vadd.f32 %v814, %v3741
        %v3743 = vpop.f32.mrb[0].mxu0
        %v3744 = vadd.f32 %v818, %v3743
        %v3745 = vpop.f32.mrb[0].mxu0
        %v3746 = vpop.f32.mrb[0].mxu0
        %3747 = vdwg.mxu0
        %3748 = vmatprep.subr.bf16.mxu0 %v1606
        %3749 = vmatpush1.bf16.msra.mxu0 %v1605
        %3750 = vmatprep.subr.bf16.mxu0 %v1702
        %3751 = vmatpush1.bf16.msra.mxu0 %v1701
        %3752 = vmatprep.subr.bf16.mxu0 0
        %3753 = vmatpush1.bf16.msra.mxu0 0
        %3754 = vmatprep.subr.bf16.mxu0 0
        %3755 = vmatpush1.bf16.msra.mxu0 0
        %3756 = vmatprep.subr.bf16.mxu0 0
        %3757 = vmatpush1.bf16.msra.mxu0 0
        %3758 = vmatprep.subr.bf16.mxu0 0
        %3759 = vmatpush1.bf16.msra.mxu0 0
        %3760 = vmatprep.subr.bf16.mxu0 0
        %3761 = vmatpush1.bf16.msra.mxu0 0
        %3762 = vmatprep.subr.bf16.mxu0 0
        %3763 = vmatpush1.bf16.msra.mxu0 0
        %3764 = vmatprep.subr.bf16.mxu0 0
        %3765 = vmatpush1.bf16.msra.mxu0 0
        %3766 = vmatprep.subr.bf16.mxu0 0
        %3767 = vmatpush1.bf16.msra.mxu0 0
        %3768 = vmatprep.subr.bf16.mxu0 0
        %3769 = vmatpush1.bf16.msra.mxu0 0
        %3770 = vmatprep.subr.bf16.mxu0 0
        %3771 = vmatpush1.bf16.msra.mxu0 0
        %3772 = vmatprep.subr.bf16.mxu0 0
        %3773 = vmatpush1.bf16.msra.mxu0 0
        %3774 = vmatprep.subr.bf16.mxu0 0
        %3775 = vmatpush1.bf16.msra.mxu0 0
        %3776 = vmatprep.subr.bf16.mxu0 0
        %3777 = vmatpush1.bf16.msra.mxu0 0
        %3778 = vmatprep.subr.bf16.mxu0 0
        %3779 = vmatpush1.bf16.msra.mxu0 0
        %3780 = vmatprep.mubr.bf16.mxu0 0
        %3781 = vmatmul.mubr.bf16.gmra.mrb[0].mxu0 %v1901
        %v3782 = vpop.f32.mrb[0].mxu0
        %v3783 = vadd.f32 %v822, %v3782
        %v3784 = vpop.f32.mrb[0].mxu0
        %v3785 = vadd.f32 %v826, %v3784
        %v3786 = vpop.f32.mrb[0].mxu0
        %v3787 = vpop.f32.mrb[0].mxu0
        %3788 = vdwg.mxu0
        %3789 = vmatprep.subr.bf16.mxu0 %v1608
        %3790 = vmatpush1.bf16.msra.mxu0 %v1607
        %3791 = vmatprep.subr.bf16.mxu0 %v1704
        %3792 = vmatpush1.bf16.msra.mxu0 %v1703
        %3793 = vmatprep.subr.bf16.mxu0 0
        %3794 = vmatpush1.bf16.msra.mxu0 0
        %3795 = vmatprep.subr.bf16.mxu0 0
        %3796 = vmatpush1.bf16.msra.mxu0 0
        %3797 = vmatprep.subr.bf16.mxu0 0
        %3798 = vmatpush1.bf16.msra.mxu0 0
        %3799 = vmatprep.subr.bf16.mxu0 0
        %3800 = vmatpush1.bf16.msra.mxu0 0
        %3801 = vmatprep.subr.bf16.mxu0 0
        %3802 = vmatpush1.bf16.msra.mxu0 0
        %3803 = vmatprep.subr.bf16.mxu0 0
        %3804 = vmatpush1.bf16.msra.mxu0 0
        %3805 = vmatprep.subr.bf16.mxu0 0
        %3806 = vmatpush1.bf16.msra.mxu0 0
        %3807 = vmatprep.subr.bf16.mxu0 0
        %3808 = vmatpush1.bf16.msra.mxu0 0
        %3809 = vmatprep.subr.bf16.mxu0 0
        %3810 = vmatpush1.bf16.msra.mxu0 0
        %3811 = vmatprep.subr.bf16.mxu0 0
        %3812 = vmatpush1.bf16.msra.mxu0 0
        %3813 = vmatprep.subr.bf16.mxu0 0
        %3814 = vmatpush1.bf16.msra.mxu0 0
        %3815 = vmatprep.subr.bf16.mxu0 0
        %3816 = vmatpush1.bf16.msra.mxu0 0
        %3817 = vmatprep.subr.bf16.mxu0 0
        %3818 = vmatpush1.bf16.msra.mxu0 0
        %3819 = vmatprep.subr.bf16.mxu0 0
        %3820 = vmatpush1.bf16.msra.mxu0 0
        %3821 = vmatprep.mubr.bf16.mxu0 0
        %3822 = vmatmul.mubr.bf16.gmra.mrb[0].mxu0 %v1901
        %v3823 = vpop.f32.mrb[0].mxu0
        %v3824 = vadd.f32 %v830, %v3823
        %v3825 = vpop.f32.mrb[0].mxu0
        %v3826 = vadd.f32 %v834, %v3825
        %v3827 = vpop.f32.mrb[0].mxu0
        %v3828 = vpop.f32.mrb[0].mxu0
        %3829 = vdwg.mxu0
        %3830 = vmatprep.subr.bf16.mxu0 %v1610
        %3831 = vmatpush1.bf16.msra.mxu0 %v1609
        %3832 = vmatprep.subr.bf16.mxu0 %v1706
        %3833 = vmatpush1.bf16.msra.mxu0 %v1705
        %3834 = vmatprep.subr.bf16.mxu0 0
        %3835 = vmatpush1.bf16.msra.mxu0 0
        %3836 = vmatprep.subr.bf16.mxu0 0
        %3837 = vmatpush1.bf16.msra.mxu0 0
        %3838 = vmatprep.subr.bf16.mxu0 0
        %3839 = vmatpush1.bf16.msra.mxu0 0
        %3840 = vmatprep.subr.bf16.mxu0 0
        %3841 = vmatpush1.bf16.msra.mxu0 0
        %3842 = vmatprep.subr.bf16.mxu0 0
        %3843 = vmatpush1.bf16.msra.mxu0 0
        %3844 = vmatprep.subr.bf16.mxu0 0
        %3845 = vmatpush1.bf16.msra.mxu0 0
        %3846 = vmatprep.subr.bf16.mxu0 0
        %3847 = vmatpush1.bf16.msra.mxu0 0
        %3848 = vmatprep.subr.bf16.mxu0 0
        %3849 = vmatpush1.bf16.msra.mxu0 0
        %3850 = vmatprep.subr.bf16.mxu0 0
        %3851 = vmatpush1.bf16.msra.mxu0 0
        %3852 = vmatprep.subr.bf16.mxu0 0
        %3853 = vmatpush1.bf16.msra.mxu0 0
        %3854 = vmatprep.subr.bf16.mxu0 0
        %3855 = vmatpush1.bf16.msra.mxu0 0
        %3856 = vmatprep.subr.bf16.mxu0 0
        %3857 = vmatpush1.bf16.msra.mxu0 0
        %3858 = vmatprep.subr.bf16.mxu0 0
        %3859 = vmatpush1.bf16.msra.mxu0 0
        %3860 = vmatprep.subr.bf16.mxu0 0
        %3861 = vmatpush1.bf16.msra.mxu0 0
        %3862 = vmatprep.mubr.bf16.mxu0 0
        %3863 = vmatmul.mubr.bf16.gmra.mrb[0].mxu0 %v1901
        %v3864 = vpop.f32.mrb[0].mxu0
        %v3865 = vadd.f32 %v838, %v3864
        %v3866 = vpop.f32.mrb[0].mxu0
        %v3867 = vadd.f32 %v842, %v3866
        %v3868 = vpop.f32.mrb[0].mxu0
        %v3869 = vpop.f32.mrb[0].mxu0
        %3870 = vdwg.mxu0
        %v3967 = vcombine.low %v1938, %v1940
        %v3968 = vcombine.low %v1979, %v1981
        %v3970 = vunpack.c.l.s4 1983009808
        %v3971 = vunpack.c.0.s8 %v3970
        %v3972 = vlaneseq
        %v3973 = vshrl.u32 %v3972, 7
        %v3974 = vsub.s32 %v3971, %v3973
        %v3975 = vrot.slane %v3967, %v3974
        %v3977 = vunpack.c.l.s4 1983009808
        %v3978 = vunpack.c.0.s8 %v3977
        %v3979 = vlaneseq
        %v3980 = vshrl.u32 %v3979, 7
        %v3981 = vsub.s32 %v3978, %v3980
        %v3982 = vrot.slane %v3968, %v3981
        %v3983 = vcombine.low %v3975, %v3982
        %v3984 = vcombine.low %v2020, %v2022
        %v3985 = vcombine.low %v2061, %v2063
        %v3987 = vunpack.c.l.s4 1983009808
        %v3988 = vunpack.c.0.s8 %v3987
        %v3989 = vlaneseq
        %v3990 = vshrl.u32 %v3989, 7
        %v3991 = vsub.s32 %v3988, %v3990
        %v3992 = vrot.slane %v3984, %v3991
        %v3994 = vunpack.c.l.s4 1983009808
        %v3995 = vunpack.c.0.s8 %v3994
        %v3996 = vlaneseq
        %v3997 = vshrl.u32 %v3996, 7
        %v3998 = vsub.s32 %v3995, %v3997
        %v3999 = vrot.slane %v3985, %v3998
        %v4000 = vcombine.low %v3992, %v3999
        %v4001 = vcombine.low %v2102, %v2104
        %v4002 = vcombine.low %v2143, %v2145
        %v4004 = vunpack.c.l.s4 1983009808
        %v4005 = vunpack.c.0.s8 %v4004
        %v4006 = vlaneseq
        %v4007 = vshrl.u32 %v4006, 7
        %v4008 = vsub.s32 %v4005, %v4007
        %v4009 = vrot.slane %v4001, %v4008
        %v4011 = vunpack.c.l.s4 1983009808
        %v4012 = vunpack.c.0.s8 %v4011
        %v4013 = vlaneseq
        %v4014 = vshrl.u32 %v4013, 7
        %v4015 = vsub.s32 %v4012, %v4014
        %v4016 = vrot.slane %v4002, %v4015
        %v4017 = vcombine.low %v4009, %v4016
        %v4018 = vcombine.low %v2184, %v2186
        %v4019 = vcombine.low %v2225, %v2227
        %v4021 = vunpack.c.l.s4 1983009808
        %v4022 = vunpack.c.0.s8 %v4021
        %v4023 = vlaneseq
        %v4024 = vshrl.u32 %v4023, 7
        %v4025 = vsub.s32 %v4022, %v4024
        %v4026 = vrot.slane %v4018, %v4025
        %v4028 = vunpack.c.l.s4 1983009808
        %v4029 = vunpack.c.0.s8 %v4028
        %v4030 = vlaneseq
        %v4031 = vshrl.u32 %v4030, 7
        %v4032 = vsub.s32 %v4029, %v4031
        %v4033 = vrot.slane %v4019, %v4032
        %v4034 = vcombine.low %v4026, %v4033
        %v4035 = vcombine.low %v2266, %v2268
        %v4036 = vcombine.low %v2307, %v2309
        %v4038 = vunpack.c.l.s4 1983009808
        %v4039 = vunpack.c.0.s8 %v4038
        %v4040 = vlaneseq
        %v4041 = vshrl.u32 %v4040, 7
        %v4042 = vsub.s32 %v4039, %v4041
        %v4043 = vrot.slane %v4035, %v4042
        %v4045 = vunpack.c.l.s4 1983009808
        %v4046 = vunpack.c.0.s8 %v4045
        %v4047 = vlaneseq
        %v4048 = vshrl.u32 %v4047, 7
        %v4049 = vsub.s32 %v4046, %v4048
        %v4050 = vrot.slane %v4036, %v4049
        %v4051 = vcombine.low %v4043, %v4050
        %v4052 = vcombine.low %v2348, %v2350
        %v4053 = vcombine.low %v2389, %v2391
        %v4055 = vunpack.c.l.s4 1983009808
        %v4056 = vunpack.c.0.s8 %v4055
        %v4057 = vlaneseq
        %v4058 = vshrl.u32 %v4057, 7
        %v4059 = vsub.s32 %v4056, %v4058
        %v4060 = vrot.slane %v4052, %v4059
        %v4062 = vunpack.c.l.s4 1983009808
        %v4063 = vunpack.c.0.s8 %v4062
        %v4064 = vlaneseq
        %v4065 = vshrl.u32 %v4064, 7
        %v4066 = vsub.s32 %v4063, %v4065
        %v4067 = vrot.slane %v4053, %v4066
        %v4068 = vcombine.low %v4060, %v4067
        %v4069 = vcombine.low %v2430, %v2432
        %v4070 = vcombine.low %v2471, %v2473
        %v4072 = vunpack.c.l.s4 1983009808
        %v4073 = vunpack.c.0.s8 %v4072
        %v4074 = vlaneseq
        %v4075 = vshrl.u32 %v4074, 7
        %v4076 = vsub.s32 %v4073, %v4075
        %v4077 = vrot.slane %v4069, %v4076
        %v4079 = vunpack.c.l.s4 1983009808
        %v4080 = vunpack.c.0.s8 %v4079
        %v4081 = vlaneseq
        %v4082 = vshrl.u32 %v4081, 7
        %v4083 = vsub.s32 %v4080, %v4082
        %v4084 = vrot.slane %v4070, %v4083
        %v4085 = vcombine.low %v4077, %v4084
        %v4086 = vcombine.low %v2512, %v2514
        %v4087 = vcombine.low %v2553, %v2555
        %v4089 = vunpack.c.l.s4 1983009808
        %v4090 = vunpack.c.0.s8 %v4089
        %v4091 = vlaneseq
        %v4092 = vshrl.u32 %v4091, 7
        %v4093 = vsub.s32 %v4090, %v4092
        %v4094 = vrot.slane %v4086, %v4093
        %v4096 = vunpack.c.l.s4 1983009808
        %v4097 = vunpack.c.0.s8 %v4096
        %v4098 = vlaneseq
        %v4099 = vshrl.u32 %v4098, 7
        %v4100 = vsub.s32 %v4097, %v4099
        %v4101 = vrot.slane %v4087, %v4100
        %v4102 = vcombine.low %v4094, %v4101
        %v4103 = vcombine.low %v2594, %v2596
        %v4104 = vcombine.low %v2635, %v2637
        %v4106 = vunpack.c.l.s4 1983009808
        %v4107 = vunpack.c.0.s8 %v4106
        %v4108 = vlaneseq
        %v4109 = vshrl.u32 %v4108, 7
        %v4110 = vsub.s32 %v4107, %v4109
        %v4111 = vrot.slane %v4103, %v4110
        %v4113 = vunpack.c.l.s4 1983009808
        %v4114 = vunpack.c.0.s8 %v4113
        %v4115 = vlaneseq
        %v4116 = vshrl.u32 %v4115, 7
        %v4117 = vsub.s32 %v4114, %v4116
        %v4118 = vrot.slane %v4104, %v4117
        %v4119 = vcombine.low %v4111, %v4118
        %v4120 = vcombine.low %v2676, %v2678
        %v4121 = vcombine.low %v2717, %v2719
        %v4123 = vunpack.c.l.s4 1983009808
        %v4124 = vunpack.c.0.s8 %v4123
        %v4125 = vlaneseq
        %v4126 = vshrl.u32 %v4125, 7
        %v4127 = vsub.s32 %v4124, %v4126
        %v4128 = vrot.slane %v4120, %v4127
        %v4130 = vunpack.c.l.s4 1983009808
        %v4131 = vunpack.c.0.s8 %v4130
        %v4132 = vlaneseq
        %v4133 = vshrl.u32 %v4132, 7
        %v4134 = vsub.s32 %v4131, %v4133
        %v4135 = vrot.slane %v4121, %v4134
        %v4136 = vcombine.low %v4128, %v4135
        %v4137 = vcombine.low %v2758, %v2760
        %v4138 = vcombine.low %v2799, %v2801
        %v4140 = vunpack.c.l.s4 1983009808
        %v4141 = vunpack.c.0.s8 %v4140
        %v4142 = vlaneseq
        %v4143 = vshrl.u32 %v4142, 7
        %v4144 = vsub.s32 %v4141, %v4143
        %v4145 = vrot.slane %v4137, %v4144
        %v4147 = vunpack.c.l.s4 1983009808
        %v4148 = vunpack.c.0.s8 %v4147
        %v4149 = vlaneseq
        %v4150 = vshrl.u32 %v4149, 7
        %v4151 = vsub.s32 %v4148, %v4150
        %v4152 = vrot.slane %v4138, %v4151
        %v4153 = vcombine.low %v4145, %v4152
        %v4154 = vcombine.low %v2840, %v2842
        %v4155 = vcombine.low %v2881, %v2883
        %v4157 = vunpack.c.l.s4 1983009808
        %v4158 = vunpack.c.0.s8 %v4157
        %v4159 = vlaneseq
        %v4160 = vshrl.u32 %v4159, 7
        %v4161 = vsub.s32 %v4158, %v4160
        %v4162 = vrot.slane %v4154, %v4161
        %v4164 = vunpack.c.l.s4 1983009808
        %v4165 = vunpack.c.0.s8 %v4164
        %v4166 = vlaneseq
        %v4167 = vshrl.u32 %v4166, 7
        %v4168 = vsub.s32 %v4165, %v4167
        %v4169 = vrot.slane %v4155, %v4168
        %v4170 = vcombine.low %v4162, %v4169
        %v4171 = vcombine.low %v2922, %v2924
        %v4172 = vcombine.low %v2963, %v2965
        %v4174 = vunpack.c.l.s4 1983009808
        %v4175 = vunpack.c.0.s8 %v4174
        %v4176 = vlaneseq
        %v4177 = vshrl.u32 %v4176, 7
        %v4178 = vsub.s32 %v4175, %v4177
        %v4179 = vrot.slane %v4171, %v4178
        %v4181 = vunpack.c.l.s4 1983009808
        %v4182 = vunpack.c.0.s8 %v4181
        %v4183 = vlaneseq
        %v4184 = vshrl.u32 %v4183, 7
        %v4185 = vsub.s32 %v4182, %v4184
        %v4186 = vrot.slane %v4172, %v4185
        %v4187 = vcombine.low %v4179, %v4186
        %v4188 = vcombine.low %v3004, %v3006
        %v4189 = vcombine.low %v3045, %v3047
        %v4191 = vunpack.c.l.s4 1983009808
        %v4192 = vunpack.c.0.s8 %v4191
        %v4193 = vlaneseq
        %v4194 = vshrl.u32 %v4193, 7
        %v4195 = vsub.s32 %v4192, %v4194
        %v4196 = vrot.slane %v4188, %v4195
        %v4198 = vunpack.c.l.s4 1983009808
        %v4199 = vunpack.c.0.s8 %v4198
        %v4200 = vlaneseq
        %v4201 = vshrl.u32 %v4200, 7
        %v4202 = vsub.s32 %v4199, %v4201
        %v4203 = vrot.slane %v4189, %v4202
        %v4204 = vcombine.low %v4196, %v4203
        %v4205 = vcombine.low %v3086, %v3088
        %v4206 = vcombine.low %v3127, %v3129
        %v4208 = vunpack.c.l.s4 1983009808
        %v4209 = vunpack.c.0.s8 %v4208
        %v4210 = vlaneseq
        %v4211 = vshrl.u32 %v4210, 7
        %v4212 = vsub.s32 %v4209, %v4211
        %v4213 = vrot.slane %v4205, %v4212
        %v4215 = vunpack.c.l.s4 1983009808
        %v4216 = vunpack.c.0.s8 %v4215
        %v4217 = vlaneseq
        %v4218 = vshrl.u32 %v4217, 7
        %v4219 = vsub.s32 %v4216, %v4218
        %v4220 = vrot.slane %v4206, %v4219
        %v4221 = vcombine.low %v4213, %v4220
        %v4222 = vcombine.low %v3168, %v3170
        %v4223 = vcombine.low %v3209, %v3211
        %v4225 = vunpack.c.l.s4 1983009808
        %v4226 = vunpack.c.0.s8 %v4225
        %v4227 = vlaneseq
        %v4228 = vshrl.u32 %v4227, 7
        %v4229 = vsub.s32 %v4226, %v4228
        %v4230 = vrot.slane %v4222, %v4229
        %v4232 = vunpack.c.l.s4 1983009808
        %v4233 = vunpack.c.0.s8 %v4232
        %v4234 = vlaneseq
        %v4235 = vshrl.u32 %v4234, 7
        %v4236 = vsub.s32 %v4233, %v4235
        %v4237 = vrot.slane %v4223, %v4236
        %v4238 = vcombine.low %v4230, %v4237
        %v4239 = vcombine.low %v3250, %v3252
        %v4240 = vcombine.low %v3291, %v3293
        %v4242 = vunpack.c.l.s4 1983009808
        %v4243 = vunpack.c.0.s8 %v4242
        %v4244 = vlaneseq
        %v4245 = vshrl.u32 %v4244, 7
        %v4246 = vsub.s32 %v4243, %v4245
        %v4247 = vrot.slane %v4239, %v4246
        %v4249 = vunpack.c.l.s4 1983009808
        %v4250 = vunpack.c.0.s8 %v4249
        %v4251 = vlaneseq
        %v4252 = vshrl.u32 %v4251, 7
        %v4253 = vsub.s32 %v4250, %v4252
        %v4254 = vrot.slane %v4240, %v4253
        %v4255 = vcombine.low %v4247, %v4254
        %v4256 = vcombine.low %v3332, %v3334
        %v4257 = vcombine.low %v3373, %v3375
        %v4259 = vunpack.c.l.s4 1983009808
        %v4260 = vunpack.c.0.s8 %v4259
        %v4261 = vlaneseq
        %v4262 = vshrl.u32 %v4261, 7
        %v4263 = vsub.s32 %v4260, %v4262
        %v4264 = vrot.slane %v4256, %v4263
        %v4266 = vunpack.c.l.s4 1983009808
        %v4267 = vunpack.c.0.s8 %v4266
        %v4268 = vlaneseq
        %v4269 = vshrl.u32 %v4268, 7
        %v4270 = vsub.s32 %v4267, %v4269
        %v4271 = vrot.slane %v4257, %v4270
        %v4272 = vcombine.low %v4264, %v4271
        %v4273 = vcombine.low %v3414, %v3416
        %v4274 = vcombine.low %v3455, %v3457
        %v4276 = vunpack.c.l.s4 1983009808
        %v4277 = vunpack.c.0.s8 %v4276
        %v4278 = vlaneseq
        %v4279 = vshrl.u32 %v4278, 7
        %v4280 = vsub.s32 %v4277, %v4279
        %v4281 = vrot.slane %v4273, %v4280
        %v4283 = vunpack.c.l.s4 1983009808
        %v4284 = vunpack.c.0.s8 %v4283
        %v4285 = vlaneseq
        %v4286 = vshrl.u32 %v4285, 7
        %v4287 = vsub.s32 %v4284, %v4286
        %v4288 = vrot.slane %v4274, %v4287
        %v4289 = vcombine.low %v4281, %v4288
        %v4290 = vcombine.low %v3496, %v3498
        %v4291 = vcombine.low %v3537, %v3539
        %v4293 = vunpack.c.l.s4 1983009808
        %v4294 = vunpack.c.0.s8 %v4293
        %v4295 = vlaneseq
        %v4296 = vshrl.u32 %v4295, 7
        %v4297 = vsub.s32 %v4294, %v4296
        %v4298 = vrot.slane %v4290, %v4297
        %v4300 = vunpack.c.l.s4 1983009808
        %v4301 = vunpack.c.0.s8 %v4300
        %v4302 = vlaneseq
        %v4303 = vshrl.u32 %v4302, 7
        %v4304 = vsub.s32 %v4301, %v4303
        %v4305 = vrot.slane %v4291, %v4304
        %v4306 = vcombine.low %v4298, %v4305
        %v4307 = vcombine.low %v3578, %v3580
        %v4308 = vcombine.low %v3619, %v3621
        %v4310 = vunpack.c.l.s4 1983009808
        %v4311 = vunpack.c.0.s8 %v4310
        %v4312 = vlaneseq
        %v4313 = vshrl.u32 %v4312, 7
        %v4314 = vsub.s32 %v4311, %v4313
        %v4315 = vrot.slane %v4307, %v4314
        %v4317 = vunpack.c.l.s4 1983009808
        %v4318 = vunpack.c.0.s8 %v4317
        %v4319 = vlaneseq
        %v4320 = vshrl.u32 %v4319, 7
        %v4321 = vsub.s32 %v4318, %v4320
        %v4322 = vrot.slane %v4308, %v4321
        %v4323 = vcombine.low %v4315, %v4322
        %v4324 = vcombine.low %v3660, %v3662
        %v4325 = vcombine.low %v3701, %v3703
        %v4327 = vunpack.c.l.s4 1983009808
        %v4328 = vunpack.c.0.s8 %v4327
        %v4329 = vlaneseq
        %v4330 = vshrl.u32 %v4329, 7
        %v4331 = vsub.s32 %v4328, %v4330
        %v4332 = vrot.slane %v4324, %v4331
        %v4334 = vunpack.c.l.s4 1983009808
        %v4335 = vunpack.c.0.s8 %v4334
        %v4336 = vlaneseq
        %v4337 = vshrl.u32 %v4336, 7
        %v4338 = vsub.s32 %v4335, %v4337
        %v4339 = vrot.slane %v4325, %v4338
        %v4340 = vcombine.low %v4332, %v4339
        %v4341 = vcombine.low %v3742, %v3744
        %v4342 = vcombine.low %v3783, %v3785
        %v4344 = vunpack.c.l.s4 1983009808
        %v4345 = vunpack.c.0.s8 %v4344
        %v4346 = vlaneseq
        %v4347 = vshrl.u32 %v4346, 7
        %v4348 = vsub.s32 %v4345, %v4347
        %v4349 = vrot.slane %v4341, %v4348
        %v4351 = vunpack.c.l.s4 1983009808
        %v4352 = vunpack.c.0.s8 %v4351
        %v4353 = vlaneseq
        %v4354 = vshrl.u32 %v4353, 7
        %v4355 = vsub.s32 %v4352, %v4354
        %v4356 = vrot.slane %v4342, %v4355
        %v4357 = vcombine.low %v4349, %v4356
        %v4358 = vcombine.low %v3824, %v3826
        %v4359 = vcombine.low %v3865, %v3867
        %v4361 = vunpack.c.l.s4 1983009808
        %v4362 = vunpack.c.0.s8 %v4361
        %v4363 = vlaneseq
        %v4364 = vshrl.u32 %v4363, 7
        %v4365 = vsub.s32 %v4362, %v4364
        %v4366 = vrot.slane %v4358, %v4365
        %v4368 = vunpack.c.l.s4 1983009808
        %v4369 = vunpack.c.0.s8 %v4368
        %v4370 = vlaneseq
        %v4371 = vshrl.u32 %v4370, 7
        %v4372 = vsub.s32 %v4369, %v4371
        %v4373 = vrot.slane %v4359, %v4372
        %v4374 = vcombine.low %v4366, %v4373
        %4399 = vst [vmem:[%s236] sm:$0xff] %v3983
        %4400 = vst [vmem:[%s236 + $0x8] sm:$0xff] %v4000
        %4401 = vst [vmem:[%s236 + $0x10] sm:$0xff] %v4017
        %4402 = vst [vmem:[%s236 + $0x18] sm:$0xff] %v4034
        %4403 = vst [vmem:[%s236 + $0x20] sm:$0xff] %v4051
        %4404 = vst [vmem:[%s236 + $0x28] sm:$0xff] %v4068
        %4405 = vst [vmem:[%s236 + $0x30] sm:$0xff] %v4085
        %4406 = vst [vmem:[%s236 + $0x38] sm:$0xff] %v4102
        %4407 = vst [vmem:[%s236 + $0x40] sm:$0xff] %v4119
        %4408 = vst [vmem:[%s236 + $0x48] sm:$0xff] %v4136
        %4409 = vst [vmem:[%s236 + $0x50] sm:$0xff] %v4153
        %4410 = vst [vmem:[%s236 + $0x58] sm:$0xff] %v4170
        %4411 = vst [vmem:[%s236 + $0x60] sm:$0xff] %v4187
        %4412 = vst [vmem:[%s236 + $0x68] sm:$0xff] %v4204
        %4413 = vst [vmem:[%s236 + $0x70] sm:$0xff] %v4221
        %4414 = vst [vmem:[%s236 + $0x78] sm:$0xff] %v4238
        %4415 = vst [vmem:[%s236 + $0x80] sm:$0xff] %v4255
        %4416 = vst [vmem:[%s236 + $0x88] sm:$0xff] %v4272
        %4417 = vst [vmem:[%s236 + $0x90] sm:$0xff] %v4289
        %4418 = vst [vmem:[%s236 + $0x98] sm:$0xff] %v4306
        %4419 = vst [vmem:[%s236 + $0xa0] sm:$0xff] %v4323
        %4420 = vst [vmem:[%s236 + $0xa8] sm:$0xff] %v4340
        %4421 = vst [vmem:[%s236 + $0xb0] sm:$0xff] %v4357
        %4422 = vst [vmem:[%s236 + $0xb8] sm:$0xff] %v4374
        %s4423 = sand.u32 %s102, 1
        %s4424 = scalar_lea.sflag [#allocation4], %s4423
        %s4425 = sand.u32 %s102, 1
        %s4426 = smul.addr %s4425, 192
        %s4427 = scalar_lea.vmem [#allocation8], %s4426
        // Predicated region
        $region45: #{tpu_custom_call.1} parent=31 // pred_check
          %p4428 = pneg %p112
        $region46: #{tpu_custom_call.1} parent=31 // pred_check_branch
          %4430 = sbr.rel (%p4428) target = $region48
        $region47: #{tpu_custom_call.1} parent=31 // pred_region
          %s4431 = smul.u32 96, %s21
          %s4433 = ssub.s32 3072, 3072
          %4434 = vsyncadd %s4424, %s4433
          %s4435 = smul.addr %s4431, 32
          %s4436 = scalar_lea.hbm %s3, %s4435
          %s4438 = sshll.u32 %s4427, 4
          %s4439 = int_to_ptr.vmem [resolvable:$true] %s4438
          %4441 = dma.vmem_to_hbm [thread:$0]  %s4439, 3072, %s4436, %s4424
        $region48: #{tpu_custom_call.1} parent=31 // pred_fallthru
          _
      $region32: #{tpu_custom_call.1} parent=5 // pred_fallthru
        _
      %p4442 = scmp.le.s32.totalorder 2, %s16
      // Predicated region
      $region49: #{tpu_custom_call.1} parent=5 // pred_check
        %p4443 = pneg %p4442
      $region50: #{tpu_custom_call.1} parent=5 // pred_check_branch
        %4445 = sbr.rel (%p4443) target = $region52
      $region51: #{tpu_custom_call.1} parent=5 // pred_region
        %s4446 = ssub.s32 %s16, 2
        // Predicated region
        $region53: #{tpu_custom_call.1} parent=51 // pred_check
          %p4447 = pneg %p118
        $region54: #{tpu_custom_call.1} parent=51 // pred_check_branch
          %4449 = sbr.rel (%p4447) target = $region56
        $region55: #{tpu_custom_call.1} parent=51 // pred_region
          %s4450 = sand.u32 %s103, 1
          %s4451 = scalar_lea.sflag [#allocation4], %s4450
          %s4452 = sand.u32 %s103, 1
          %s4453 = smul.addr %s4452, 192
          %s4454 = scalar_lea.vmem [#allocation8], %s4453
          %4455 = dma.done %s4451, 3072
        $region56: #{tpu_custom_call.1} parent=51 // pred_fallthru
          _
      $region52: #{tpu_custom_call.1} parent=5 // pred_fallthru
        _
    $region6: #{tpu_custom_call.1} parent=1 // loop_footer
      %s20 = sadd.s32 1, %s16
    $region7: #{tpu_custom_call.1} parent=1 // loop_footer_branch
      %15 = sbr.rel target = $region3
    $region8: #{tpu_custom_call.1} parent=1 // loop_exit
      _
    %4456 = vsyncpa [#allocation3], 1
    %s4457 = scalar_lea.sflag [#allocation3], 1
    %4458 = vsyncpa %s4457, 1
    %4459 = vsyncpa [#allocation6], 1
    %s4460 = scalar_lea.sflag [#allocation6], 1
    %4461 = vsyncpa %s4460, 1
    %4462 = vsyncpa [#allocation4], 1
    %s4463 = scalar_lea.sflag [#allocation4], 1
    %4464 = vsyncpa %s4463, 1

</llo_original>
